<compile_context>
chip_gen: v7x
topology: tpu7x:2x2x1
jax: 0.10.0
libtpu: 0.0.40
codegen_flags: <defaults>
</compile_context>

<pallas_src>
import jax
import jax.numpy as jnp
from jax import lax
from jax.experimental import pallas as pl
from jax.experimental.pallas import tpu as pltpu

_C = 128                                  # padded channel width (one 128-lane tile)
# (cin, cout) of conv2..conv7 (conv1 is handled via im2col in the wrapper).
_CONV_CFG = ((64, 64), (64, 64), (64, 64), (64, 128), (128, 128), (128, 128))


def tcn_kernel(x_ref, w0_ref, wc_ref, bc_ref, fcw_ref, fcb_ref, out_ref):
    Bb, L, C = x_ref.shape
    M = Bb * L

    # ---- conv1 (20->64): im2col'ed input, bias folded into the weight -> one matmul. ----
    a = jnp.maximum(
        jnp.dot(x_ref[...].reshape(M, C), w0_ref[...],
                preferred_element_type=jnp.float32),
        0.0)                                            # (M,128) f32, lanes 0:64 valid

    # Per-sequence boundary / lane masks (computed once; the iota is not kept live).
    t = lax.broadcasted_iota(jnp.int32, (Bb, L, C), 1).reshape(M, C)
    is_first = t == 0                                   # first row of every sequence
    is_last = t == (L - 1)                              # last row of every sequence
    lane_lo = lax.broadcasted_iota(jnp.int32, (M, C), 1) < 64

    # ---- conv2..conv7: one fused matmul per layer on the shifted-input packing. ----
    for i, (cin, cout) in enumerate(_CONV_CFG):
        # x[t-1], with the first row of every sequence zeroed (32-bit roll + mask, then cast).
        down = jnp.where(is_first, 0.0, pltpu.roll(a, 1, axis=0))
        if cin == 64:
            # Pack [x(t) | x(t-1)] into one 128-lane operand (lanes 0:64 | 64:128).
            xin = jnp.where(lane_lo, a,
                            pltpu.roll(down, 64, axis=1)).astype(jnp.bfloat16)
        else:
            # 128-channel layers: 256-lane operand, single 256x256 weight tile.
            xin = jnp.concatenate(
                [a.astype(jnp.bfloat16), down.astype(jnp.bfloat16)], axis=1)

        # Weight tile [[W1, W2], [W0, 0]]: output cols [0:cout] = W1*x(t) + W0*x(t-1),
        # cols [cout:2*cout] = W2*x(t)  (to be shifted up by one time step).
        w = wc_ref[i][:2 * cin, :2 * cout]
        y = jnp.dot(xin, w, preferred_element_type=jnp.float32)     # (M, 2*cout) f32
        b = bc_ref[i]                                                # (1, 128) f32

        if cout == 64:
            # y2 lives in lanes 64:128; roll it up one row and fold back onto lanes 0:64.
            up = jnp.where(is_last, 0.0, pltpu.roll(y, M - 1, axis=0))
            a = jnp.maximum(y + pltpu.roll(up, 64, axis=1) + b, 0.0)
            # lanes 64:128 of `a` are don't-care; downstream packing never selects them.
        else:
            up = jnp.where(is_last, 0.0, pltpu.roll(y[:, C:], M - 1, axis=0))
            a = jnp.maximum(y[:, :C] + up + b, 0.0)

    # ---- Mean over time folded into the FC (fcw pre-scaled by 1/L). ----
    pooled = jnp.sum(a.reshape(Bb, L, C), axis=1)                    # (Bb, 128) f32
    out_ref[...] = (jnp.dot(pooled.astype(jnp.bfloat16), fcw_ref[...],
                            preferred_element_type=jnp.float32) + fcb_ref[...])


def _round_up(x, m):
    return (x + m - 1) // m * m


def _pack_params(params, L):
    """Pack the 16 PyTorch parameters into MXU-friendly padded operands."""
    C = _C
    convs = params["convs"]

    # conv1: im2col weight with the bias folded in via the constant-1 input lane.
    w1_, b1_ = convs[0]                                   # (3, 20, 64), (64,)
    cin0 = w1_.shape[1]
    w0 = jnp.zeros((C, C), jnp.float32)
    for k in range(3):                                    # rows [k*cin0:(k+1)*cin0] <- tap k
        w0 = w0.at[k * cin0:(k + 1) * cin0, :64].set(w1_[k])
    w0 = w0.at[3 * cin0, :64].set(b1_)                    # constant-1 lane -> bias
    w0 = w0.astype(jnp.bfloat16)                          # (128, 128) bf16

    # conv2..conv7: tile [[W1, W2], [W0, 0]] zero-padded into a (256, 256) block each.
    wcs, bcs = [], []
    for w, b in convs[1:]:
        _, cin, cout = w.shape
        wt = jnp.zeros((2 * C, 2 * C), jnp.float32)
        wt = wt.at[:cin, :cout].set(w[1])                 # x[t]   tap
        wt = wt.at[cin:2 * cin, :cout].set(w[0])          # x[t-1] tap (shifted input half)
        wt = wt.at[:cin, cout:2 * cout].set(w[2])         # x[t+1] tap (shifted after matmul)
        wcs.append(wt)
        bcs.append(jnp.zeros((C,), jnp.float32).at[:cout].set(b))
    wc = jnp.stack(wcs).astype(jnp.bfloat16)              # (6, 256, 256) bf16
    bc = jnp.stack(bcs).reshape(len(bcs), 1, C)           # (6, 1, 128)   f32

    n_out = params["fc_w"].shape[1]
    fcw = (jnp.zeros((C, C), jnp.float32)
           .at[:, :n_out].set(params["fc_w"] / L)         # fold the temporal mean (1/L)
           .astype(jnp.bfloat16))                         # (128, 128)    bf16
    fcb = jnp.zeros((1, C), jnp.float32).at[0, :n_out].set(params["fc_b"])
    return w0, wc, bc, fcw, fcb


def tcn_forward(x_ncl, params, *, target_rows=2048):
    B, Cin, L = x_ncl.shape
    C = _C
    assert 3 * Cin + 1 <= C, "im2col'ed first layer must fit in one 128-lane tile"

    # Batch block: multiple of 8 (so M = Bb*L and the (Bb,128) output block are 8-aligned),
    # sized so each grid step's matmuls see roughly target_rows rows.
    Bb = max(8, min(_round_up(B, 8), _round_up(max(target_rows // L, 1), 8)))
    if B <= Bb and B > 8 and (Bb // 2) * L >= 512:
        Bb = _round_up(pl.cdiv(B, 2), 8)       # >= 2 grid steps for dual-TensorCore chips
    n_blocks = pl.cdiv(B, Bb)
    Bpad = n_blocks * Bb
    # TODO(synk): very long L (where even Bb=8 exceeds VMEM) would need an L-chunked grid axis.

    w0, wc, bc, fcw, fcb = _pack_params(params, L)

    # im2col for conv1: [x(t-1) | x(t) | x(t+1) | 1], zero-padded to 128 lanes / Bpad rows.
    x = jnp.transpose(x_ncl, (0, 2, 1)).astype(jnp.float32)           # (B, L, Cin)
    zero = jnp.zeros_like(x[:, :1])
    xm = jnp.concatenate(
        [jnp.concatenate([zero, x[:, :-1]], axis=1),                  # x[t-1]
         x,                                                           # x[t]
         jnp.concatenate([x[:, 1:], zero], axis=1),                   # x[t+1]
         jnp.ones((B, L, 1), jnp.float32)], axis=2)                   # constant-1 bias lane
    xm = jnp.pad(xm, ((0, Bpad - B), (0, 0), (0, C - xm.shape[2]))).astype(jnp.bfloat16)

    out = pl.pallas_call(
        tcn_kernel,
        out_shape=jax.ShapeDtypeStruct((Bpad, C), jnp.float32),
        grid=(n_blocks,),
        in_specs=[
            pl.BlockSpec((Bb, L, C), lambda g: (g, 0, 0)),
            pl.BlockSpec(w0.shape, lambda g: (0, 0)),
            pl.BlockSpec(wc.shape, lambda g: (0, 0, 0)),
            pl.BlockSpec(bc.shape, lambda g: (0, 0, 0)),
            pl.BlockSpec(fcw.shape, lambda g: (0, 0)),
            pl.BlockSpec(fcb.shape, lambda g: (0, 0)),
        ],
        out_specs=pl.BlockSpec((Bb, C), lambda g: (g, 0)),
        compiler_params=pltpu.CompilerParams(
            dimension_semantics=("parallel",),
            vmem_limit_bytes=32 * 1024 * 1024),
    )(xm, w0, wc, bc, fcw, fcb)

    return out[:B, :3]


def init_params(key):
    # Conv weights stored as (K=3, Cin, Cout); fc weight as (128, 3) — PyTorch init ranges.
    chans = [(20, 64), (64, 64), (64, 64), (64, 64), (64, 128), (128, 128), (128, 128)]
    convs = []
    for cin, cout in chans:
        key, kw, kb = jax.random.split(key, 3)
        bound = 1.0 / jnp.sqrt(cin * 3.0)
        w = jax.random.uniform(kw, (3, cin, cout), jnp.float32, -bound, bound)
        b = jax.random.uniform(kb, (cout,), jnp.float32, -bound, bound)
        convs.append((w, b))
    key, kw, kb = jax.random.split(key, 3)
    bound = 1.0 / jnp.sqrt(128.0)
    fc_w = jax.random.uniform(kw, (128, 3), jnp.float32, -bound, bound)
    fc_b = jax.random.uniform(kb, (3,), jnp.float32, -bound, bound)
    return {"convs": convs, "fc_w": fc_w, "fc_b": fc_b}


def ref_forward_f32(x_ncl, params):
    # Plain-JAX f32 reference matching PyTorch semantics (cross-correlation, pad=1).
    x = jnp.transpose(x_ncl, (0, 2, 1)).astype(jnp.float32)           # (B, L, C)
    for w, b in params["convs"]:
        xp = jnp.pad(x, ((0, 0), (1, 1), (0, 0)))
        y = (jnp.einsum("blc,co->blo", xp[:, :-2], w[0])
             + jnp.einsum("blc,co->blo", xp[:, 1:-1], w[1])
             + jnp.einsum("blc,co->blo", xp[:, 2:], w[2])
             + b)
        x = jnp.maximum(y, 0.0)
    pooled = jnp.mean(x, axis=1)                                      # (B, 128)
    return pooled @ params["fc_w"] + params["fc_b"]


def ref_forward_bf16(x_ncl, params):
    # Reference with bf16 applied at the same points as the kernel (bf16 matmul operands,
    # f32 accumulation; conv1's bias is folded through a bf16 weight lane in the kernel).
    L = x_ncl.shape[2]
    a = jnp.transpose(x_ncl, (0, 2, 1)).astype(jnp.bfloat16).astype(jnp.float32)
    for li, (w, b) in enumerate(params["convs"]):
        hb = a.astype(jnp.bfloat16)
        wb = w.astype(jnp.bfloat16)
        y0 = jnp.einsum("blc,co->blo", hb, wb[0], preferred_element_type=jnp.float32)
        y1 = jnp.einsum("blc,co->blo", hb, wb[1], preferred_element_type=jnp.float32)
        y2 = jnp.einsum("blc,co->blo", hb, wb[2], preferred_element_type=jnp.float32)
        zero = jnp.zeros_like(y0[:, :1])
        down = jnp.concatenate([zero, y0[:, :-1]], axis=1)            # += x[t-1] @ w0
        up = jnp.concatenate([y2[:, 1:], zero], axis=1)               # += x[t+1] @ w2
        bb = b.astype(jnp.bfloat16).astype(jnp.float32) if li == 0 else b
        a = jnp.maximum(y1 + down + up + bb[None, None, :], 0.0)
    pooled = jnp.sum(a, axis=1)                                       # (B, 128) f32
    fcw = (params["fc_w"] / L).astype(jnp.bfloat16)
    return (jnp.dot(pooled.astype(jnp.bfloat16), fcw,
                    preferred_element_type=jnp.float32) + params["fc_b"])


if __name__ == "__main__":
    key = jax.random.PRNGKey(0)
    pkey, xkey = jax.random.split(key)
    params = init_params(pkey)

    B, Cin, L = 2, 20, 16
    x = jax.random.normal(xkey, (B, Cin, L), jnp.float32)             # PyTorch (B, C, L) layout

    out = jax.block_until_ready(tcn_forward(x, params))
    assert out.shape == (B, 3)

    # Tight check against a reference with identical bf16 quantization points.
    ref_b = ref_forward_bf16(x, params)
    assert jnp.allclose(out, ref_b, atol=2e-3, rtol=2e-3), (out, ref_b)

    # Sanity check against the full-f32 PyTorch-semantics reference (bf16 operand tolerance).
    ref_f = ref_forward_f32(x, params)
    assert jnp.allclose(out, ref_f, atol=2e-2, rtol=2e-2), (out, ref_f)

    print("KERNEL_OK")
</pallas_src>

<mosaic_0001>
module attributes {stable_mosaic.version = 11 : i64} {
  func.func @tcn_kernel(%arg0: i32, %arg1: memref<8x16x128xbf16, #tpu.memory_space<vmem>>, %arg2: memref<128x128xbf16, #tpu.memory_space<vmem>>, %arg3: memref<6x256x256xbf16, #tpu.memory_space<vmem>>, %arg4: memref<6x1x128xf32, #tpu.memory_space<vmem>>, %arg5: memref<128x128xbf16, #tpu.memory_space<vmem>>, %arg6: memref<1x128xf32, #tpu.memory_space<vmem>>, %arg7: memref<8x128xf32, #tpu.memory_space<vmem>>) attributes {dimension_semantics = [#tpu.dimension_semantics<parallel>], iteration_bounds = array<i64: 1>, scalar_prefetch = 0 : i64, scratch_operands = 0 : i64, tpu.core_type = #tpu.core_type<tc>, window_params = [{transform_indices = @transform_0, window_bounds = array<i64: 8, 16, 128>}, {pipeline_mode = #tpu.pipeline_mode<synchronous>, transform_indices = @transform_1, window_bounds = array<i64: 128, 128>}, {pipeline_mode = #tpu.pipeline_mode<synchronous>, transform_indices = @transform_2, window_bounds = array<i64: 6, 256, 256>}, {pipeline_mode = #tpu.pipeline_mode<synchronous>, transform_indices = @transform_3, window_bounds = array<i64: 6, 1, 128>}, {pipeline_mode = #tpu.pipeline_mode<synchronous>, transform_indices = @transform_4, window_bounds = array<i64: 128, 128>}, {pipeline_mode = #tpu.pipeline_mode<synchronous>, transform_indices = @transform_5, window_bounds = array<i64: 1, 128>}, {transform_indices = @transform_6, window_bounds = array<i64: 8, 128>}]} {
    %c0 = arith.constant 0 : index
    %c0_0 = arith.constant 0 : index
    %c0_1 = arith.constant 0 : index
    %0 = vector.load %arg1[%c0, %c0_0, %c0_1] : memref<8x16x128xbf16, #tpu.memory_space<vmem>>, vector<8x16x128xbf16>
    %1 = vector.shape_cast %0 : vector<8x16x128xbf16> to vector<128x128xbf16>
    %c0_2 = arith.constant 0 : index
    %c0_3 = arith.constant 0 : index
    %2 = vector.load %arg2[%c0_2, %c0_3] : memref<128x128xbf16, #tpu.memory_space<vmem>>, vector<128x128xbf16>
    %cst = arith.constant dense<0.000000e+00> : vector<128x128xf32>
    %3 = tpu.matmul %1, %2, %cst {dimension_numbers = #tpu.dot_dimension_numbers<[1], [0], [0], [1], [0, 0, 1, 1], [], []>} : vector<128x128xbf16>, vector<128x128xbf16>, vector<128x128xf32> -> vector<128x128xf32>
    %cst_4 = arith.constant 0.000000e+00 : f32
    %4 = vector.broadcast %cst_4 : f32 to vector<128x128xf32>
    %5 = arith.maximumf %3, %4 : vector<128x128xf32>
    %6 = tpu.iota {dimensions = array<i32: 1>} : vector<8x16x128xi32>
    %7 = vector.shape_cast %6 : vector<8x16x128xi32> to vector<128x128xi32>
    %c0_i32 = arith.constant 0 : i32
    %8 = vector.broadcast %c0_i32 : i32 to vector<128x128xi32>
    %9 = arith.cmpi eq, %7, %8 : vector<128x128xi32>
    %c15_i32 = arith.constant 15 : i32
    %10 = vector.broadcast %c15_i32 : i32 to vector<128x128xi32>
    %11 = arith.cmpi eq, %7, %10 : vector<128x128xi32>
    %12 = tpu.iota {dimensions = array<i32: 1>} : vector<128x128xi32>
    %c64_i32 = arith.constant 64 : i32
    %13 = vector.broadcast %c64_i32 : i32 to vector<128x128xi32>
    %14 = arith.cmpi slt, %12, %13 : vector<128x128xi32>
    %c1_i32 = arith.constant 1 : i32
    %15 = tpu.dynamic_rotate %5 by %c1_i32 dim 0 : vector<128x128xf32>, i32 -> vector<128x128xf32>
    %cst_5 = arith.constant 0.000000e+00 : f32
    %16 = vector.broadcast %cst_5 : f32 to vector<128x128xf32>
    %17 = arith.select %9, %16, %15 : vector<128x128xi1>, vector<128x128xf32>
    %c64_i32_6 = arith.constant 64 : i32
    %18 = tpu.dynamic_rotate %17 by %c64_i32_6 dim 1 : vector<128x128xf32>, i32 -> vector<128x128xf32>
    %19 = arith.select %14, %5, %18 : vector<128x128xi1>, vector<128x128xf32>
    %20 = arith.truncf %19 : vector<128x128xf32> to vector<128x128xbf16>
    %c0_7 = arith.constant 0 : index
    %c0_8 = arith.constant 0 : index
    %c0_9 = arith.constant 0 : index
    %21 = vector.load %arg3[%c0_7, %c0_8, %c0_9] : memref<6x256x256xbf16, #tpu.memory_space<vmem>>, vector<1x256x256xbf16>
    %22 = vector.shape_cast %21 : vector<1x256x256xbf16> to vector<256x256xbf16>
    %23 = vector.extract_strided_slice %22 {offsets = [0, 0], sizes = [128, 128], strides = [1, 1]} : vector<256x256xbf16> to vector<128x128xbf16>
    %cst_10 = arith.constant dense<0.000000e+00> : vector<128x128xf32>
    %24 = tpu.matmul %20, %23, %cst_10 {dimension_numbers = #tpu.dot_dimension_numbers<[1], [0], [0], [1], [0, 0, 1, 1], [], []>} : vector<128x128xbf16>, vector<128x128xbf16>, vector<128x128xf32> -> vector<128x128xf32>
    %c0_11 = arith.constant 0 : index
    %c0_12 = arith.constant 0 : index
    %c0_13 = arith.constant 0 : index
    %25 = vector.load %arg4[%c0_11, %c0_12, %c0_13] : memref<6x1x128xf32, #tpu.memory_space<vmem>>, vector<1x1x128xf32>
    %26 = vector.shape_cast %25 : vector<1x1x128xf32> to vector<1x128xf32>
    %c127_i32 = arith.constant 127 : i32
    %27 = tpu.dynamic_rotate %24 by %c127_i32 dim 0 : vector<128x128xf32>, i32 -> vector<128x128xf32>
    %cst_14 = arith.constant 0.000000e+00 : f32
    %28 = vector.broadcast %cst_14 : f32 to vector<128x128xf32>
    %29 = arith.select %11, %28, %27 : vector<128x128xi1>, vector<128x128xf32>
    %c64_i32_15 = arith.constant 64 : i32
    %30 = tpu.dynamic_rotate %29 by %c64_i32_15 dim 1 : vector<128x128xf32>, i32 -> vector<128x128xf32>
    %31 = arith.addf %24, %30 : vector<128x128xf32>
    %32 = vector.broadcast %26 : vector<1x128xf32> to vector<128x128xf32>
    %33 = arith.addf %31, %32 : vector<128x128xf32>
    %cst_16 = arith.constant 0.000000e+00 : f32
    %34 = vector.broadcast %cst_16 : f32 to vector<128x128xf32>
    %35 = arith.maximumf %33, %34 : vector<128x128xf32>
    %c1_i32_17 = arith.constant 1 : i32
    %36 = tpu.dynamic_rotate %35 by %c1_i32_17 dim 0 : vector<128x128xf32>, i32 -> vector<128x128xf32>
    %cst_18 = arith.constant 0.000000e+00 : f32
    %37 = vector.broadcast %cst_18 : f32 to vector<128x128xf32>
    %38 = arith.select %9, %37, %36 : vector<128x128xi1>, vector<128x128xf32>
    %c64_i32_19 = arith.constant 64 : i32
    %39 = tpu.dynamic_rotate %38 by %c64_i32_19 dim 1 : vector<128x128xf32>, i32 -> vector<128x128xf32>
    %40 = arith.select %14, %35, %39 : vector<128x128xi1>, vector<128x128xf32>
    %41 = arith.truncf %40 : vector<128x128xf32> to vector<128x128xbf16>
    %c1 = arith.constant 1 : index
    %c0_20 = arith.constant 0 : index
    %c0_21 = arith.constant 0 : index
    %42 = vector.load %arg3[%c1, %c0_20, %c0_21] : memref<6x256x256xbf16, #tpu.memory_space<vmem>>, vector<1x256x256xbf16>
    %43 = vector.shape_cast %42 : vector<1x256x256xbf16> to vector<256x256xbf16>
    %44 = vector.extract_strided_slice %43 {offsets = [0, 0], sizes = [128, 128], strides = [1, 1]} : vector<256x256xbf16> to vector<128x128xbf16>
    %cst_22 = arith.constant dense<0.000000e+00> : vector<128x128xf32>
    %45 = tpu.matmul %41, %44, %cst_22 {dimension_numbers = #tpu.dot_dimension_numbers<[1], [0], [0], [1], [0, 0, 1, 1], [], []>} : vector<128x128xbf16>, vector<128x128xbf16>, vector<128x128xf32> -> vector<128x128xf32>
    %c1_23 = arith.constant 1 : index
    %c0_24 = arith.constant 0 : index
    %c0_25 = arith.constant 0 : index
    %46 = vector.load %arg4[%c1_23, %c0_24, %c0_25] : memref<6x1x128xf32, #tpu.memory_space<vmem>>, vector<1x1x128xf32>
    %47 = vector.shape_cast %46 : vector<1x1x128xf32> to vector<1x128xf32>
    %c127_i32_26 = arith.constant 127 : i32
    %48 = tpu.dynamic_rotate %45 by %c127_i32_26 dim 0 : vector<128x128xf32>, i32 -> vector<128x128xf32>
    %cst_27 = arith.constant 0.000000e+00 : f32
    %49 = vector.broadcast %cst_27 : f32 to vector<128x128xf32>
    %50 = arith.select %11, %49, %48 : vector<128x128xi1>, vector<128x128xf32>
    %c64_i32_28 = arith.constant 64 : i32
    %51 = tpu.dynamic_rotate %50 by %c64_i32_28 dim 1 : vector<128x128xf32>, i32 -> vector<128x128xf32>
    %52 = arith.addf %45, %51 : vector<128x128xf32>
    %53 = vector.broadcast %47 : vector<1x128xf32> to vector<128x128xf32>
    %54 = arith.addf %52, %53 : vector<128x128xf32>
    %cst_29 = arith.constant 0.000000e+00 : f32
    %55 = vector.broadcast %cst_29 : f32 to vector<128x128xf32>
    %56 = arith.maximumf %54, %55 : vector<128x128xf32>
    %c1_i32_30 = arith.constant 1 : i32
    %57 = tpu.dynamic_rotate %56 by %c1_i32_30 dim 0 : vector<128x128xf32>, i32 -> vector<128x128xf32>
    %cst_31 = arith.constant 0.000000e+00 : f32
    %58 = vector.broadcast %cst_31 : f32 to vector<128x128xf32>
    %59 = arith.select %9, %58, %57 : vector<128x128xi1>, vector<128x128xf32>
    %c64_i32_32 = arith.constant 64 : i32
    %60 = tpu.dynamic_rotate %59 by %c64_i32_32 dim 1 : vector<128x128xf32>, i32 -> vector<128x128xf32>
    %61 = arith.select %14, %56, %60 : vector<128x128xi1>, vector<128x128xf32>
    %62 = arith.truncf %61 : vector<128x128xf32> to vector<128x128xbf16>
    %c2 = arith.constant 2 : index
    %c0_33 = arith.constant 0 : index
    %c0_34 = arith.constant 0 : index
    %63 = vector.load %arg3[%c2, %c0_33, %c0_34] : memref<6x256x256xbf16, #tpu.memory_space<vmem>>, vector<1x256x256xbf16>
    %64 = vector.shape_cast %63 : vector<1x256x256xbf16> to vector<256x256xbf16>
    %65 = vector.extract_strided_slice %64 {offsets = [0, 0], sizes = [128, 128], strides = [1, 1]} : vector<256x256xbf16> to vector<128x128xbf16>
    %cst_35 = arith.constant dense<0.000000e+00> : vector<128x128xf32>
    %66 = tpu.matmul %62, %65, %cst_35 {dimension_numbers = #tpu.dot_dimension_numbers<[1], [0], [0], [1], [0, 0, 1, 1], [], []>} : vector<128x128xbf16>, vector<128x128xbf16>, vector<128x128xf32> -> vector<128x128xf32>
    %c2_36 = arith.constant 2 : index
    %c0_37 = arith.constant 0 : index
    %c0_38 = arith.constant 0 : index
    %67 = vector.load %arg4[%c2_36, %c0_37, %c0_38] : memref<6x1x128xf32, #tpu.memory_space<vmem>>, vector<1x1x128xf32>
    %68 = vector.shape_cast %67 : vector<1x1x128xf32> to vector<1x128xf32>
    %c127_i32_39 = arith.constant 127 : i32
    %69 = tpu.dynamic_rotate %66 by %c127_i32_39 dim 0 : vector<128x128xf32>, i32 -> vector<128x128xf32>
    %cst_40 = arith.constant 0.000000e+00 : f32
    %70 = vector.broadcast %cst_40 : f32 to vector<128x128xf32>
    %71 = arith.select %11, %70, %69 : vector<128x128xi1>, vector<128x128xf32>
    %c64_i32_41 = arith.constant 64 : i32
    %72 = tpu.dynamic_rotate %71 by %c64_i32_41 dim 1 : vector<128x128xf32>, i32 -> vector<128x128xf32>
    %73 = arith.addf %66, %72 : vector<128x128xf32>
    %74 = vector.broadcast %68 : vector<1x128xf32> to vector<128x128xf32>
    %75 = arith.addf %73, %74 : vector<128x128xf32>
    %cst_42 = arith.constant 0.000000e+00 : f32
    %76 = vector.broadcast %cst_42 : f32 to vector<128x128xf32>
    %77 = arith.maximumf %75, %76 : vector<128x128xf32>
    %c1_i32_43 = arith.constant 1 : i32
    %78 = tpu.dynamic_rotate %77 by %c1_i32_43 dim 0 : vector<128x128xf32>, i32 -> vector<128x128xf32>
    %cst_44 = arith.constant 0.000000e+00 : f32
    %79 = vector.broadcast %cst_44 : f32 to vector<128x128xf32>
    %80 = arith.select %9, %79, %78 : vector<128x128xi1>, vector<128x128xf32>
    %c64_i32_45 = arith.constant 64 : i32
    %81 = tpu.dynamic_rotate %80 by %c64_i32_45 dim 1 : vector<128x128xf32>, i32 -> vector<128x128xf32>
    %82 = arith.select %14, %77, %81 : vector<128x128xi1>, vector<128x128xf32>
    %83 = arith.truncf %82 : vector<128x128xf32> to vector<128x128xbf16>
    %c3 = arith.constant 3 : index
    %c0_46 = arith.constant 0 : index
    %c0_47 = arith.constant 0 : index
    %84 = vector.load %arg3[%c3, %c0_46, %c0_47] : memref<6x256x256xbf16, #tpu.memory_space<vmem>>, vector<1x256x256xbf16>
    %85 = vector.shape_cast %84 : vector<1x256x256xbf16> to vector<256x256xbf16>
    %86 = vector.extract_strided_slice %85 {offsets = [0, 0], sizes = [128, 256], strides = [1, 1]} : vector<256x256xbf16> to vector<128x256xbf16>
    %cst_48 = arith.constant dense<0.000000e+00> : vector<128x256xf32>
    %87 = tpu.matmul %83, %86, %cst_48 {dimension_numbers = #tpu.dot_dimension_numbers<[1], [0], [0], [1], [0, 0, 1, 1], [], []>} : vector<128x128xbf16>, vector<128x256xbf16>, vector<128x256xf32> -> vector<128x256xf32>
    %c3_49 = arith.constant 3 : index
    %c0_50 = arith.constant 0 : index
    %c0_51 = arith.constant 0 : index
    %88 = vector.load %arg4[%c3_49, %c0_50, %c0_51] : memref<6x1x128xf32, #tpu.memory_space<vmem>>, vector<1x1x128xf32>
    %89 = vector.shape_cast %88 : vector<1x1x128xf32> to vector<1x128xf32>
    %90 = vector.extract_strided_slice %87 {offsets = [0, 128], sizes = [128, 128], strides = [1, 1]} : vector<128x256xf32> to vector<128x128xf32>
    %c127_i32_52 = arith.constant 127 : i32
    %91 = tpu.dynamic_rotate %90 by %c127_i32_52 dim 0 : vector<128x128xf32>, i32 -> vector<128x128xf32>
    %cst_53 = arith.constant 0.000000e+00 : f32
    %92 = vector.broadcast %cst_53 : f32 to vector<128x128xf32>
    %93 = arith.select %11, %92, %91 : vector<128x128xi1>, vector<128x128xf32>
    %94 = vector.extract_strided_slice %87 {offsets = [0, 0], sizes = [128, 128], strides = [1, 1]} : vector<128x256xf32> to vector<128x128xf32>
    %95 = arith.addf %94, %93 : vector<128x128xf32>
    %96 = vector.broadcast %89 : vector<1x128xf32> to vector<128x128xf32>
    %97 = arith.addf %95, %96 : vector<128x128xf32>
    %cst_54 = arith.constant 0.000000e+00 : f32
    %98 = vector.broadcast %cst_54 : f32 to vector<128x128xf32>
    %99 = arith.maximumf %97, %98 : vector<128x128xf32>
    %c1_i32_55 = arith.constant 1 : i32
    %100 = tpu.dynamic_rotate %99 by %c1_i32_55 dim 0 : vector<128x128xf32>, i32 -> vector<128x128xf32>
    %cst_56 = arith.constant 0.000000e+00 : f32
    %101 = vector.broadcast %cst_56 : f32 to vector<128x128xf32>
    %102 = arith.select %9, %101, %100 : vector<128x128xi1>, vector<128x128xf32>
    %103 = arith.truncf %99 : vector<128x128xf32> to vector<128x128xbf16>
    %104 = arith.truncf %102 : vector<128x128xf32> to vector<128x128xbf16>
    %105 = tpu.concatenate %103, %104 in 1 : vector<128x128xbf16>, vector<128x128xbf16> -> vector<128x256xbf16>
    %c4 = arith.constant 4 : index
    %c0_57 = arith.constant 0 : index
    %c0_58 = arith.constant 0 : index
    %106 = vector.load %arg3[%c4, %c0_57, %c0_58] : memref<6x256x256xbf16, #tpu.memory_space<vmem>>, vector<1x256x256xbf16>
    %107 = vector.shape_cast %106 : vector<1x256x256xbf16> to vector<256x256xbf16>
    %cst_59 = arith.constant dense<0.000000e+00> : vector<128x256xf32>
    %108 = tpu.matmul %105, %107, %cst_59 {dimension_numbers = #tpu.dot_dimension_numbers<[1], [0], [0], [1], [0, 0, 1, 1], [], []>} : vector<128x256xbf16>, vector<256x256xbf16>, vector<128x256xf32> -> vector<128x256xf32>
    %c4_60 = arith.constant 4 : index
    %c0_61 = arith.constant 0 : index
    %c0_62 = arith.constant 0 : index
    %109 = vector.load %arg4[%c4_60, %c0_61, %c0_62] : memref<6x1x128xf32, #tpu.memory_space<vmem>>, vector<1x1x128xf32>
    %110 = vector.shape_cast %109 : vector<1x1x128xf32> to vector<1x128xf32>
    %111 = vector.extract_strided_slice %108 {offsets = [0, 128], sizes = [128, 128], strides = [1, 1]} : vector<128x256xf32> to vector<128x128xf32>
    %c127_i32_63 = arith.constant 127 : i32
    %112 = tpu.dynamic_rotate %111 by %c127_i32_63 dim 0 : vector<128x128xf32>, i32 -> vector<128x128xf32>
    %cst_64 = arith.constant 0.000000e+00 : f32
    %113 = vector.broadcast %cst_64 : f32 to vector<128x128xf32>
    %114 = arith.select %11, %113, %112 : vector<128x128xi1>, vector<128x128xf32>
    %115 = vector.extract_strided_slice %108 {offsets = [0, 0], sizes = [128, 128], strides = [1, 1]} : vector<128x256xf32> to vector<128x128xf32>
    %116 = arith.addf %115, %114 : vector<128x128xf32>
    %117 = vector.broadcast %110 : vector<1x128xf32> to vector<128x128xf32>
    %118 = arith.addf %116, %117 : vector<128x128xf32>
    %cst_65 = arith.constant 0.000000e+00 : f32
    %119 = vector.broadcast %cst_65 : f32 to vector<128x128xf32>
    %120 = arith.maximumf %118, %119 : vector<128x128xf32>
    %c1_i32_66 = arith.constant 1 : i32
    %121 = tpu.dynamic_rotate %120 by %c1_i32_66 dim 0 : vector<128x128xf32>, i32 -> vector<128x128xf32>
    %cst_67 = arith.constant 0.000000e+00 : f32
    %122 = vector.broadcast %cst_67 : f32 to vector<128x128xf32>
    %123 = arith.select %9, %122, %121 : vector<128x128xi1>, vector<128x128xf32>
    %124 = arith.truncf %120 : vector<128x128xf32> to vector<128x128xbf16>
    %125 = arith.truncf %123 : vector<128x128xf32> to vector<128x128xbf16>
    %126 = tpu.concatenate %124, %125 in 1 : vector<128x128xbf16>, vector<128x128xbf16> -> vector<128x256xbf16>
    %c5 = arith.constant 5 : index
    %c0_68 = arith.constant 0 : index
    %c0_69 = arith.constant 0 : index
    %127 = vector.load %arg3[%c5, %c0_68, %c0_69] : memref<6x256x256xbf16, #tpu.memory_space<vmem>>, vector<1x256x256xbf16>
    %128 = vector.shape_cast %127 : vector<1x256x256xbf16> to vector<256x256xbf16>
    %cst_70 = arith.constant dense<0.000000e+00> : vector<128x256xf32>
    %129 = tpu.matmul %126, %128, %cst_70 {dimension_numbers = #tpu.dot_dimension_numbers<[1], [0], [0], [1], [0, 0, 1, 1], [], []>} : vector<128x256xbf16>, vector<256x256xbf16>, vector<128x256xf32> -> vector<128x256xf32>
    %c5_71 = arith.constant 5 : index
    %c0_72 = arith.constant 0 : index
    %c0_73 = arith.constant 0 : index
    %130 = vector.load %arg4[%c5_71, %c0_72, %c0_73] : memref<6x1x128xf32, #tpu.memory_space<vmem>>, vector<1x1x128xf32>
    %131 = vector.shape_cast %130 : vector<1x1x128xf32> to vector<1x128xf32>
    %132 = vector.extract_strided_slice %129 {offsets = [0, 128], sizes = [128, 128], strides = [1, 1]} : vector<128x256xf32> to vector<128x128xf32>
    %c127_i32_74 = arith.constant 127 : i32
    %133 = tpu.dynamic_rotate %132 by %c127_i32_74 dim 0 : vector<128x128xf32>, i32 -> vector<128x128xf32>
    %cst_75 = arith.constant 0.000000e+00 : f32
    %134 = vector.broadcast %cst_75 : f32 to vector<128x128xf32>
    %135 = arith.select %11, %134, %133 : vector<128x128xi1>, vector<128x128xf32>
    %136 = vector.extract_strided_slice %129 {offsets = [0, 0], sizes = [128, 128], strides = [1, 1]} : vector<128x256xf32> to vector<128x128xf32>
    %137 = arith.addf %136, %135 : vector<128x128xf32>
    %138 = vector.broadcast %131 : vector<1x128xf32> to vector<128x128xf32>
    %139 = arith.addf %137, %138 : vector<128x128xf32>
    %cst_76 = arith.constant 0.000000e+00 : f32
    %140 = vector.broadcast %cst_76 : f32 to vector<128x128xf32>
    %141 = arith.maximumf %139, %140 : vector<128x128xf32>
    %142 = vector.shape_cast %141 : vector<128x128xf32> to vector<8x16x128xf32>
    %cst_77 = arith.constant dense<0.000000e+00> : vector<8x128xf32>
    %143 = vector.multi_reduction <add>, %142, %cst_77 [1] : vector<8x16x128xf32> to vector<8x128xf32>
    %144 = arith.truncf %143 : vector<8x128xf32> to vector<8x128xbf16>
    %c0_78 = arith.constant 0 : index
    %c0_79 = arith.constant 0 : index
    %145 = vector.load %arg5[%c0_78, %c0_79] : memref<128x128xbf16, #tpu.memory_space<vmem>>, vector<128x128xbf16>
    %cst_80 = arith.constant dense<0.000000e+00> : vector<8x128xf32>
    %146 = tpu.matmul %144, %145, %cst_80 {dimension_numbers = #tpu.dot_dimension_numbers<[1], [0], [0], [1], [0, 0, 1, 1], [], []>} : vector<8x128xbf16>, vector<128x128xbf16>, vector<8x128xf32> -> vector<8x128xf32>
    %c0_81 = arith.constant 0 : index
    %c0_82 = arith.constant 0 : index
    %147 = vector.load %arg6[%c0_81, %c0_82] : memref<1x128xf32, #tpu.memory_space<vmem>>, vector<1x128xf32>
    %148 = vector.broadcast %147 : vector<1x128xf32> to vector<8x128xf32>
    %149 = arith.addf %146, %148 : vector<8x128xf32>
    %c0_83 = arith.constant 0 : index
    %c0_84 = arith.constant 0 : index
    %150 = vector.load %arg7[%c0_83, %c0_84] : memref<8x128xf32, #tpu.memory_space<vmem>>, vector<8x128xf32>
    tpu.vector_store %arg7[%c0_83, %c0_84], %149 {strides = array<i32>} : memref<8x128xf32, #tpu.memory_space<vmem>>, vector<8x128xf32>,
    return
  }
  func.func @transform_0(%arg0: i32) -> (i32, i32, i32) {
    %c0_i32 = arith.constant 0 : i32
    %c0_i32_0 = arith.constant 0 : i32
    %c0_i32_1 = arith.constant 0 : i32
    return %arg0, %c0_i32, %c0_i32_0 : i32, i32, i32
  }
  func.func @transform_1(%arg0: i32) -> (i32, i32) {
    %c0_i32 = arith.constant 0 : i32
    %c0_i32_0 = arith.constant 0 : i32
    %c0_i32_1 = arith.constant 0 : i32
    return %c0_i32, %c0_i32_0 : i32, i32
  }
  func.func @transform_2(%arg0: i32) -> (i32, i32, i32) {
    %c0_i32 = arith.constant 0 : i32
    %c0_i32_0 = arith.constant 0 : i32
    %c0_i32_1 = arith.constant 0 : i32
    %c0_i32_2 = arith.constant 0 : i32
    return %c0_i32, %c0_i32_0, %c0_i32_1 : i32, i32, i32
  }
  func.func @transform_3(%arg0: i32) -> (i32, i32, i32) {
    %c0_i32 = arith.constant 0 : i32
    %c0_i32_0 = arith.constant 0 : i32
    %c0_i32_1 = arith.constant 0 : i32
    %c0_i32_2 = arith.constant 0 : i32
    return %c0_i32, %c0_i32_0, %c0_i32_1 : i32, i32, i32
  }
  func.func @transform_4(%arg0: i32) -> (i32, i32) {
    %c0_i32 = arith.constant 0 : i32
    %c0_i32_0 = arith.constant 0 : i32
    %c0_i32_1 = arith.constant 0 : i32
    return %c0_i32, %c0_i32_0 : i32, i32
  }
  func.func @transform_5(%arg0: i32) -> (i32, i32) {
    %c0_i32 = arith.constant 0 : i32
    %c0_i32_0 = arith.constant 0 : i32
    %c0_i32_1 = arith.constant 0 : i32
    return %c0_i32, %c0_i32_0 : i32, i32
  }
  func.func @transform_6(%arg0: i32) -> (i32, i32) {
    %c0_i32 = arith.constant 0 : i32
    %c0_i32_0 = arith.constant 0 : i32
    return %arg0, %c0_i32 : i32, i32
  }
}

</mosaic_0001>

<llo_original>
// kernel: tpu_custom_call.1
$region0: #{tpu_custom_call.1}
  #allocation0 [shape = 'u32[]', space=smem, size = 0x4, offset = 0x4, fixed_abs, tag = 'smem constant byte address 0x4 - core index']
  #allocation1 [shape = 'u32[144,128]{1,0:T(1,128)}', space=vmem, size = 0x12000, scoped, tag = 'internal scratch']
  %s0 = inlined_call_operand.hbm [shape: bf16[8,16,128], index: 0, kind: input, shape index: {}]
  %s1 = inlined_call_operand.hbm [shape: bf16[128,128], index: 1, kind: input, shape index: {}]
  %s2 = inlined_call_operand.hbm [shape: bf16[6,256,256], index: 2, kind: input, shape index: {}]
  %s3 = inlined_call_operand.vmem [shape: f32[6,1,128], index: 3, kind: input, shape index: {}]
  %s4 = inlined_call_operand.hbm [shape: bf16[128,128], index: 4, kind: input, shape index: {}]
  %s5 = inlined_call_operand.vmem [shape: f32[1,128], index: 5, kind: input, shape index: {}]
  %s6 = inlined_call_operand.hbm [shape: f32[8,128], index: 6, kind: output, shape index: {}]
  %s7 = sld [smem:[#allocation0]]
  $region50: #{tpu_custom_call.1} parent=0
    _
  %s9 = ssub.s32 1, %s7
  %s10 = scalar_select 0, %s9, %s7
  $region1: #{tpu_custom_call.1} parent=0
    #allocation2 [shape = 'u8[32768]{0}', space=vmem, size = 0x8000, scoped, tag = 'input window, operand 0, single buffered']
    #allocation3 [shape = 's32[1]{0}', space=sflag, size = 0x4, scoped, tag = 'scoped memory for tpu_custom_call.1']
    #allocation4 [shape = 's32[1]{0}', space=sflag, size = 0x4, scoped, tag = 'scoped memory for tpu_custom_call.1']
    #allocation5 [shape = 'u8[32768]{0}', space=vmem, size = 0x8000, scoped, tag = 'input window, operand 1, single buffered']
    #allocation6 [shape = 's32[1]{0}', space=sflag, size = 0x4, scoped, tag = 'scoped memory for tpu_custom_call.1']
    #allocation7 [shape = 'u8[786432]{0}', space=vmem, size = 0xc0000, scoped, tag = 'input window, operand 2, single buffered']
    #allocation8 [shape = 'u8[32768]{0}', space=vmem, size = 0x8000, scoped, tag = 'input window, operand 4, single buffered']
    #allocation9 [shape = 's32[1]{0}', space=sflag, size = 0x4, scoped, tag = 'scoped memory for tpu_custom_call.1']
    #allocation10 [shape = 'u8[4096]{0}', space=vmem, size = 0x1000, scoped, tag = 'output window, operand 0, single buffered']
    %11 = vsyncpa [#allocation3], 0
    %12 = vsyncpa [#allocation6], 0
    %13 = vsyncpa [#allocation9], 0
    %14 = vsyncpa [#allocation4], 0
    // Predicated region
    $region2: #{tpu_custom_call.1} parent=1 // pred_check
      _
    $region3: #{tpu_custom_call.1} parent=1 // pred_check_branch
      %16 = sbr.rel (0) target = $region5
    $region4: #{tpu_custom_call.1} parent=1 // pred_region
      %s18 = ssub.s32 1024, 1024
      %19 = vsyncadd [#allocation3], %s18
      %s20 = sshll.u32 [#allocation2], 4
      %s21 = int_to_ptr.vmem [resolvable:$true] %s20
      %26 = dma.hbm_to_vmem [thread:$0]  %s0, 1024, %s21, [#allocation3], 64, 64, 4
    $region5: #{tpu_custom_call.1} parent=1 // pred_fallthru
      _
    // Predicated region
    $region6: #{tpu_custom_call.1} parent=1 // pred_check
      _
    $region7: #{tpu_custom_call.1} parent=1 // pred_check_branch
      %28 = sbr.rel (0) target = $region9
    $region8: #{tpu_custom_call.1} parent=1 // pred_region
      %s30 = ssub.s32 1024, 1024
      %31 = vsyncadd [#allocation6], %s30
      %s32 = sshll.u32 [#allocation5], 4
      %s33 = int_to_ptr.vmem [resolvable:$true] %s32
      %38 = dma.hbm_to_vmem [thread:$0]  %s1, 1024, %s33, [#allocation6], 64, 64, 4
    $region9: #{tpu_custom_call.1} parent=1 // pred_fallthru
      _
    // Predicated region
    $region10: #{tpu_custom_call.1} parent=1 // pred_check
      _
    $region11: #{tpu_custom_call.1} parent=1 // pred_check_branch
      %40 = sbr.rel (0) target = $region13
    $region12: #{tpu_custom_call.1} parent=1 // pred_region
      %s42 = ssub.s32 24576, 24576
      %43 = vsyncadd [#allocation6], %s42
      %s44 = sshll.u32 [#allocation7], 4
      %s45 = int_to_ptr.vmem [resolvable:$true] %s44
      %50 = dma.hbm_to_vmem [thread:$0]  %s2, 24576, %s45, [#allocation6], 128, 128, 8
    $region13: #{tpu_custom_call.1} parent=1 // pred_fallthru
      _
    // Predicated region
    $region14: #{tpu_custom_call.1} parent=1 // pred_check
      _
    $region15: #{tpu_custom_call.1} parent=1 // pred_check_branch
      %52 = sbr.rel (0) target = $region17
    $region16: #{tpu_custom_call.1} parent=1 // pred_region
      _
    $region17: #{tpu_custom_call.1} parent=1 // pred_fallthru
      _
    // Predicated region
    $region18: #{tpu_custom_call.1} parent=1 // pred_check
      _
    $region19: #{tpu_custom_call.1} parent=1 // pred_check_branch
      %54 = sbr.rel (0) target = $region21
    $region20: #{tpu_custom_call.1} parent=1 // pred_region
      %s56 = ssub.s32 1024, 1024
      %57 = vsyncadd [#allocation9], %s56
      %s58 = sshll.u32 [#allocation8], 4
      %s59 = int_to_ptr.vmem [resolvable:$true] %s58
      %64 = dma.hbm_to_vmem [thread:$0]  %s4, 1024, %s59, [#allocation9], 64, 64, 4
    $region21: #{tpu_custom_call.1} parent=1 // pred_fallthru
      _
    // Predicated region
    $region22: #{tpu_custom_call.1} parent=1 // pred_check
      _
    $region23: #{tpu_custom_call.1} parent=1 // pred_check_branch
      %66 = sbr.rel (0) target = $region25
    $region24: #{tpu_custom_call.1} parent=1 // pred_region
      _
    $region25: #{tpu_custom_call.1} parent=1 // pred_fallthru
      _
    // Predicated region
    $region26: #{tpu_custom_call.1} parent=1 // pred_check
      _
    $region27: #{tpu_custom_call.1} parent=1 // pred_check_branch
      %68 = sbr.rel (0) target = $region29
    $region28: #{tpu_custom_call.1} parent=1 // pred_region
      %69 = dma.done [#allocation3], 1024
    $region29: #{tpu_custom_call.1} parent=1 // pred_fallthru
      _
    // Predicated region
    $region30: #{tpu_custom_call.1} parent=1 // pred_check
      _
    $region31: #{tpu_custom_call.1} parent=1 // pred_check_branch
      %71 = sbr.rel (0) target = $region33
    $region32: #{tpu_custom_call.1} parent=1 // pred_region
      %72 = dma.done [#allocation6], 1024
    $region33: #{tpu_custom_call.1} parent=1 // pred_fallthru
      _
    // Predicated region
    $region34: #{tpu_custom_call.1} parent=1 // pred_check
      _
    $region35: #{tpu_custom_call.1} parent=1 // pred_check_branch
      %74 = sbr.rel (0) target = $region37
    $region36: #{tpu_custom_call.1} parent=1 // pred_region
      %75 = dma.done [#allocation6], 24576
    $region37: #{tpu_custom_call.1} parent=1 // pred_fallthru
      _
    // Predicated region
    $region38: #{tpu_custom_call.1} parent=1 // pred_check
      _
    $region39: #{tpu_custom_call.1} parent=1 // pred_check_branch
      %77 = sbr.rel (0) target = $region41
    $region40: #{tpu_custom_call.1} parent=1 // pred_region
      %78 = dma.done [#allocation9], 1024
    $region41: #{tpu_custom_call.1} parent=1 // pred_fallthru
      _
    %v80 = vld [vmem:[#allocation2] sm:$0xf]
    %v81 = vld [vmem:[#allocation2 + $0x4] sm:$0xf]
    %v82 = vld [vmem:[#allocation2 + $0x8] sm:$0xf]
    %v83 = vld [vmem:[#allocation2 + $0xc] sm:$0xf]
    %v84 = vld [vmem:[#allocation2 + $0x10] sm:$0xf]
    %v85 = vld [vmem:[#allocation2 + $0x14] sm:$0xf]
    %v86 = vld [vmem:[#allocation2 + $0x18] sm:$0xf]
    %v87 = vld [vmem:[#allocation2 + $0x1c] sm:$0xf]
    %v88 = vld [vmem:[#allocation2 + $0x20] sm:$0xf]
    %v89 = vld [vmem:[#allocation2 + $0x24] sm:$0xf]
    %v90 = vld [vmem:[#allocation2 + $0x28] sm:$0xf]
    %v91 = vld [vmem:[#allocation2 + $0x2c] sm:$0xf]
    %v92 = vld [vmem:[#allocation2 + $0x30] sm:$0xf]
    %v93 = vld [vmem:[#allocation2 + $0x34] sm:$0xf]
    %v94 = vld [vmem:[#allocation2 + $0x38] sm:$0xf]
    %v95 = vld [vmem:[#allocation2 + $0x3c] sm:$0xf]
    %v96 = vld [vmem:[#allocation5] sm:$0xf]
    %v97 = vld [vmem:[#allocation5 + $0x4] sm:$0xf]
    %v98 = vld [vmem:[#allocation5 + $0x8] sm:$0xf]
    %v99 = vld [vmem:[#allocation5 + $0xc] sm:$0xf]
    %v100 = vld [vmem:[#allocation5 + $0x10] sm:$0xf]
    %v101 = vld [vmem:[#allocation5 + $0x14] sm:$0xf]
    %v102 = vld [vmem:[#allocation5 + $0x18] sm:$0xf]
    %v103 = vld [vmem:[#allocation5 + $0x1c] sm:$0xf]
    %v104 = vld [vmem:[#allocation5 + $0x20] sm:$0xf]
    %v105 = vld [vmem:[#allocation5 + $0x24] sm:$0xf]
    %v106 = vld [vmem:[#allocation5 + $0x28] sm:$0xf]
    %v107 = vld [vmem:[#allocation5 + $0x2c] sm:$0xf]
    %v108 = vld [vmem:[#allocation5 + $0x30] sm:$0xf]
    %v109 = vld [vmem:[#allocation5 + $0x34] sm:$0xf]
    %v110 = vld [vmem:[#allocation5 + $0x38] sm:$0xf]
    %v111 = vld [vmem:[#allocation5 + $0x3c] sm:$0xf]
    %v128 = vunpack.c.l.b16 %v80
    %v129 = vunpack.c.l.b16 %v81
    %v130 = vunpack.c.l.b16 %v82
    %v131 = vunpack.c.l.b16 %v83
    %v132 = vunpack.c.l.b16 %v84
    %v133 = vunpack.c.l.b16 %v85
    %v134 = vunpack.c.l.b16 %v86
    %v135 = vunpack.c.l.b16 %v87
    %v136 = vunpack.c.l.b16 %v88
    %v137 = vunpack.c.l.b16 %v89
    %v138 = vunpack.c.l.b16 %v90
    %v139 = vunpack.c.l.b16 %v91
    %v140 = vunpack.c.l.b16 %v92
    %v141 = vunpack.c.l.b16 %v93
    %v142 = vunpack.c.l.b16 %v94
    %v143 = vunpack.c.l.b16 %v95
    %v144 = vpack.c.b16 %v129, %v128
    %v145 = vpack.c.b16 %v131, %v130
    %v146 = vpack.c.b16 %v133, %v132
    %v147 = vpack.c.b16 %v135, %v134
    %v148 = vpack.c.b16 %v137, %v136
    %v149 = vpack.c.b16 %v139, %v138
    %v150 = vpack.c.b16 %v141, %v140
    %v151 = vpack.c.b16 %v143, %v142
    %v176 = vunpack.c.l.b16 %v96
    %v177 = vunpack.c.l.b16 %v97
    %v178 = vunpack.c.l.b16 %v98
    %v179 = vunpack.c.l.b16 %v99
    %v180 = vunpack.c.l.b16 %v100
    %v181 = vunpack.c.l.b16 %v101
    %v182 = vunpack.c.l.b16 %v102
    %v183 = vunpack.c.l.b16 %v103
    %v184 = vunpack.c.l.b16 %v104
    %v185 = vunpack.c.l.b16 %v105
    %v186 = vunpack.c.l.b16 %v106
    %v187 = vunpack.c.l.b16 %v107
    %v188 = vunpack.c.l.b16 %v108
    %v189 = vunpack.c.l.b16 %v109
    %v190 = vunpack.c.l.b16 %v110
    %v191 = vunpack.c.l.b16 %v111
    %v192 = vpack.c.b16 %v177, %v176
    %v193 = vpack.c.b16 %v179, %v178
    %v194 = vpack.c.b16 %v181, %v180
    %v195 = vpack.c.b16 %v183, %v182
    %v196 = vpack.c.b16 %v185, %v184
    %v197 = vpack.c.b16 %v187, %v186
    %v198 = vpack.c.b16 %v189, %v188
    %v199 = vpack.c.b16 %v191, %v190
    %208 = vmatprep.subr.bf16.mxu0 0
    %209 = vmatpush1.bf16.msra.mxu0 %v192
    %210 = vmatprep.subr.bf16.mxu0 0
    %211 = vmatpush1.bf16.msra.mxu0 %v193
    %212 = vmatprep.subr.bf16.mxu0 0
    %213 = vmatpush1.bf16.msra.mxu0 %v194
    %214 = vmatprep.subr.bf16.mxu0 0
    %215 = vmatpush1.bf16.msra.mxu0 %v195
    %216 = vmatprep.subr.bf16.mxu0 0
    %217 = vmatpush1.bf16.msra.mxu0 %v196
    %218 = vmatprep.subr.bf16.mxu0 0
    %219 = vmatpush1.bf16.msra.mxu0 %v197
    %220 = vmatprep.subr.bf16.mxu0 0
    %221 = vmatpush1.bf16.msra.mxu0 %v198
    %222 = vmatprep.subr.bf16.mxu0 0
    %223 = vmatpush1.bf16.msra.mxu0 %v199
    %224 = vmatprep.subr.bf16.mxu0 0
    %225 = vmatpush1.bf16.msra.mxu0 0
    %226 = vmatprep.subr.bf16.mxu0 0
    %227 = vmatpush1.bf16.msra.mxu0 0
    %228 = vmatprep.subr.bf16.mxu0 0
    %229 = vmatpush1.bf16.msra.mxu0 0
    %230 = vmatprep.subr.bf16.mxu0 0
    %231 = vmatpush1.bf16.msra.mxu0 0
    %232 = vmatprep.subr.bf16.mxu0 0
    %233 = vmatpush1.bf16.msra.mxu0 0
    %234 = vmatprep.subr.bf16.mxu0 0
    %235 = vmatpush1.bf16.msra.mxu0 0
    %236 = vmatprep.subr.bf16.mxu0 0
    %237 = vmatpush1.bf16.msra.mxu0 0
    %238 = vmatprep.subr.bf16.mxu0 0
    %239 = vmatpush1.bf16.msra.mxu0 0
    %240 = vmatprep.mubr.bf16.mxu0 0
    %241 = vmatmul.mubr.bf16.gmra.mrb[0].mxu0 %v144
    %v242 = vpop.f32.mrb[0].mxu0
    %v243 = vadd.f32 0.0, %v242
    %v244 = vpop.f32.mrb[0].mxu0
    %v245 = vpop.f32.mrb[0].mxu0
    %v246 = vadd.f32 0.0, %v245
    %v247 = vpop.f32.mrb[0].mxu0
    %248 = vmatprep.mubr.bf16.mxu0 0
    %249 = vmatmul.mubr.bf16.gmra.mrb[0].mxu0 %v145
    %v250 = vpop.f32.mrb[0].mxu0
    %v251 = vadd.f32 0.0, %v250
    %v252 = vpop.f32.mrb[0].mxu0
    %v253 = vpop.f32.mrb[0].mxu0
    %v254 = vadd.f32 0.0, %v253
    %v255 = vpop.f32.mrb[0].mxu0
    %256 = vmatprep.mubr.bf16.mxu0 0
    %257 = vmatmul.mubr.bf16.gmra.mrb[0].mxu0 %v146
    %v258 = vpop.f32.mrb[0].mxu0
    %v259 = vadd.f32 0.0, %v258
    %v260 = vpop.f32.mrb[0].mxu0
    %v261 = vpop.f32.mrb[0].mxu0
    %v262 = vadd.f32 0.0, %v261
    %v263 = vpop.f32.mrb[0].mxu0
    %264 = vmatprep.mubr.bf16.mxu0 0
    %265 = vmatmul.mubr.bf16.gmra.mrb[0].mxu0 %v147
    %v266 = vpop.f32.mrb[0].mxu0
    %v267 = vadd.f32 0.0, %v266
    %v268 = vpop.f32.mrb[0].mxu0
    %v269 = vpop.f32.mrb[0].mxu0
    %v270 = vadd.f32 0.0, %v269
    %v271 = vpop.f32.mrb[0].mxu0
    %272 = vmatprep.mubr.bf16.mxu0 0
    %273 = vmatmul.mubr.bf16.gmra.mrb[0].mxu0 %v148
    %v274 = vpop.f32.mrb[0].mxu0
    %v275 = vadd.f32 0.0, %v274
    %v276 = vpop.f32.mrb[0].mxu0
    %v277 = vpop.f32.mrb[0].mxu0
    %v278 = vadd.f32 0.0, %v277
    %v279 = vpop.f32.mrb[0].mxu0
    %280 = vmatprep.mubr.bf16.mxu0 0
    %281 = vmatmul.mubr.bf16.gmra.mrb[0].mxu0 %v149
    %v282 = vpop.f32.mrb[0].mxu0
    %v283 = vadd.f32 0.0, %v282
    %v284 = vpop.f32.mrb[0].mxu0
    %v285 = vpop.f32.mrb[0].mxu0
    %v286 = vadd.f32 0.0, %v285
    %v287 = vpop.f32.mrb[0].mxu0
    %288 = vmatprep.mubr.bf16.mxu0 0
    %289 = vmatmul.mubr.bf16.gmra.mrb[0].mxu0 %v150
    %v290 = vpop.f32.mrb[0].mxu0
    %v291 = vadd.f32 0.0, %v290
    %v292 = vpop.f32.mrb[0].mxu0
    %v293 = vpop.f32.mrb[0].mxu0
    %v294 = vadd.f32 0.0, %v293
    %v295 = vpop.f32.mrb[0].mxu0
    %296 = vmatprep.mubr.bf16.mxu0 0
    %297 = vmatmul.mubr.bf16.gmra.mrb[0].mxu0 %v151
    %v298 = vpop.f32.mrb[0].mxu0
    %v299 = vadd.f32 0.0, %v298
    %v300 = vpop.f32.mrb[0].mxu0
    %v301 = vpop.f32.mrb[0].mxu0
    %v302 = vadd.f32 0.0, %v301
    %v303 = vpop.f32.mrb[0].mxu0
    %304 = vdwg.mxu0
    %v305 = vmax.f32 %v243, 0.0
    %v306 = vmax.f32 %v246, 0.0
    %v307 = vmax.f32 %v251, 0.0
    %v308 = vmax.f32 %v254, 0.0
    %v309 = vmax.f32 %v259, 0.0
    %v310 = vmax.f32 %v262, 0.0
    %v311 = vmax.f32 %v267, 0.0
    %v312 = vmax.f32 %v270, 0.0
    %v313 = vmax.f32 %v275, 0.0
    %v314 = vmax.f32 %v278, 0.0
    %v315 = vmax.f32 %v283, 0.0
    %v316 = vmax.f32 %v286, 0.0
    %v317 = vmax.f32 %v291, 0.0
    %v318 = vmax.f32 %v294, 0.0
    %v319 = vmax.f32 %v299, 0.0
    %v320 = vmax.f32 %v302, 0.0
    %v321 = vlaneseq
    %v322 = vshrl.u32 %v321, 7
    %v323 = vadd.s32 %v322, 8
    %vm324 = vcmp.eq.s32.totalorder %v322, 0
    %vm325 = vcmp.eq.s32.totalorder %v323, 0
    %vm326 = vcmp.eq.s32.totalorder %v322, 15
    %vm327 = vcmp.eq.s32.totalorder %v323, 15
    %v328 = vlaneseq
    %v329 = vand.u32 %v328, 127
    %vm330 = vcmp.lt.s32.totalorder %v329, 64
    %v331 = vrot.slane %v305, 7
    %v332 = vrot.slane %v306, 7
    %v333 = vrot.slane %v307, 7
    %v334 = vrot.slane %v308, 7
    %v335 = vrot.slane %v309, 7
    %v336 = vrot.slane %v310, 7
    %v337 = vrot.slane %v311, 7
    %v338 = vrot.slane %v312, 7
    %v339 = vrot.slane %v313, 7
    %v340 = vrot.slane %v314, 7
    %v341 = vrot.slane %v315, 7
    %v342 = vrot.slane %v316, 7
    %v343 = vrot.slane %v317, 7
    %v344 = vrot.slane %v318, 7
    %v345 = vrot.slane %v319, 7
    %v346 = vrot.slane %v320, 7
    %vm347 = vcmp.lt.s32.totalorder %v322, 1
    %v348 = vsel %vm347, %v345, %v346
    %v349 = vsel %vm347, %v344, %v345
    %v350 = vsel %vm347, %v343, %v344
    %v351 = vsel %vm347, %v342, %v343
    %v352 = vsel %vm347, %v341, %v342
    %v353 = vsel %vm347, %v340, %v341
    %v354 = vsel %vm347, %v339, %v340
    %v355 = vsel %vm347, %v338, %v339
    %v356 = vsel %vm347, %v337, %v338
    %v357 = vsel %vm347, %v336, %v337
    %v358 = vsel %vm347, %v335, %v336
    %v359 = vsel %vm347, %v334, %v335
    %v360 = vsel %vm347, %v333, %v334
    %v361 = vsel %vm347, %v332, %v333
    %v362 = vsel %vm347, %v331, %v332
    %v363 = vsel %vm347, %v346, %v331
    %v364 = vsel %vm324, 0.0, %v363
    %v365 = vsel %vm325, 0.0, %v362
    %v366 = vsel %vm324, 0.0, %v361
    %v367 = vsel %vm325, 0.0, %v360
    %v368 = vsel %vm324, 0.0, %v359
    %v369 = vsel %vm325, 0.0, %v358
    %v370 = vsel %vm324, 0.0, %v357
    %v371 = vsel %vm325, 0.0, %v356
    %v372 = vsel %vm324, 0.0, %v355
    %v373 = vsel %vm325, 0.0, %v354
    %v374 = vsel %vm324, 0.0, %v353
    %v375 = vsel %vm325, 0.0, %v352
    %v376 = vsel %vm324, 0.0, %v351
    %v377 = vsel %vm325, 0.0, %v350
    %v378 = vsel %vm324, 0.0, %v349
    %v379 = vsel %vm325, 0.0, %v348
    %380 = vrot.lane.b32.xlu0 %v364, 64
    %v381 = vpop.permute.xlu0 %380
    %382 = vrot.lane.b32.xlu0 %v365, 64
    %v383 = vpop.permute.xlu0 %382
    %384 = vrot.lane.b32.xlu0 %v366, 64
    %v385 = vpop.permute.xlu0 %384
    %386 = vrot.lane.b32.xlu0 %v367, 64
    %v387 = vpop.permute.xlu0 %386
    %388 = vrot.lane.b32.xlu0 %v368, 64
    %v389 = vpop.permute.xlu0 %388
    %390 = vrot.lane.b32.xlu0 %v369, 64
    %v391 = vpop.permute.xlu0 %390
    %392 = vrot.lane.b32.xlu0 %v370, 64
    %v393 = vpop.permute.xlu0 %392
    %394 = vrot.lane.b32.xlu0 %v371, 64
    %v395 = vpop.permute.xlu0 %394
    %396 = vrot.lane.b32.xlu0 %v372, 64
    %v397 = vpop.permute.xlu0 %396
    %398 = vrot.lane.b32.xlu0 %v373, 64
    %v399 = vpop.permute.xlu0 %398
    %400 = vrot.lane.b32.xlu0 %v374, 64
    %v401 = vpop.permute.xlu0 %400
    %402 = vrot.lane.b32.xlu0 %v375, 64
    %v403 = vpop.permute.xlu0 %402
    %404 = vrot.lane.b32.xlu0 %v376, 64
    %v405 = vpop.permute.xlu0 %404
    %406 = vrot.lane.b32.xlu0 %v377, 64
    %v407 = vpop.permute.xlu0 %406
    %408 = vrot.lane.b32.xlu0 %v378, 64
    %v409 = vpop.permute.xlu0 %408
    %410 = vrot.lane.b32.xlu0 %v379, 64
    %v411 = vpop.permute.xlu0 %410
    %v412 = vsel %vm330, %v305, %v381
    %v413 = vsel %vm330, %v306, %v383
    %v414 = vsel %vm330, %v307, %v385
    %v415 = vsel %vm330, %v308, %v387
    %v416 = vsel %vm330, %v309, %v389
    %v417 = vsel %vm330, %v310, %v391
    %v418 = vsel %vm330, %v311, %v393
    %v419 = vsel %vm330, %v312, %v395
    %v420 = vsel %vm330, %v313, %v397
    %v421 = vsel %vm330, %v314, %v399
    %v422 = vsel %vm330, %v315, %v401
    %v423 = vsel %vm330, %v316, %v403
    %v424 = vsel %vm330, %v317, %v405
    %v425 = vsel %vm330, %v318, %v407
    %v426 = vsel %vm330, %v319, %v409
    %v427 = vsel %vm330, %v320, %v411
    %v428 = vpack.c.bf16 %v413, %v412
    %v429 = vpack.c.bf16 %v415, %v414
    %v430 = vpack.c.bf16 %v417, %v416
    %v431 = vpack.c.bf16 %v419, %v418
    %v432 = vpack.c.bf16 %v421, %v420
    %v433 = vpack.c.bf16 %v423, %v422
    %v434 = vpack.c.bf16 %v425, %v424
    %v435 = vpack.c.bf16 %v427, %v426
    %v436 = vld [vmem:[#allocation7] sm:$0xff]
    %v437 = vld [vmem:[#allocation7 + $0x8] sm:$0xff]
    %v438 = vld [vmem:[#allocation7 + $0x10] sm:$0xff]
    %v439 = vld [vmem:[#allocation7 + $0x18] sm:$0xff]
    %v440 = vld [vmem:[#allocation7 + $0x20] sm:$0xff]
    %v441 = vld [vmem:[#allocation7 + $0x28] sm:$0xff]
    %v442 = vld [vmem:[#allocation7 + $0x30] sm:$0xff]
    %v443 = vld [vmem:[#allocation7 + $0x38] sm:$0xff]
    %v444 = vld [vmem:[#allocation7 + $0x40] sm:$0xff]
    %v445 = vld [vmem:[#allocation7 + $0x48] sm:$0xff]
    %v446 = vld [vmem:[#allocation7 + $0x50] sm:$0xff]
    %v447 = vld [vmem:[#allocation7 + $0x58] sm:$0xff]
    %v448 = vld [vmem:[#allocation7 + $0x60] sm:$0xff]
    %v449 = vld [vmem:[#allocation7 + $0x68] sm:$0xff]
    %v450 = vld [vmem:[#allocation7 + $0x70] sm:$0xff]
    %v451 = vld [vmem:[#allocation7 + $0x78] sm:$0xff]
    %v468 = vunpack.c.l.b16 %v436
    %v469 = vunpack.c.l.b16 %v437
    %v470 = vunpack.c.l.b16 %v438
    %v471 = vunpack.c.l.b16 %v439
    %v472 = vunpack.c.l.b16 %v440
    %v473 = vunpack.c.l.b16 %v441
    %v474 = vunpack.c.l.b16 %v442
    %v475 = vunpack.c.l.b16 %v443
    %v476 = vunpack.c.l.b16 %v444
    %v477 = vunpack.c.l.b16 %v445
    %v478 = vunpack.c.l.b16 %v446
    %v479 = vunpack.c.l.b16 %v447
    %v480 = vunpack.c.l.b16 %v448
    %v481 = vunpack.c.l.b16 %v449
    %v482 = vunpack.c.l.b16 %v450
    %v483 = vunpack.c.l.b16 %v451
    %v484 = vpack.c.b16 %v469, %v468
    %v485 = vpack.c.b16 %v471, %v470
    %v486 = vpack.c.b16 %v473, %v472
    %v487 = vpack.c.b16 %v475, %v474
    %v488 = vpack.c.b16 %v477, %v476
    %v489 = vpack.c.b16 %v479, %v478
    %v490 = vpack.c.b16 %v481, %v480
    %v491 = vpack.c.b16 %v483, %v482
    %500 = vmatprep.subr.bf16.mxu0 0
    %501 = vmatpush1.bf16.msra.mxu0 %v484
    %502 = vmatprep.subr.bf16.mxu0 0
    %503 = vmatpush1.bf16.msra.mxu0 %v485
    %504 = vmatprep.subr.bf16.mxu0 0
    %505 = vmatpush1.bf16.msra.mxu0 %v486
    %506 = vmatprep.subr.bf16.mxu0 0
    %507 = vmatpush1.bf16.msra.mxu0 %v487
    %508 = vmatprep.subr.bf16.mxu0 0
    %509 = vmatpush1.bf16.msra.mxu0 %v488
    %510 = vmatprep.subr.bf16.mxu0 0
    %511 = vmatpush1.bf16.msra.mxu0 %v489
    %512 = vmatprep.subr.bf16.mxu0 0
    %513 = vmatpush1.bf16.msra.mxu0 %v490
    %514 = vmatprep.subr.bf16.mxu0 0
    %515 = vmatpush1.bf16.msra.mxu0 %v491
    %516 = vmatprep.subr.bf16.mxu0 0
    %517 = vmatpush1.bf16.msra.mxu0 0
    %518 = vmatprep.subr.bf16.mxu0 0
    %519 = vmatpush1.bf16.msra.mxu0 0
    %520 = vmatprep.subr.bf16.mxu0 0
    %521 = vmatpush1.bf16.msra.mxu0 0
    %522 = vmatprep.subr.bf16.mxu0 0
    %523 = vmatpush1.bf16.msra.mxu0 0
    %524 = vmatprep.subr.bf16.mxu0 0
    %525 = vmatpush1.bf16.msra.mxu0 0
    %526 = vmatprep.subr.bf16.mxu0 0
    %527 = vmatpush1.bf16.msra.mxu0 0
    %528 = vmatprep.subr.bf16.mxu0 0
    %529 = vmatpush1.bf16.msra.mxu0 0
    %530 = vmatprep.subr.bf16.mxu0 0
    %531 = vmatpush1.bf16.msra.mxu0 0
    %532 = vmatprep.mubr.bf16.mxu0 0
    %533 = vmatmul.mubr.bf16.gmra.mrb[0].mxu0 %v428
    %v534 = vpop.f32.mrb[0].mxu0
    %v535 = vadd.f32 0.0, %v534
    %v536 = vpop.f32.mrb[0].mxu0
    %v537 = vpop.f32.mrb[0].mxu0
    %v538 = vadd.f32 0.0, %v537
    %v539 = vpop.f32.mrb[0].mxu0
    %540 = vmatprep.mubr.bf16.mxu0 0
    %541 = vmatmul.mubr.bf16.gmra.mrb[0].mxu0 %v429
    %v542 = vpop.f32.mrb[0].mxu0
    %v543 = vadd.f32 0.0, %v542
    %v544 = vpop.f32.mrb[0].mxu0
    %v545 = vpop.f32.mrb[0].mxu0
    %v546 = vadd.f32 0.0, %v545
    %v547 = vpop.f32.mrb[0].mxu0
    %548 = vmatprep.mubr.bf16.mxu0 0
    %549 = vmatmul.mubr.bf16.gmra.mrb[0].mxu0 %v430
    %v550 = vpop.f32.mrb[0].mxu0
    %v551 = vadd.f32 0.0, %v550
    %v552 = vpop.f32.mrb[0].mxu0
    %v553 = vpop.f32.mrb[0].mxu0
    %v554 = vadd.f32 0.0, %v553
    %v555 = vpop.f32.mrb[0].mxu0
    %556 = vmatprep.mubr.bf16.mxu0 0
    %557 = vmatmul.mubr.bf16.gmra.mrb[0].mxu0 %v431
    %v558 = vpop.f32.mrb[0].mxu0
    %v559 = vadd.f32 0.0, %v558
    %v560 = vpop.f32.mrb[0].mxu0
    %v561 = vpop.f32.mrb[0].mxu0
    %v562 = vadd.f32 0.0, %v561
    %v563 = vpop.f32.mrb[0].mxu0
    %564 = vmatprep.mubr.bf16.mxu0 0
    %565 = vmatmul.mubr.bf16.gmra.mrb[0].mxu0 %v432
    %v566 = vpop.f32.mrb[0].mxu0
    %v567 = vadd.f32 0.0, %v566
    %v568 = vpop.f32.mrb[0].mxu0
    %v569 = vpop.f32.mrb[0].mxu0
    %v570 = vadd.f32 0.0, %v569
    %v571 = vpop.f32.mrb[0].mxu0
    %572 = vmatprep.mubr.bf16.mxu0 0
    %573 = vmatmul.mubr.bf16.gmra.mrb[0].mxu0 %v433
    %v574 = vpop.f32.mrb[0].mxu0
    %v575 = vadd.f32 0.0, %v574
    %v576 = vpop.f32.mrb[0].mxu0
    %v577 = vpop.f32.mrb[0].mxu0
    %v578 = vadd.f32 0.0, %v577
    %v579 = vpop.f32.mrb[0].mxu0
    %580 = vmatprep.mubr.bf16.mxu0 0
    %581 = vmatmul.mubr.bf16.gmra.mrb[0].mxu0 %v434
    %v582 = vpop.f32.mrb[0].mxu0
    %v583 = vadd.f32 0.0, %v582
    %v584 = vpop.f32.mrb[0].mxu0
    %v585 = vpop.f32.mrb[0].mxu0
    %v586 = vadd.f32 0.0, %v585
    %v587 = vpop.f32.mrb[0].mxu0
    %588 = vmatprep.mubr.bf16.mxu0 0
    %589 = vmatmul.mubr.bf16.gmra.mrb[0].mxu0 %v435
    %v590 = vpop.f32.mrb[0].mxu0
    %v591 = vadd.f32 0.0, %v590
    %v592 = vpop.f32.mrb[0].mxu0
    %v593 = vpop.f32.mrb[0].mxu0
    %v594 = vadd.f32 0.0, %v593
    %v595 = vpop.f32.mrb[0].mxu0
    %596 = vdwg.mxu0
    %v597 = vld [vmem:[%s3] sm:$0x1]
    %v598 = vrot.slane %v535, 1
    %v599 = vrot.slane %v538, 1
    %v600 = vrot.slane %v543, 1
    %v601 = vrot.slane %v546, 1
    %v602 = vrot.slane %v551, 1
    %v603 = vrot.slane %v554, 1
    %v604 = vrot.slane %v559, 1
    %v605 = vrot.slane %v562, 1
    %v606 = vrot.slane %v567, 1
    %v607 = vrot.slane %v570, 1
    %v608 = vrot.slane %v575, 1
    %v609 = vrot.slane %v578, 1
    %v610 = vrot.slane %v583, 1
    %v611 = vrot.slane %v586, 1
    %v612 = vrot.slane %v591, 1
    %v613 = vrot.slane %v594, 1
    %vm614 = vcmp.lt.s32.totalorder %v322, 7
    %v615 = vsel %vm614, %v612, %v613
    %v616 = vsel %vm614, %v611, %v612
    %v617 = vsel %vm614, %v610, %v611
    %v618 = vsel %vm614, %v609, %v610
    %v619 = vsel %vm614, %v608, %v609
    %v620 = vsel %vm614, %v607, %v608
    %v621 = vsel %vm614, %v606, %v607
    %v622 = vsel %vm614, %v605, %v606
    %v623 = vsel %vm614, %v604, %v605
    %v624 = vsel %vm614, %v603, %v604
    %v625 = vsel %vm614, %v602, %v603
    %v626 = vsel %vm614, %v601, %v602
    %v627 = vsel %vm614, %v600, %v601
    %v628 = vsel %vm614, %v599, %v600
    %v629 = vsel %vm614, %v598, %v599
    %v630 = vsel %vm614, %v613, %v598
    %v631 = vsel %vm326, 0.0, %v629
    %v632 = vsel %vm327, 0.0, %v628
    %v633 = vsel %vm326, 0.0, %v627
    %v634 = vsel %vm327, 0.0, %v626
    %v635 = vsel %vm326, 0.0, %v625
    %v636 = vsel %vm327, 0.0, %v624
    %v637 = vsel %vm326, 0.0, %v623
    %v638 = vsel %vm327, 0.0, %v622
    %v639 = vsel %vm326, 0.0, %v621
    %v640 = vsel %vm327, 0.0, %v620
    %v641 = vsel %vm326, 0.0, %v619
    %v642 = vsel %vm327, 0.0, %v618
    %v643 = vsel %vm326, 0.0, %v617
    %v644 = vsel %vm327, 0.0, %v616
    %v645 = vsel %vm326, 0.0, %v615
    %v646 = vsel %vm327, 0.0, %v630
    %647 = vrot.lane.b32.xlu0 %v631, 64
    %v648 = vpop.permute.xlu0 %647
    %649 = vrot.lane.b32.xlu0 %v632, 64
    %v650 = vpop.permute.xlu0 %649
    %651 = vrot.lane.b32.xlu0 %v633, 64
    %v652 = vpop.permute.xlu0 %651
    %653 = vrot.lane.b32.xlu0 %v634, 64
    %v654 = vpop.permute.xlu0 %653
    %655 = vrot.lane.b32.xlu0 %v635, 64
    %v656 = vpop.permute.xlu0 %655
    %657 = vrot.lane.b32.xlu0 %v636, 64
    %v658 = vpop.permute.xlu0 %657
    %659 = vrot.lane.b32.xlu0 %v637, 64
    %v660 = vpop.permute.xlu0 %659
    %661 = vrot.lane.b32.xlu0 %v638, 64
    %v662 = vpop.permute.xlu0 %661
    %663 = vrot.lane.b32.xlu0 %v639, 64
    %v664 = vpop.permute.xlu0 %663
    %665 = vrot.lane.b32.xlu0 %v640, 64
    %v666 = vpop.permute.xlu0 %665
    %667 = vrot.lane.b32.xlu0 %v641, 64
    %v668 = vpop.permute.xlu0 %667
    %669 = vrot.lane.b32.xlu0 %v642, 64
    %v670 = vpop.permute.xlu0 %669
    %671 = vrot.lane.b32.xlu0 %v643, 64
    %v672 = vpop.permute.xlu0 %671
    %673 = vrot.lane.b32.xlu0 %v644, 64
    %v674 = vpop.permute.xlu0 %673
    %675 = vrot.lane.b32.xlu0 %v645, 64
    %v676 = vpop.permute.xlu0 %675
    %677 = vrot.lane.b32.xlu0 %v646, 64
    %v678 = vpop.permute.xlu0 %677
    %v679 = vadd.f32 %v535, %v648
    %v680 = vadd.f32 %v538, %v650
    %v681 = vadd.f32 %v543, %v652
    %v682 = vadd.f32 %v546, %v654
    %v683 = vadd.f32 %v551, %v656
    %v684 = vadd.f32 %v554, %v658
    %v685 = vadd.f32 %v559, %v660
    %v686 = vadd.f32 %v562, %v662
    %v687 = vadd.f32 %v567, %v664
    %v688 = vadd.f32 %v570, %v666
    %v689 = vadd.f32 %v575, %v668
    %v690 = vadd.f32 %v578, %v670
    %v691 = vadd.f32 %v583, %v672
    %v692 = vadd.f32 %v586, %v674
    %v693 = vadd.f32 %v591, %v676
    %v694 = vadd.f32 %v594, %v678
    %v696 = vlaneseq
    %v697 = vshrl.u32 %v696, 7
    %v698 = vsub.s32 0, %v697
    %v699 = vrot.slane %v597, %v698
    %v701 = vadd.f32 %v679, %v699
    %v702 = vadd.f32 %v680, %v699
    %v703 = vadd.f32 %v681, %v699
    %v704 = vadd.f32 %v682, %v699
    %v705 = vadd.f32 %v683, %v699
    %v706 = vadd.f32 %v684, %v699
    %v707 = vadd.f32 %v685, %v699
    %v708 = vadd.f32 %v686, %v699
    %v709 = vadd.f32 %v687, %v699
    %v710 = vadd.f32 %v688, %v699
    %v711 = vadd.f32 %v689, %v699
    %v712 = vadd.f32 %v690, %v699
    %v713 = vadd.f32 %v691, %v699
    %v714 = vadd.f32 %v692, %v699
    %v715 = vadd.f32 %v693, %v699
    %v716 = vadd.f32 %v694, %v699
    %v717 = vmax.f32 %v701, 0.0
    %v718 = vmax.f32 %v702, 0.0
    %v719 = vmax.f32 %v703, 0.0
    %v720 = vmax.f32 %v704, 0.0
    %v721 = vmax.f32 %v705, 0.0
    %v722 = vmax.f32 %v706, 0.0
    %v723 = vmax.f32 %v707, 0.0
    %v724 = vmax.f32 %v708, 0.0
    %v725 = vmax.f32 %v709, 0.0
    %v726 = vmax.f32 %v710, 0.0
    %v727 = vmax.f32 %v711, 0.0
    %v728 = vmax.f32 %v712, 0.0
    %v729 = vmax.f32 %v713, 0.0
    %v730 = vmax.f32 %v714, 0.0
    %v731 = vmax.f32 %v715, 0.0
    %v732 = vmax.f32 %v716, 0.0
    %v733 = vrot.slane %v717, 7
    %v734 = vrot.slane %v718, 7
    %v735 = vrot.slane %v719, 7
    %v736 = vrot.slane %v720, 7
    %v737 = vrot.slane %v721, 7
    %v738 = vrot.slane %v722, 7
    %v739 = vrot.slane %v723, 7
    %v740 = vrot.slane %v724, 7
    %v741 = vrot.slane %v725, 7
    %v742 = vrot.slane %v726, 7
    %v743 = vrot.slane %v727, 7
    %v744 = vrot.slane %v728, 7
    %v745 = vrot.slane %v729, 7
    %v746 = vrot.slane %v730, 7
    %v747 = vrot.slane %v731, 7
    %v748 = vrot.slane %v732, 7
    %v749 = vsel %vm347, %v747, %v748
    %v750 = vsel %vm347, %v746, %v747
    %v751 = vsel %vm347, %v745, %v746
    %v752 = vsel %vm347, %v744, %v745
    %v753 = vsel %vm347, %v743, %v744
    %v754 = vsel %vm347, %v742, %v743
    %v755 = vsel %vm347, %v741, %v742
    %v756 = vsel %vm347, %v740, %v741
    %v757 = vsel %vm347, %v739, %v740
    %v758 = vsel %vm347, %v738, %v739
    %v759 = vsel %vm347, %v737, %v738
    %v760 = vsel %vm347, %v736, %v737
    %v761 = vsel %vm347, %v735, %v736
    %v762 = vsel %vm347, %v734, %v735
    %v763 = vsel %vm347, %v733, %v734
    %v764 = vsel %vm347, %v748, %v733
    %v765 = vsel %vm324, 0.0, %v764
    %v766 = vsel %vm325, 0.0, %v763
    %v767 = vsel %vm324, 0.0, %v762
    %v768 = vsel %vm325, 0.0, %v761
    %v769 = vsel %vm324, 0.0, %v760
    %v770 = vsel %vm325, 0.0, %v759
    %v771 = vsel %vm324, 0.0, %v758
    %v772 = vsel %vm325, 0.0, %v757
    %v773 = vsel %vm324, 0.0, %v756
    %v774 = vsel %vm325, 0.0, %v755
    %v775 = vsel %vm324, 0.0, %v754
    %v776 = vsel %vm325, 0.0, %v753
    %v777 = vsel %vm324, 0.0, %v752
    %v778 = vsel %vm325, 0.0, %v751
    %v779 = vsel %vm324, 0.0, %v750
    %v780 = vsel %vm325, 0.0, %v749
    %781 = vrot.lane.b32.xlu0 %v765, 64
    %v782 = vpop.permute.xlu0 %781
    %783 = vrot.lane.b32.xlu0 %v766, 64
    %v784 = vpop.permute.xlu0 %783
    %785 = vrot.lane.b32.xlu0 %v767, 64
    %v786 = vpop.permute.xlu0 %785
    %787 = vrot.lane.b32.xlu0 %v768, 64
    %v788 = vpop.permute.xlu0 %787
    %789 = vrot.lane.b32.xlu0 %v769, 64
    %v790 = vpop.permute.xlu0 %789
    %791 = vrot.lane.b32.xlu0 %v770, 64
    %v792 = vpop.permute.xlu0 %791
    %793 = vrot.lane.b32.xlu0 %v771, 64
    %v794 = vpop.permute.xlu0 %793
    %795 = vrot.lane.b32.xlu0 %v772, 64
    %v796 = vpop.permute.xlu0 %795
    %797 = vrot.lane.b32.xlu0 %v773, 64
    %v798 = vpop.permute.xlu0 %797
    %799 = vrot.lane.b32.xlu0 %v774, 64
    %v800 = vpop.permute.xlu0 %799
    %801 = vrot.lane.b32.xlu0 %v775, 64
    %v802 = vpop.permute.xlu0 %801
    %803 = vrot.lane.b32.xlu0 %v776, 64
    %v804 = vpop.permute.xlu0 %803
    %805 = vrot.lane.b32.xlu0 %v777, 64
    %v806 = vpop.permute.xlu0 %805
    %807 = vrot.lane.b32.xlu0 %v778, 64
    %v808 = vpop.permute.xlu0 %807
    %809 = vrot.lane.b32.xlu0 %v779, 64
    %v810 = vpop.permute.xlu0 %809
    %811 = vrot.lane.b32.xlu0 %v780, 64
    %v812 = vpop.permute.xlu0 %811
    %v813 = vsel %vm330, %v717, %v782
    %v814 = vsel %vm330, %v718, %v784
    %v815 = vsel %vm330, %v719, %v786
    %v816 = vsel %vm330, %v720, %v788
    %v817 = vsel %vm330, %v721, %v790
    %v818 = vsel %vm330, %v722, %v792
    %v819 = vsel %vm330, %v723, %v794
    %v820 = vsel %vm330, %v724, %v796
    %v821 = vsel %vm330, %v725, %v798
    %v822 = vsel %vm330, %v726, %v800
    %v823 = vsel %vm330, %v727, %v802
    %v824 = vsel %vm330, %v728, %v804
    %v825 = vsel %vm330, %v729, %v806
    %v826 = vsel %vm330, %v730, %v808
    %v827 = vsel %vm330, %v731, %v810
    %v828 = vsel %vm330, %v732, %v812
    %v829 = vpack.c.bf16 %v814, %v813
    %v830 = vpack.c.bf16 %v816, %v815
    %v831 = vpack.c.bf16 %v818, %v817
    %v832 = vpack.c.bf16 %v820, %v819
    %v833 = vpack.c.bf16 %v822, %v821
    %v834 = vpack.c.bf16 %v824, %v823
    %v835 = vpack.c.bf16 %v826, %v825
    %v836 = vpack.c.bf16 %v828, %v827
    %s837 = scalar_lea.vmem [#allocation7], 256
    %v838 = vld [vmem:[%s837] sm:$0xff]
    %v839 = vld [vmem:[%s837 + $0x8] sm:$0xff]
    %v840 = vld [vmem:[%s837 + $0x10] sm:$0xff]
    %v841 = vld [vmem:[%s837 + $0x18] sm:$0xff]
    %v842 = vld [vmem:[%s837 + $0x20] sm:$0xff]
    %v843 = vld [vmem:[%s837 + $0x28] sm:$0xff]
    %v844 = vld [vmem:[%s837 + $0x30] sm:$0xff]
    %v845 = vld [vmem:[%s837 + $0x38] sm:$0xff]
    %v846 = vld [vmem:[%s837 + $0x40] sm:$0xff]
    %v847 = vld [vmem:[%s837 + $0x48] sm:$0xff]
    %v848 = vld [vmem:[%s837 + $0x50] sm:$0xff]
    %v849 = vld [vmem:[%s837 + $0x58] sm:$0xff]
    %v850 = vld [vmem:[%s837 + $0x60] sm:$0xff]
    %v851 = vld [vmem:[%s837 + $0x68] sm:$0xff]
    %v852 = vld [vmem:[%s837 + $0x70] sm:$0xff]
    %v853 = vld [vmem:[%s837 + $0x78] sm:$0xff]
    %v870 = vunpack.c.l.b16 %v838
    %v871 = vunpack.c.l.b16 %v839
    %v872 = vunpack.c.l.b16 %v840
    %v873 = vunpack.c.l.b16 %v841
    %v874 = vunpack.c.l.b16 %v842
    %v875 = vunpack.c.l.b16 %v843
    %v876 = vunpack.c.l.b16 %v844
    %v877 = vunpack.c.l.b16 %v845
    %v878 = vunpack.c.l.b16 %v846
    %v879 = vunpack.c.l.b16 %v847
    %v880 = vunpack.c.l.b16 %v848
    %v881 = vunpack.c.l.b16 %v849
    %v882 = vunpack.c.l.b16 %v850
    %v883 = vunpack.c.l.b16 %v851
    %v884 = vunpack.c.l.b16 %v852
    %v885 = vunpack.c.l.b16 %v853
    %v886 = vpack.c.b16 %v871, %v870
    %v887 = vpack.c.b16 %v873, %v872
    %v888 = vpack.c.b16 %v875, %v874
    %v889 = vpack.c.b16 %v877, %v876
    %v890 = vpack.c.b16 %v879, %v878
    %v891 = vpack.c.b16 %v881, %v880
    %v892 = vpack.c.b16 %v883, %v882
    %v893 = vpack.c.b16 %v885, %v884
    %902 = vmatprep.subr.bf16.mxu0 0
    %903 = vmatpush1.bf16.msra.mxu0 %v886
    %904 = vmatprep.subr.bf16.mxu0 0
    %905 = vmatpush1.bf16.msra.mxu0 %v887
    %906 = vmatprep.subr.bf16.mxu0 0
    %907 = vmatpush1.bf16.msra.mxu0 %v888
    %908 = vmatprep.subr.bf16.mxu0 0
    %909 = vmatpush1.bf16.msra.mxu0 %v889
    %910 = vmatprep.subr.bf16.mxu0 0
    %911 = vmatpush1.bf16.msra.mxu0 %v890
    %912 = vmatprep.subr.bf16.mxu0 0
    %913 = vmatpush1.bf16.msra.mxu0 %v891
    %914 = vmatprep.subr.bf16.mxu0 0
    %915 = vmatpush1.bf16.msra.mxu0 %v892
    %916 = vmatprep.subr.bf16.mxu0 0
    %917 = vmatpush1.bf16.msra.mxu0 %v893
    %918 = vmatprep.subr.bf16.mxu0 0
    %919 = vmatpush1.bf16.msra.mxu0 0
    %920 = vmatprep.subr.bf16.mxu0 0
    %921 = vmatpush1.bf16.msra.mxu0 0
    %922 = vmatprep.subr.bf16.mxu0 0
    %923 = vmatpush1.bf16.msra.mxu0 0
    %924 = vmatprep.subr.bf16.mxu0 0
    %925 = vmatpush1.bf16.msra.mxu0 0
    %926 = vmatprep.subr.bf16.mxu0 0
    %927 = vmatpush1.bf16.msra.mxu0 0
    %928 = vmatprep.subr.bf16.mxu0 0
    %929 = vmatpush1.bf16.msra.mxu0 0
    %930 = vmatprep.subr.bf16.mxu0 0
    %931 = vmatpush1.bf16.msra.mxu0 0
    %932 = vmatprep.subr.bf16.mxu0 0
    %933 = vmatpush1.bf16.msra.mxu0 0
    %934 = vmatprep.mubr.bf16.mxu0 0
    %935 = vmatmul.mubr.bf16.gmra.mrb[0].mxu0 %v829
    %v936 = vpop.f32.mrb[0].mxu0
    %v937 = vadd.f32 0.0, %v936
    %v938 = vpop.f32.mrb[0].mxu0
    %v939 = vpop.f32.mrb[0].mxu0
    %v940 = vadd.f32 0.0, %v939
    %v941 = vpop.f32.mrb[0].mxu0
    %942 = vmatprep.mubr.bf16.mxu0 0
    %943 = vmatmul.mubr.bf16.gmra.mrb[0].mxu0 %v830
    %v944 = vpop.f32.mrb[0].mxu0
    %v945 = vadd.f32 0.0, %v944
    %v946 = vpop.f32.mrb[0].mxu0
    %v947 = vpop.f32.mrb[0].mxu0
    %v948 = vadd.f32 0.0, %v947
    %v949 = vpop.f32.mrb[0].mxu0
    %950 = vmatprep.mubr.bf16.mxu0 0
    %951 = vmatmul.mubr.bf16.gmra.mrb[0].mxu0 %v831
    %v952 = vpop.f32.mrb[0].mxu0
    %v953 = vadd.f32 0.0, %v952
    %v954 = vpop.f32.mrb[0].mxu0
    %v955 = vpop.f32.mrb[0].mxu0
    %v956 = vadd.f32 0.0, %v955
    %v957 = vpop.f32.mrb[0].mxu0
    %958 = vmatprep.mubr.bf16.mxu0 0
    %959 = vmatmul.mubr.bf16.gmra.mrb[0].mxu0 %v832
    %v960 = vpop.f32.mrb[0].mxu0
    %v961 = vadd.f32 0.0, %v960
    %v962 = vpop.f32.mrb[0].mxu0
    %v963 = vpop.f32.mrb[0].mxu0
    %v964 = vadd.f32 0.0, %v963
    %v965 = vpop.f32.mrb[0].mxu0
    %966 = vmatprep.mubr.bf16.mxu0 0
    %967 = vmatmul.mubr.bf16.gmra.mrb[0].mxu0 %v833
    %v968 = vpop.f32.mrb[0].mxu0
    %v969 = vadd.f32 0.0, %v968
    %v970 = vpop.f32.mrb[0].mxu0
    %v971 = vpop.f32.mrb[0].mxu0
    %v972 = vadd.f32 0.0, %v971
    %v973 = vpop.f32.mrb[0].mxu0
    %974 = vmatprep.mubr.bf16.mxu0 0
    %975 = vmatmul.mubr.bf16.gmra.mrb[0].mxu0 %v834
    %v976 = vpop.f32.mrb[0].mxu0
    %v977 = vadd.f32 0.0, %v976
    %v978 = vpop.f32.mrb[0].mxu0
    %v979 = vpop.f32.mrb[0].mxu0
    %v980 = vadd.f32 0.0, %v979
    %v981 = vpop.f32.mrb[0].mxu0
    %982 = vmatprep.mubr.bf16.mxu0 0
    %983 = vmatmul.mubr.bf16.gmra.mrb[0].mxu0 %v835
    %v984 = vpop.f32.mrb[0].mxu0
    %v985 = vadd.f32 0.0, %v984
    %v986 = vpop.f32.mrb[0].mxu0
    %v987 = vpop.f32.mrb[0].mxu0
    %v988 = vadd.f32 0.0, %v987
    %v989 = vpop.f32.mrb[0].mxu0
    %990 = vmatprep.mubr.bf16.mxu0 0
    %991 = vmatmul.mubr.bf16.gmra.mrb[0].mxu0 %v836
    %v992 = vpop.f32.mrb[0].mxu0
    %v993 = vadd.f32 0.0, %v992
    %v994 = vpop.f32.mrb[0].mxu0
    %v995 = vpop.f32.mrb[0].mxu0
    %v996 = vadd.f32 0.0, %v995
    %v997 = vpop.f32.mrb[0].mxu0
    %998 = vdwg.mxu0
    %s999 = scalar_lea.vmem %s3, 1
    %v1000 = vld [vmem:[%s999] sm:$0x1]
    %v1001 = vrot.slane %v937, 1
    %v1002 = vrot.slane %v940, 1
    %v1003 = vrot.slane %v945, 1
    %v1004 = vrot.slane %v948, 1
    %v1005 = vrot.slane %v953, 1
    %v1006 = vrot.slane %v956, 1
    %v1007 = vrot.slane %v961, 1
    %v1008 = vrot.slane %v964, 1
    %v1009 = vrot.slane %v969, 1
    %v1010 = vrot.slane %v972, 1
    %v1011 = vrot.slane %v977, 1
    %v1012 = vrot.slane %v980, 1
    %v1013 = vrot.slane %v985, 1
    %v1014 = vrot.slane %v988, 1
    %v1015 = vrot.slane %v993, 1
    %v1016 = vrot.slane %v996, 1
    %v1017 = vsel %vm614, %v1015, %v1016
    %v1018 = vsel %vm614, %v1014, %v1015
    %v1019 = vsel %vm614, %v1013, %v1014
    %v1020 = vsel %vm614, %v1012, %v1013
    %v1021 = vsel %vm614, %v1011, %v1012
    %v1022 = vsel %vm614, %v1010, %v1011
    %v1023 = vsel %vm614, %v1009, %v1010
    %v1024 = vsel %vm614, %v1008, %v1009
    %v1025 = vsel %vm614, %v1007, %v1008
    %v1026 = vsel %vm614, %v1006, %v1007
    %v1027 = vsel %vm614, %v1005, %v1006
    %v1028 = vsel %vm614, %v1004, %v1005
    %v1029 = vsel %vm614, %v1003, %v1004
    %v1030 = vsel %vm614, %v1002, %v1003
    %v1031 = vsel %vm614, %v1001, %v1002
    %v1032 = vsel %vm614, %v1016, %v1001
    %v1033 = vsel %vm326, 0.0, %v1031
    %v1034 = vsel %vm327, 0.0, %v1030
    %v1035 = vsel %vm326, 0.0, %v1029
    %v1036 = vsel %vm327, 0.0, %v1028
    %v1037 = vsel %vm326, 0.0, %v1027
    %v1038 = vsel %vm327, 0.0, %v1026
    %v1039 = vsel %vm326, 0.0, %v1025
    %v1040 = vsel %vm327, 0.0, %v1024
    %v1041 = vsel %vm326, 0.0, %v1023
    %v1042 = vsel %vm327, 0.0, %v1022
    %v1043 = vsel %vm326, 0.0, %v1021
    %v1044 = vsel %vm327, 0.0, %v1020
    %v1045 = vsel %vm326, 0.0, %v1019
    %v1046 = vsel %vm327, 0.0, %v1018
    %v1047 = vsel %vm326, 0.0, %v1017
    %v1048 = vsel %vm327, 0.0, %v1032
    %1049 = vrot.lane.b32.xlu0 %v1033, 64
    %v1050 = vpop.permute.xlu0 %1049
    %1051 = vrot.lane.b32.xlu0 %v1034, 64
    %v1052 = vpop.permute.xlu0 %1051
    %1053 = vrot.lane.b32.xlu0 %v1035, 64
    %v1054 = vpop.permute.xlu0 %1053
    %1055 = vrot.lane.b32.xlu0 %v1036, 64
    %v1056 = vpop.permute.xlu0 %1055
    %1057 = vrot.lane.b32.xlu0 %v1037, 64
    %v1058 = vpop.permute.xlu0 %1057
    %1059 = vrot.lane.b32.xlu0 %v1038, 64
    %v1060 = vpop.permute.xlu0 %1059
    %1061 = vrot.lane.b32.xlu0 %v1039, 64
    %v1062 = vpop.permute.xlu0 %1061
    %1063 = vrot.lane.b32.xlu0 %v1040, 64
    %v1064 = vpop.permute.xlu0 %1063
    %1065 = vrot.lane.b32.xlu0 %v1041, 64
    %v1066 = vpop.permute.xlu0 %1065
    %1067 = vrot.lane.b32.xlu0 %v1042, 64
    %v1068 = vpop.permute.xlu0 %1067
    %1069 = vrot.lane.b32.xlu0 %v1043, 64
    %v1070 = vpop.permute.xlu0 %1069
    %1071 = vrot.lane.b32.xlu0 %v1044, 64
    %v1072 = vpop.permute.xlu0 %1071
    %1073 = vrot.lane.b32.xlu0 %v1045, 64
    %v1074 = vpop.permute.xlu0 %1073
    %1075 = vrot.lane.b32.xlu0 %v1046, 64
    %v1076 = vpop.permute.xlu0 %1075
    %1077 = vrot.lane.b32.xlu0 %v1047, 64
    %v1078 = vpop.permute.xlu0 %1077
    %1079 = vrot.lane.b32.xlu0 %v1048, 64
    %v1080 = vpop.permute.xlu0 %1079
    %v1081 = vadd.f32 %v937, %v1050
    %v1082 = vadd.f32 %v940, %v1052
    %v1083 = vadd.f32 %v945, %v1054
    %v1084 = vadd.f32 %v948, %v1056
    %v1085 = vadd.f32 %v953, %v1058
    %v1086 = vadd.f32 %v956, %v1060
    %v1087 = vadd.f32 %v961, %v1062
    %v1088 = vadd.f32 %v964, %v1064
    %v1089 = vadd.f32 %v969, %v1066
    %v1090 = vadd.f32 %v972, %v1068
    %v1091 = vadd.f32 %v977, %v1070
    %v1092 = vadd.f32 %v980, %v1072
    %v1093 = vadd.f32 %v985, %v1074
    %v1094 = vadd.f32 %v988, %v1076
    %v1095 = vadd.f32 %v993, %v1078
    %v1096 = vadd.f32 %v996, %v1080
    %v1098 = vlaneseq
    %v1099 = vshrl.u32 %v1098, 7
    %v1100 = vsub.s32 0, %v1099
    %v1101 = vrot.slane %v1000, %v1100
    %v1103 = vadd.f32 %v1081, %v1101
    %v1104 = vadd.f32 %v1082, %v1101
    %v1105 = vadd.f32 %v1083, %v1101
    %v1106 = vadd.f32 %v1084, %v1101
    %v1107 = vadd.f32 %v1085, %v1101
    %v1108 = vadd.f32 %v1086, %v1101
    %v1109 = vadd.f32 %v1087, %v1101
    %v1110 = vadd.f32 %v1088, %v1101
    %v1111 = vadd.f32 %v1089, %v1101
    %v1112 = vadd.f32 %v1090, %v1101
    %v1113 = vadd.f32 %v1091, %v1101
    %v1114 = vadd.f32 %v1092, %v1101
    %v1115 = vadd.f32 %v1093, %v1101
    %v1116 = vadd.f32 %v1094, %v1101
    %v1117 = vadd.f32 %v1095, %v1101
    %v1118 = vadd.f32 %v1096, %v1101
    %v1119 = vmax.f32 %v1103, 0.0
    %v1120 = vmax.f32 %v1104, 0.0
    %v1121 = vmax.f32 %v1105, 0.0
    %v1122 = vmax.f32 %v1106, 0.0
    %v1123 = vmax.f32 %v1107, 0.0
    %v1124 = vmax.f32 %v1108, 0.0
    %v1125 = vmax.f32 %v1109, 0.0
    %v1126 = vmax.f32 %v1110, 0.0
    %v1127 = vmax.f32 %v1111, 0.0
    %v1128 = vmax.f32 %v1112, 0.0
    %v1129 = vmax.f32 %v1113, 0.0
    %v1130 = vmax.f32 %v1114, 0.0
    %v1131 = vmax.f32 %v1115, 0.0
    %v1132 = vmax.f32 %v1116, 0.0
    %v1133 = vmax.f32 %v1117, 0.0
    %v1134 = vmax.f32 %v1118, 0.0
    %v1135 = vrot.slane %v1119, 7
    %v1136 = vrot.slane %v1120, 7
    %v1137 = vrot.slane %v1121, 7
    %v1138 = vrot.slane %v1122, 7
    %v1139 = vrot.slane %v1123, 7
    %v1140 = vrot.slane %v1124, 7
    %v1141 = vrot.slane %v1125, 7
    %v1142 = vrot.slane %v1126, 7
    %v1143 = vrot.slane %v1127, 7
    %v1144 = vrot.slane %v1128, 7
    %v1145 = vrot.slane %v1129, 7
    %v1146 = vrot.slane %v1130, 7
    %v1147 = vrot.slane %v1131, 7
    %v1148 = vrot.slane %v1132, 7
    %v1149 = vrot.slane %v1133, 7
    %v1150 = vrot.slane %v1134, 7
    %v1151 = vsel %vm347, %v1149, %v1150
    %v1152 = vsel %vm347, %v1148, %v1149
    %v1153 = vsel %vm347, %v1147, %v1148
    %v1154 = vsel %vm347, %v1146, %v1147
    %v1155 = vsel %vm347, %v1145, %v1146
    %v1156 = vsel %vm347, %v1144, %v1145
    %v1157 = vsel %vm347, %v1143, %v1144
    %v1158 = vsel %vm347, %v1142, %v1143
    %v1159 = vsel %vm347, %v1141, %v1142
    %v1160 = vsel %vm347, %v1140, %v1141
    %v1161 = vsel %vm347, %v1139, %v1140
    %v1162 = vsel %vm347, %v1138, %v1139
    %v1163 = vsel %vm347, %v1137, %v1138
    %v1164 = vsel %vm347, %v1136, %v1137
    %v1165 = vsel %vm347, %v1135, %v1136
    %v1166 = vsel %vm347, %v1150, %v1135
    %v1167 = vsel %vm324, 0.0, %v1166
    %v1168 = vsel %vm325, 0.0, %v1165
    %v1169 = vsel %vm324, 0.0, %v1164
    %v1170 = vsel %vm325, 0.0, %v1163
    %v1171 = vsel %vm324, 0.0, %v1162
    %v1172 = vsel %vm325, 0.0, %v1161
    %v1173 = vsel %vm324, 0.0, %v1160
    %v1174 = vsel %vm325, 0.0, %v1159
    %v1175 = vsel %vm324, 0.0, %v1158
    %v1176 = vsel %vm325, 0.0, %v1157
    %v1177 = vsel %vm324, 0.0, %v1156
    %v1178 = vsel %vm325, 0.0, %v1155
    %v1179 = vsel %vm324, 0.0, %v1154
    %v1180 = vsel %vm325, 0.0, %v1153
    %v1181 = vsel %vm324, 0.0, %v1152
    %v1182 = vsel %vm325, 0.0, %v1151
    %1183 = vrot.lane.b32.xlu0 %v1167, 64
    %v1184 = vpop.permute.xlu0 %1183
    %1185 = vrot.lane.b32.xlu0 %v1168, 64
    %v1186 = vpop.permute.xlu0 %1185
    %1187 = vrot.lane.b32.xlu0 %v1169, 64
    %v1188 = vpop.permute.xlu0 %1187
    %1189 = vrot.lane.b32.xlu0 %v1170, 64
    %v1190 = vpop.permute.xlu0 %1189
    %1191 = vrot.lane.b32.xlu0 %v1171, 64
    %v1192 = vpop.permute.xlu0 %1191
    %1193 = vrot.lane.b32.xlu0 %v1172, 64
    %v1194 = vpop.permute.xlu0 %1193
    %1195 = vrot.lane.b32.xlu0 %v1173, 64
    %v1196 = vpop.permute.xlu0 %1195
    %1197 = vrot.lane.b32.xlu0 %v1174, 64
    %v1198 = vpop.permute.xlu0 %1197
    %1199 = vrot.lane.b32.xlu0 %v1175, 64
    %v1200 = vpop.permute.xlu0 %1199
    %1201 = vrot.lane.b32.xlu0 %v1176, 64
    %v1202 = vpop.permute.xlu0 %1201
    %1203 = vrot.lane.b32.xlu0 %v1177, 64
    %v1204 = vpop.permute.xlu0 %1203
    %1205 = vrot.lane.b32.xlu0 %v1178, 64
    %v1206 = vpop.permute.xlu0 %1205
    %1207 = vrot.lane.b32.xlu0 %v1179, 64
    %v1208 = vpop.permute.xlu0 %1207
    %1209 = vrot.lane.b32.xlu0 %v1180, 64
    %v1210 = vpop.permute.xlu0 %1209
    %1211 = vrot.lane.b32.xlu0 %v1181, 64
    %v1212 = vpop.permute.xlu0 %1211
    %1213 = vrot.lane.b32.xlu0 %v1182, 64
    %v1214 = vpop.permute.xlu0 %1213
    %v1215 = vsel %vm330, %v1119, %v1184
    %v1216 = vsel %vm330, %v1120, %v1186
    %v1217 = vsel %vm330, %v1121, %v1188
    %v1218 = vsel %vm330, %v1122, %v1190
    %v1219 = vsel %vm330, %v1123, %v1192
    %v1220 = vsel %vm330, %v1124, %v1194
    %v1221 = vsel %vm330, %v1125, %v1196
    %v1222 = vsel %vm330, %v1126, %v1198
    %v1223 = vsel %vm330, %v1127, %v1200
    %v1224 = vsel %vm330, %v1128, %v1202
    %v1225 = vsel %vm330, %v1129, %v1204
    %v1226 = vsel %vm330, %v1130, %v1206
    %v1227 = vsel %vm330, %v1131, %v1208
    %v1228 = vsel %vm330, %v1132, %v1210
    %v1229 = vsel %vm330, %v1133, %v1212
    %v1230 = vsel %vm330, %v1134, %v1214
    %v1231 = vpack.c.bf16 %v1216, %v1215
    %v1232 = vpack.c.bf16 %v1218, %v1217
    %v1233 = vpack.c.bf16 %v1220, %v1219
    %v1234 = vpack.c.bf16 %v1222, %v1221
    %v1235 = vpack.c.bf16 %v1224, %v1223
    %v1236 = vpack.c.bf16 %v1226, %v1225
    %v1237 = vpack.c.bf16 %v1228, %v1227
    %v1238 = vpack.c.bf16 %v1230, %v1229
    %s1239 = scalar_lea.vmem [#allocation7], 512
    %v1240 = vld [vmem:[%s1239] sm:$0xff]
    %v1241 = vld [vmem:[%s1239 + $0x8] sm:$0xff]
    %v1242 = vld [vmem:[%s1239 + $0x10] sm:$0xff]
    %v1243 = vld [vmem:[%s1239 + $0x18] sm:$0xff]
    %v1244 = vld [vmem:[%s1239 + $0x20] sm:$0xff]
    %v1245 = vld [vmem:[%s1239 + $0x28] sm:$0xff]
    %v1246 = vld [vmem:[%s1239 + $0x30] sm:$0xff]
    %v1247 = vld [vmem:[%s1239 + $0x38] sm:$0xff]
    %v1248 = vld [vmem:[%s1239 + $0x40] sm:$0xff]
    %v1249 = vld [vmem:[%s1239 + $0x48] sm:$0xff]
    %v1250 = vld [vmem:[%s1239 + $0x50] sm:$0xff]
    %v1251 = vld [vmem:[%s1239 + $0x58] sm:$0xff]
    %v1252 = vld [vmem:[%s1239 + $0x60] sm:$0xff]
    %v1253 = vld [vmem:[%s1239 + $0x68] sm:$0xff]
    %v1254 = vld [vmem:[%s1239 + $0x70] sm:$0xff]
    %v1255 = vld [vmem:[%s1239 + $0x78] sm:$0xff]
    %v1272 = vunpack.c.l.b16 %v1240
    %v1273 = vunpack.c.l.b16 %v1241
    %v1274 = vunpack.c.l.b16 %v1242
    %v1275 = vunpack.c.l.b16 %v1243
    %v1276 = vunpack.c.l.b16 %v1244
    %v1277 = vunpack.c.l.b16 %v1245
    %v1278 = vunpack.c.l.b16 %v1246
    %v1279 = vunpack.c.l.b16 %v1247
    %v1280 = vunpack.c.l.b16 %v1248
    %v1281 = vunpack.c.l.b16 %v1249
    %v1282 = vunpack.c.l.b16 %v1250
    %v1283 = vunpack.c.l.b16 %v1251
    %v1284 = vunpack.c.l.b16 %v1252
    %v1285 = vunpack.c.l.b16 %v1253
    %v1286 = vunpack.c.l.b16 %v1254
    %v1287 = vunpack.c.l.b16 %v1255
    %v1288 = vpack.c.b16 %v1273, %v1272
    %v1289 = vpack.c.b16 %v1275, %v1274
    %v1290 = vpack.c.b16 %v1277, %v1276
    %v1291 = vpack.c.b16 %v1279, %v1278
    %v1292 = vpack.c.b16 %v1281, %v1280
    %v1293 = vpack.c.b16 %v1283, %v1282
    %v1294 = vpack.c.b16 %v1285, %v1284
    %v1295 = vpack.c.b16 %v1287, %v1286
    %1304 = vmatprep.subr.bf16.mxu0 0
    %1305 = vmatpush1.bf16.msra.mxu0 %v1288
    %1306 = vmatprep.subr.bf16.mxu0 0
    %1307 = vmatpush1.bf16.msra.mxu0 %v1289
    %1308 = vmatprep.subr.bf16.mxu0 0
    %1309 = vmatpush1.bf16.msra.mxu0 %v1290
    %1310 = vmatprep.subr.bf16.mxu0 0
    %1311 = vmatpush1.bf16.msra.mxu0 %v1291
    %1312 = vmatprep.subr.bf16.mxu0 0
    %1313 = vmatpush1.bf16.msra.mxu0 %v1292
    %1314 = vmatprep.subr.bf16.mxu0 0
    %1315 = vmatpush1.bf16.msra.mxu0 %v1293
    %1316 = vmatprep.subr.bf16.mxu0 0
    %1317 = vmatpush1.bf16.msra.mxu0 %v1294
    %1318 = vmatprep.subr.bf16.mxu0 0
    %1319 = vmatpush1.bf16.msra.mxu0 %v1295
    %1320 = vmatprep.subr.bf16.mxu0 0
    %1321 = vmatpush1.bf16.msra.mxu0 0
    %1322 = vmatprep.subr.bf16.mxu0 0
    %1323 = vmatpush1.bf16.msra.mxu0 0
    %1324 = vmatprep.subr.bf16.mxu0 0
    %1325 = vmatpush1.bf16.msra.mxu0 0
    %1326 = vmatprep.subr.bf16.mxu0 0
    %1327 = vmatpush1.bf16.msra.mxu0 0
    %1328 = vmatprep.subr.bf16.mxu0 0
    %1329 = vmatpush1.bf16.msra.mxu0 0
    %1330 = vmatprep.subr.bf16.mxu0 0
    %1331 = vmatpush1.bf16.msra.mxu0 0
    %1332 = vmatprep.subr.bf16.mxu0 0
    %1333 = vmatpush1.bf16.msra.mxu0 0
    %1334 = vmatprep.subr.bf16.mxu0 0
    %1335 = vmatpush1.bf16.msra.mxu0 0
    %1336 = vmatprep.mubr.bf16.mxu0 0
    %1337 = vmatmul.mubr.bf16.gmra.mrb[0].mxu0 %v1231
    %v1338 = vpop.f32.mrb[0].mxu0
    %v1339 = vadd.f32 0.0, %v1338
    %v1340 = vpop.f32.mrb[0].mxu0
    %v1341 = vpop.f32.mrb[0].mxu0
    %v1342 = vadd.f32 0.0, %v1341
    %v1343 = vpop.f32.mrb[0].mxu0
    %1344 = vmatprep.mubr.bf16.mxu0 0
    %1345 = vmatmul.mubr.bf16.gmra.mrb[0].mxu0 %v1232
    %v1346 = vpop.f32.mrb[0].mxu0
    %v1347 = vadd.f32 0.0, %v1346
    %v1348 = vpop.f32.mrb[0].mxu0
    %v1349 = vpop.f32.mrb[0].mxu0
    %v1350 = vadd.f32 0.0, %v1349
    %v1351 = vpop.f32.mrb[0].mxu0
    %1352 = vmatprep.mubr.bf16.mxu0 0
    %1353 = vmatmul.mubr.bf16.gmra.mrb[0].mxu0 %v1233
    %v1354 = vpop.f32.mrb[0].mxu0
    %v1355 = vadd.f32 0.0, %v1354
    %v1356 = vpop.f32.mrb[0].mxu0
    %v1357 = vpop.f32.mrb[0].mxu0
    %v1358 = vadd.f32 0.0, %v1357
    %v1359 = vpop.f32.mrb[0].mxu0
    %1360 = vmatprep.mubr.bf16.mxu0 0
    %1361 = vmatmul.mubr.bf16.gmra.mrb[0].mxu0 %v1234
    %v1362 = vpop.f32.mrb[0].mxu0
    %v1363 = vadd.f32 0.0, %v1362
    %v1364 = vpop.f32.mrb[0].mxu0
    %v1365 = vpop.f32.mrb[0].mxu0
    %v1366 = vadd.f32 0.0, %v1365
    %v1367 = vpop.f32.mrb[0].mxu0
    %1368 = vmatprep.mubr.bf16.mxu0 0
    %1369 = vmatmul.mubr.bf16.gmra.mrb[0].mxu0 %v1235
    %v1370 = vpop.f32.mrb[0].mxu0
    %v1371 = vadd.f32 0.0, %v1370
    %v1372 = vpop.f32.mrb[0].mxu0
    %v1373 = vpop.f32.mrb[0].mxu0
    %v1374 = vadd.f32 0.0, %v1373
    %v1375 = vpop.f32.mrb[0].mxu0
    %1376 = vmatprep.mubr.bf16.mxu0 0
    %1377 = vmatmul.mubr.bf16.gmra.mrb[0].mxu0 %v1236
    %v1378 = vpop.f32.mrb[0].mxu0
    %v1379 = vadd.f32 0.0, %v1378
    %v1380 = vpop.f32.mrb[0].mxu0
    %v1381 = vpop.f32.mrb[0].mxu0
    %v1382 = vadd.f32 0.0, %v1381
    %v1383 = vpop.f32.mrb[0].mxu0
    %1384 = vmatprep.mubr.bf16.mxu0 0
    %1385 = vmatmul.mubr.bf16.gmra.mrb[0].mxu0 %v1237
    %v1386 = vpop.f32.mrb[0].mxu0
    %v1387 = vadd.f32 0.0, %v1386
    %v1388 = vpop.f32.mrb[0].mxu0
    %v1389 = vpop.f32.mrb[0].mxu0
    %v1390 = vadd.f32 0.0, %v1389
    %v1391 = vpop.f32.mrb[0].mxu0
    %1392 = vmatprep.mubr.bf16.mxu0 0
    %1393 = vmatmul.mubr.bf16.gmra.mrb[0].mxu0 %v1238
    %v1394 = vpop.f32.mrb[0].mxu0
    %v1395 = vadd.f32 0.0, %v1394
    %v1396 = vpop.f32.mrb[0].mxu0
    %v1397 = vpop.f32.mrb[0].mxu0
    %v1398 = vadd.f32 0.0, %v1397
    %v1399 = vpop.f32.mrb[0].mxu0
    %1400 = vdwg.mxu0
    %s1401 = scalar_lea.vmem %s3, 2
    %v1402 = vld [vmem:[%s1401] sm:$0x1]
    %v1403 = vrot.slane %v1339, 1
    %v1404 = vrot.slane %v1342, 1
    %v1405 = vrot.slane %v1347, 1
    %v1406 = vrot.slane %v1350, 1
    %v1407 = vrot.slane %v1355, 1
    %v1408 = vrot.slane %v1358, 1
    %v1409 = vrot.slane %v1363, 1
    %v1410 = vrot.slane %v1366, 1
    %v1411 = vrot.slane %v1371, 1
    %v1412 = vrot.slane %v1374, 1
    %v1413 = vrot.slane %v1379, 1
    %v1414 = vrot.slane %v1382, 1
    %v1415 = vrot.slane %v1387, 1
    %v1416 = vrot.slane %v1390, 1
    %v1417 = vrot.slane %v1395, 1
    %v1418 = vrot.slane %v1398, 1
    %v1419 = vsel %vm614, %v1417, %v1418
    %v1420 = vsel %vm614, %v1416, %v1417
    %v1421 = vsel %vm614, %v1415, %v1416
    %v1422 = vsel %vm614, %v1414, %v1415
    %v1423 = vsel %vm614, %v1413, %v1414
    %v1424 = vsel %vm614, %v1412, %v1413
    %v1425 = vsel %vm614, %v1411, %v1412
    %v1426 = vsel %vm614, %v1410, %v1411
    %v1427 = vsel %vm614, %v1409, %v1410
    %v1428 = vsel %vm614, %v1408, %v1409
    %v1429 = vsel %vm614, %v1407, %v1408
    %v1430 = vsel %vm614, %v1406, %v1407
    %v1431 = vsel %vm614, %v1405, %v1406
    %v1432 = vsel %vm614, %v1404, %v1405
    %v1433 = vsel %vm614, %v1403, %v1404
    %v1434 = vsel %vm614, %v1418, %v1403
    %v1435 = vsel %vm326, 0.0, %v1433
    %v1436 = vsel %vm327, 0.0, %v1432
    %v1437 = vsel %vm326, 0.0, %v1431
    %v1438 = vsel %vm327, 0.0, %v1430
    %v1439 = vsel %vm326, 0.0, %v1429
    %v1440 = vsel %vm327, 0.0, %v1428
    %v1441 = vsel %vm326, 0.0, %v1427
    %v1442 = vsel %vm327, 0.0, %v1426
    %v1443 = vsel %vm326, 0.0, %v1425
    %v1444 = vsel %vm327, 0.0, %v1424
    %v1445 = vsel %vm326, 0.0, %v1423
    %v1446 = vsel %vm327, 0.0, %v1422
    %v1447 = vsel %vm326, 0.0, %v1421
    %v1448 = vsel %vm327, 0.0, %v1420
    %v1449 = vsel %vm326, 0.0, %v1419
    %v1450 = vsel %vm327, 0.0, %v1434
    %1451 = vrot.lane.b32.xlu0 %v1435, 64
    %v1452 = vpop.permute.xlu0 %1451
    %1453 = vrot.lane.b32.xlu0 %v1436, 64
    %v1454 = vpop.permute.xlu0 %1453
    %1455 = vrot.lane.b32.xlu0 %v1437, 64
    %v1456 = vpop.permute.xlu0 %1455
    %1457 = vrot.lane.b32.xlu0 %v1438, 64
    %v1458 = vpop.permute.xlu0 %1457
    %1459 = vrot.lane.b32.xlu0 %v1439, 64
    %v1460 = vpop.permute.xlu0 %1459
    %1461 = vrot.lane.b32.xlu0 %v1440, 64
    %v1462 = vpop.permute.xlu0 %1461
    %1463 = vrot.lane.b32.xlu0 %v1441, 64
    %v1464 = vpop.permute.xlu0 %1463
    %1465 = vrot.lane.b32.xlu0 %v1442, 64
    %v1466 = vpop.permute.xlu0 %1465
    %1467 = vrot.lane.b32.xlu0 %v1443, 64
    %v1468 = vpop.permute.xlu0 %1467
    %1469 = vrot.lane.b32.xlu0 %v1444, 64
    %v1470 = vpop.permute.xlu0 %1469
    %1471 = vrot.lane.b32.xlu0 %v1445, 64
    %v1472 = vpop.permute.xlu0 %1471
    %1473 = vrot.lane.b32.xlu0 %v1446, 64
    %v1474 = vpop.permute.xlu0 %1473
    %1475 = vrot.lane.b32.xlu0 %v1447, 64
    %v1476 = vpop.permute.xlu0 %1475
    %1477 = vrot.lane.b32.xlu0 %v1448, 64
    %v1478 = vpop.permute.xlu0 %1477
    %1479 = vrot.lane.b32.xlu0 %v1449, 64
    %v1480 = vpop.permute.xlu0 %1479
    %1481 = vrot.lane.b32.xlu0 %v1450, 64
    %v1482 = vpop.permute.xlu0 %1481
    %v1483 = vadd.f32 %v1339, %v1452
    %v1484 = vadd.f32 %v1342, %v1454
    %v1485 = vadd.f32 %v1347, %v1456
    %v1486 = vadd.f32 %v1350, %v1458
    %v1487 = vadd.f32 %v1355, %v1460
    %v1488 = vadd.f32 %v1358, %v1462
    %v1489 = vadd.f32 %v1363, %v1464
    %v1490 = vadd.f32 %v1366, %v1466
    %v1491 = vadd.f32 %v1371, %v1468
    %v1492 = vadd.f32 %v1374, %v1470
    %v1493 = vadd.f32 %v1379, %v1472
    %v1494 = vadd.f32 %v1382, %v1474
    %v1495 = vadd.f32 %v1387, %v1476
    %v1496 = vadd.f32 %v1390, %v1478
    %v1497 = vadd.f32 %v1395, %v1480
    %v1498 = vadd.f32 %v1398, %v1482
    %v1500 = vlaneseq
    %v1501 = vshrl.u32 %v1500, 7
    %v1502 = vsub.s32 0, %v1501
    %v1503 = vrot.slane %v1402, %v1502
    %v1505 = vadd.f32 %v1483, %v1503
    %v1506 = vadd.f32 %v1484, %v1503
    %v1507 = vadd.f32 %v1485, %v1503
    %v1508 = vadd.f32 %v1486, %v1503
    %v1509 = vadd.f32 %v1487, %v1503
    %v1510 = vadd.f32 %v1488, %v1503
    %v1511 = vadd.f32 %v1489, %v1503
    %v1512 = vadd.f32 %v1490, %v1503
    %v1513 = vadd.f32 %v1491, %v1503
    %v1514 = vadd.f32 %v1492, %v1503
    %v1515 = vadd.f32 %v1493, %v1503
    %v1516 = vadd.f32 %v1494, %v1503
    %v1517 = vadd.f32 %v1495, %v1503
    %v1518 = vadd.f32 %v1496, %v1503
    %v1519 = vadd.f32 %v1497, %v1503
    %v1520 = vadd.f32 %v1498, %v1503
    %v1521 = vmax.f32 %v1505, 0.0
    %v1522 = vmax.f32 %v1506, 0.0
    %v1523 = vmax.f32 %v1507, 0.0
    %v1524 = vmax.f32 %v1508, 0.0
    %v1525 = vmax.f32 %v1509, 0.0
    %v1526 = vmax.f32 %v1510, 0.0
    %v1527 = vmax.f32 %v1511, 0.0
    %v1528 = vmax.f32 %v1512, 0.0
    %v1529 = vmax.f32 %v1513, 0.0
    %v1530 = vmax.f32 %v1514, 0.0
    %v1531 = vmax.f32 %v1515, 0.0
    %v1532 = vmax.f32 %v1516, 0.0
    %v1533 = vmax.f32 %v1517, 0.0
    %v1534 = vmax.f32 %v1518, 0.0
    %v1535 = vmax.f32 %v1519, 0.0
    %v1536 = vmax.f32 %v1520, 0.0
    %v1537 = vrot.slane %v1521, 7
    %v1538 = vrot.slane %v1522, 7
    %v1539 = vrot.slane %v1523, 7
    %v1540 = vrot.slane %v1524, 7
    %v1541 = vrot.slane %v1525, 7
    %v1542 = vrot.slane %v1526, 7
    %v1543 = vrot.slane %v1527, 7
    %v1544 = vrot.slane %v1528, 7
    %v1545 = vrot.slane %v1529, 7
    %v1546 = vrot.slane %v1530, 7
    %v1547 = vrot.slane %v1531, 7
    %v1548 = vrot.slane %v1532, 7
    %v1549 = vrot.slane %v1533, 7
    %v1550 = vrot.slane %v1534, 7
    %v1551 = vrot.slane %v1535, 7
    %v1552 = vrot.slane %v1536, 7
    %v1553 = vsel %vm347, %v1551, %v1552
    %v1554 = vsel %vm347, %v1550, %v1551
    %v1555 = vsel %vm347, %v1549, %v1550
    %v1556 = vsel %vm347, %v1548, %v1549
    %v1557 = vsel %vm347, %v1547, %v1548
    %v1558 = vsel %vm347, %v1546, %v1547
    %v1559 = vsel %vm347, %v1545, %v1546
    %v1560 = vsel %vm347, %v1544, %v1545
    %v1561 = vsel %vm347, %v1543, %v1544
    %v1562 = vsel %vm347, %v1542, %v1543
    %v1563 = vsel %vm347, %v1541, %v1542
    %v1564 = vsel %vm347, %v1540, %v1541
    %v1565 = vsel %vm347, %v1539, %v1540
    %v1566 = vsel %vm347, %v1538, %v1539
    %v1567 = vsel %vm347, %v1537, %v1538
    %v1568 = vsel %vm347, %v1552, %v1537
    %v1569 = vsel %vm324, 0.0, %v1568
    %v1570 = vsel %vm325, 0.0, %v1567
    %v1571 = vsel %vm324, 0.0, %v1566
    %v1572 = vsel %vm325, 0.0, %v1565
    %v1573 = vsel %vm324, 0.0, %v1564
    %v1574 = vsel %vm325, 0.0, %v1563
    %v1575 = vsel %vm324, 0.0, %v1562
    %v1576 = vsel %vm325, 0.0, %v1561
    %v1577 = vsel %vm324, 0.0, %v1560
    %v1578 = vsel %vm325, 0.0, %v1559
    %v1579 = vsel %vm324, 0.0, %v1558
    %v1580 = vsel %vm325, 0.0, %v1557
    %v1581 = vsel %vm324, 0.0, %v1556
    %v1582 = vsel %vm325, 0.0, %v1555
    %v1583 = vsel %vm324, 0.0, %v1554
    %v1584 = vsel %vm325, 0.0, %v1553
    %1585 = vrot.lane.b32.xlu0 %v1569, 64
    %v1586 = vpop.permute.xlu0 %1585
    %1587 = vrot.lane.b32.xlu0 %v1570, 64
    %v1588 = vpop.permute.xlu0 %1587
    %1589 = vrot.lane.b32.xlu0 %v1571, 64
    %v1590 = vpop.permute.xlu0 %1589
    %1591 = vrot.lane.b32.xlu0 %v1572, 64
    %v1592 = vpop.permute.xlu0 %1591
    %1593 = vrot.lane.b32.xlu0 %v1573, 64
    %v1594 = vpop.permute.xlu0 %1593
    %1595 = vrot.lane.b32.xlu0 %v1574, 64
    %v1596 = vpop.permute.xlu0 %1595
    %1597 = vrot.lane.b32.xlu0 %v1575, 64
    %v1598 = vpop.permute.xlu0 %1597
    %1599 = vrot.lane.b32.xlu0 %v1576, 64
    %v1600 = vpop.permute.xlu0 %1599
    %1601 = vrot.lane.b32.xlu0 %v1577, 64
    %v1602 = vpop.permute.xlu0 %1601
    %1603 = vrot.lane.b32.xlu0 %v1578, 64
    %v1604 = vpop.permute.xlu0 %1603
    %1605 = vrot.lane.b32.xlu0 %v1579, 64
    %v1606 = vpop.permute.xlu0 %1605
    %1607 = vrot.lane.b32.xlu0 %v1580, 64
    %v1608 = vpop.permute.xlu0 %1607
    %1609 = vrot.lane.b32.xlu0 %v1581, 64
    %v1610 = vpop.permute.xlu0 %1609
    %1611 = vrot.lane.b32.xlu0 %v1582, 64
    %v1612 = vpop.permute.xlu0 %1611
    %1613 = vrot.lane.b32.xlu0 %v1583, 64
    %v1614 = vpop.permute.xlu0 %1613
    %1615 = vrot.lane.b32.xlu0 %v1584, 64
    %v1616 = vpop.permute.xlu0 %1615
    %v1617 = vsel %vm330, %v1521, %v1586
    %v1618 = vsel %vm330, %v1522, %v1588
    %v1619 = vsel %vm330, %v1523, %v1590
    %v1620 = vsel %vm330, %v1524, %v1592
    %v1621 = vsel %vm330, %v1525, %v1594
    %v1622 = vsel %vm330, %v1526, %v1596
    %v1623 = vsel %vm330, %v1527, %v1598
    %v1624 = vsel %vm330, %v1528, %v1600
    %v1625 = vsel %vm330, %v1529, %v1602
    %v1626 = vsel %vm330, %v1530, %v1604
    %v1627 = vsel %vm330, %v1531, %v1606
    %v1628 = vsel %vm330, %v1532, %v1608
    %v1629 = vsel %vm330, %v1533, %v1610
    %v1630 = vsel %vm330, %v1534, %v1612
    %v1631 = vsel %vm330, %v1535, %v1614
    %v1632 = vsel %vm330, %v1536, %v1616
    %v1633 = vpack.c.bf16 %v1618, %v1617
    %v1634 = vpack.c.bf16 %v1620, %v1619
    %v1635 = vpack.c.bf16 %v1622, %v1621
    %v1636 = vpack.c.bf16 %v1624, %v1623
    %v1637 = vpack.c.bf16 %v1626, %v1625
    %v1638 = vpack.c.bf16 %v1628, %v1627
    %v1639 = vpack.c.bf16 %v1630, %v1629
    %v1640 = vpack.c.bf16 %v1632, %v1631
    %s1641 = scalar_lea.vmem [#allocation7], 768
    %v1642 = vld [vmem:[%s1641] sm:$0xff]
    %v1643 = vld [vmem:[%s1641 + $0x8] sm:$0xff]
    %v1644 = vld [vmem:[%s1641 + $0x10] sm:$0xff]
    %v1645 = vld [vmem:[%s1641 + $0x18] sm:$0xff]
    %v1646 = vld [vmem:[%s1641 + $0x20] sm:$0xff]
    %v1647 = vld [vmem:[%s1641 + $0x28] sm:$0xff]
    %v1648 = vld [vmem:[%s1641 + $0x30] sm:$0xff]
    %v1649 = vld [vmem:[%s1641 + $0x38] sm:$0xff]
    %v1650 = vld [vmem:[%s1641 + $0x40] sm:$0xff]
    %v1651 = vld [vmem:[%s1641 + $0x48] sm:$0xff]
    %v1652 = vld [vmem:[%s1641 + $0x50] sm:$0xff]
    %v1653 = vld [vmem:[%s1641 + $0x58] sm:$0xff]
    %v1654 = vld [vmem:[%s1641 + $0x60] sm:$0xff]
    %v1655 = vld [vmem:[%s1641 + $0x68] sm:$0xff]
    %v1656 = vld [vmem:[%s1641 + $0x70] sm:$0xff]
    %v1657 = vld [vmem:[%s1641 + $0x78] sm:$0xff]
    %v1674 = vunpack.c.l.b16 %v1642
    %v1675 = vunpack.c.h.b16 %v1642
    %v1676 = vunpack.c.l.b16 %v1643
    %v1677 = vunpack.c.h.b16 %v1643
    %v1678 = vunpack.c.l.b16 %v1644
    %v1679 = vunpack.c.h.b16 %v1644
    %v1680 = vunpack.c.l.b16 %v1645
    %v1681 = vunpack.c.h.b16 %v1645
    %v1682 = vunpack.c.l.b16 %v1646
    %v1683 = vunpack.c.h.b16 %v1646
    %v1684 = vunpack.c.l.b16 %v1647
    %v1685 = vunpack.c.h.b16 %v1647
    %v1686 = vunpack.c.l.b16 %v1648
    %v1687 = vunpack.c.h.b16 %v1648
    %v1688 = vunpack.c.l.b16 %v1649
    %v1689 = vunpack.c.h.b16 %v1649
    %v1690 = vunpack.c.l.b16 %v1650
    %v1691 = vunpack.c.h.b16 %v1650
    %v1692 = vunpack.c.l.b16 %v1651
    %v1693 = vunpack.c.h.b16 %v1651
    %v1694 = vunpack.c.l.b16 %v1652
    %v1695 = vunpack.c.h.b16 %v1652
    %v1696 = vunpack.c.l.b16 %v1653
    %v1697 = vunpack.c.h.b16 %v1653
    %v1698 = vunpack.c.l.b16 %v1654
    %v1699 = vunpack.c.h.b16 %v1654
    %v1700 = vunpack.c.l.b16 %v1655
    %v1701 = vunpack.c.h.b16 %v1655
    %v1702 = vunpack.c.l.b16 %v1656
    %v1703 = vunpack.c.h.b16 %v1656
    %v1704 = vunpack.c.l.b16 %v1657
    %v1705 = vunpack.c.h.b16 %v1657
    %v1706 = vpack.c.b16 %v1676, %v1674
    %v1707 = vpack.c.b16 %v1677, %v1675
    %v1708 = vpack.c.b16 %v1680, %v1678
    %v1709 = vpack.c.b16 %v1681, %v1679
    %v1710 = vpack.c.b16 %v1684, %v1682
    %v1711 = vpack.c.b16 %v1685, %v1683
    %v1712 = vpack.c.b16 %v1688, %v1686
    %v1713 = vpack.c.b16 %v1689, %v1687
    %v1714 = vpack.c.b16 %v1692, %v1690
    %v1715 = vpack.c.b16 %v1693, %v1691
    %v1716 = vpack.c.b16 %v1696, %v1694
    %v1717 = vpack.c.b16 %v1697, %v1695
    %v1718 = vpack.c.b16 %v1700, %v1698
    %v1719 = vpack.c.b16 %v1701, %v1699
    %v1720 = vpack.c.b16 %v1704, %v1702
    %v1721 = vpack.c.b16 %v1705, %v1703
    %1738 = vmatprep.subr.bf16.mxu0 %v1707
    %1739 = vmatpush1.bf16.msra.mxu0 %v1706
    %1740 = vmatprep.subr.bf16.mxu0 %v1709
    %1741 = vmatpush1.bf16.msra.mxu0 %v1708
    %1742 = vmatprep.subr.bf16.mxu0 %v1711
    %1743 = vmatpush1.bf16.msra.mxu0 %v1710
    %1744 = vmatprep.subr.bf16.mxu0 %v1713
    %1745 = vmatpush1.bf16.msra.mxu0 %v1712
    %1746 = vmatprep.subr.bf16.mxu0 %v1715
    %1747 = vmatpush1.bf16.msra.mxu0 %v1714
    %1748 = vmatprep.subr.bf16.mxu0 %v1717
    %1749 = vmatpush1.bf16.msra.mxu0 %v1716
    %1750 = vmatprep.subr.bf16.mxu0 %v1719
    %1751 = vmatpush1.bf16.msra.mxu0 %v1718
    %1752 = vmatprep.subr.bf16.mxu0 %v1721
    %1753 = vmatpush1.bf16.msra.mxu0 %v1720
    %1754 = vmatprep.subr.bf16.mxu0 0
    %1755 = vmatpush1.bf16.msra.mxu0 0
    %1756 = vmatprep.subr.bf16.mxu0 0
    %1757 = vmatpush1.bf16.msra.mxu0 0
    %1758 = vmatprep.subr.bf16.mxu0 0
    %1759 = vmatpush1.bf16.msra.mxu0 0
    %1760 = vmatprep.subr.bf16.mxu0 0
    %1761 = vmatpush1.bf16.msra.mxu0 0
    %1762 = vmatprep.subr.bf16.mxu0 0
    %1763 = vmatpush1.bf16.msra.mxu0 0
    %1764 = vmatprep.subr.bf16.mxu0 0
    %1765 = vmatpush1.bf16.msra.mxu0 0
    %1766 = vmatprep.subr.bf16.mxu0 0
    %1767 = vmatpush1.bf16.msra.mxu0 0
    %1768 = vmatprep.subr.bf16.mxu0 0
    %1769 = vmatpush1.bf16.msra.mxu0 0
    %1770 = vmatprep.mubr.bf16.mxu0 0
    %1771 = vmatmul.mubr.bf16.gmra.mrb[0].mxu0 %v1633
    %v1772 = vpop.f32.mrb[0].mxu0
    %v1773 = vadd.f32 0.0, %v1772
    %v1774 = vpop.f32.mrb[0].mxu0
    %v1775 = vadd.f32 0.0, %v1774
    %v1776 = vpop.f32.mrb[0].mxu0
    %v1777 = vadd.f32 0.0, %v1776
    %v1778 = vpop.f32.mrb[0].mxu0
    %v1779 = vadd.f32 0.0, %v1778
    %1780 = vmatprep.mubr.bf16.mxu0 0
    %1781 = vmatmul.mubr.bf16.gmra.mrb[0].mxu0 %v1634
    %v1782 = vpop.f32.mrb[0].mxu0
    %v1783 = vadd.f32 0.0, %v1782
    %v1784 = vpop.f32.mrb[0].mxu0
    %v1785 = vadd.f32 0.0, %v1784
    %v1786 = vpop.f32.mrb[0].mxu0
    %v1787 = vadd.f32 0.0, %v1786
    %v1788 = vpop.f32.mrb[0].mxu0
    %v1789 = vadd.f32 0.0, %v1788
    %1790 = vmatprep.mubr.bf16.mxu0 0
    %1791 = vmatmul.mubr.bf16.gmra.mrb[0].mxu0 %v1635
    %v1792 = vpop.f32.mrb[0].mxu0
    %v1793 = vadd.f32 0.0, %v1792
    %v1794 = vpop.f32.mrb[0].mxu0
    %v1795 = vadd.f32 0.0, %v1794
    %v1796 = vpop.f32.mrb[0].mxu0
    %v1797 = vadd.f32 0.0, %v1796
    %v1798 = vpop.f32.mrb[0].mxu0
    %v1799 = vadd.f32 0.0, %v1798
    %1800 = vmatprep.mubr.bf16.mxu0 0
    %1801 = vmatmul.mubr.bf16.gmra.mrb[0].mxu0 %v1636
    %v1802 = vpop.f32.mrb[0].mxu0
    %v1803 = vadd.f32 0.0, %v1802
    %v1804 = vpop.f32.mrb[0].mxu0
    %v1805 = vadd.f32 0.0, %v1804
    %v1806 = vpop.f32.mrb[0].mxu0
    %v1807 = vadd.f32 0.0, %v1806
    %v1808 = vpop.f32.mrb[0].mxu0
    %v1809 = vadd.f32 0.0, %v1808
    %1810 = vmatprep.mubr.bf16.mxu0 0
    %1811 = vmatmul.mubr.bf16.gmra.mrb[0].mxu0 %v1637
    %v1812 = vpop.f32.mrb[0].mxu0
    %v1813 = vadd.f32 0.0, %v1812
    %v1814 = vpop.f32.mrb[0].mxu0
    %v1815 = vadd.f32 0.0, %v1814
    %v1816 = vpop.f32.mrb[0].mxu0
    %v1817 = vadd.f32 0.0, %v1816
    %v1818 = vpop.f32.mrb[0].mxu0
    %v1819 = vadd.f32 0.0, %v1818
    %1820 = vmatprep.mubr.bf16.mxu0 0
    %1821 = vmatmul.mubr.bf16.gmra.mrb[0].mxu0 %v1638
    %v1822 = vpop.f32.mrb[0].mxu0
    %v1823 = vadd.f32 0.0, %v1822
    %v1824 = vpop.f32.mrb[0].mxu0
    %v1825 = vadd.f32 0.0, %v1824
    %v1826 = vpop.f32.mrb[0].mxu0
    %v1827 = vadd.f32 0.0, %v1826
    %v1828 = vpop.f32.mrb[0].mxu0
    %v1829 = vadd.f32 0.0, %v1828
    %1830 = vmatprep.mubr.bf16.mxu0 0
    %1831 = vmatmul.mubr.bf16.gmra.mrb[0].mxu0 %v1639
    %v1832 = vpop.f32.mrb[0].mxu0
    %v1833 = vadd.f32 0.0, %v1832
    %v1834 = vpop.f32.mrb[0].mxu0
    %v1835 = vadd.f32 0.0, %v1834
    %v1836 = vpop.f32.mrb[0].mxu0
    %v1837 = vadd.f32 0.0, %v1836
    %v1838 = vpop.f32.mrb[0].mxu0
    %v1839 = vadd.f32 0.0, %v1838
    %1840 = vmatprep.mubr.bf16.mxu0 0
    %1841 = vmatmul.mubr.bf16.gmra.mrb[0].mxu0 %v1640
    %v1842 = vpop.f32.mrb[0].mxu0
    %v1843 = vadd.f32 0.0, %v1842
    %v1844 = vpop.f32.mrb[0].mxu0
    %v1845 = vadd.f32 0.0, %v1844
    %v1846 = vpop.f32.mrb[0].mxu0
    %v1847 = vadd.f32 0.0, %v1846
    %v1848 = vpop.f32.mrb[0].mxu0
    %v1849 = vadd.f32 0.0, %v1848
    %1850 = vdwg.mxu0
    %s1851 = scalar_lea.vmem %s3, 3
    %v1852 = vld [vmem:[%s1851] sm:$0x1]
    %v1853 = vrot.slane %v1775, 1
    %v1854 = vrot.slane %v1779, 1
    %v1855 = vrot.slane %v1785, 1
    %v1856 = vrot.slane %v1789, 1
    %v1857 = vrot.slane %v1795, 1
    %v1858 = vrot.slane %v1799, 1
    %v1859 = vrot.slane %v1805, 1
    %v1860 = vrot.slane %v1809, 1
    %v1861 = vrot.slane %v1815, 1
    %v1862 = vrot.slane %v1819, 1
    %v1863 = vrot.slane %v1825, 1
    %v1864 = vrot.slane %v1829, 1
    %v1865 = vrot.slane %v1835, 1
    %v1866 = vrot.slane %v1839, 1
    %v1867 = vrot.slane %v1845, 1
    %v1868 = vrot.slane %v1849, 1
    %v1869 = vsel %vm614, %v1867, %v1868
    %v1870 = vsel %vm614, %v1866, %v1867
    %v1871 = vsel %vm614, %v1865, %v1866
    %v1872 = vsel %vm614, %v1864, %v1865
    %v1873 = vsel %vm614, %v1863, %v1864
    %v1874 = vsel %vm614, %v1862, %v1863
    %v1875 = vsel %vm614, %v1861, %v1862
    %v1876 = vsel %vm614, %v1860, %v1861
    %v1877 = vsel %vm614, %v1859, %v1860
    %v1878 = vsel %vm614, %v1858, %v1859
    %v1879 = vsel %vm614, %v1857, %v1858
    %v1880 = vsel %vm614, %v1856, %v1857
    %v1881 = vsel %vm614, %v1855, %v1856
    %v1882 = vsel %vm614, %v1854, %v1855
    %v1883 = vsel %vm614, %v1853, %v1854
    %v1884 = vsel %vm614, %v1868, %v1853
    %v1885 = vsel %vm326, 0.0, %v1883
    %v1886 = vsel %vm327, 0.0, %v1882
    %v1887 = vsel %vm326, 0.0, %v1881
    %v1888 = vsel %vm327, 0.0, %v1880
    %v1889 = vsel %vm326, 0.0, %v1879
    %v1890 = vsel %vm327, 0.0, %v1878
    %v1891 = vsel %vm326, 0.0, %v1877
    %v1892 = vsel %vm327, 0.0, %v1876
    %v1893 = vsel %vm326, 0.0, %v1875
    %v1894 = vsel %vm327, 0.0, %v1874
    %v1895 = vsel %vm326, 0.0, %v1873
    %v1896 = vsel %vm327, 0.0, %v1872
    %v1897 = vsel %vm326, 0.0, %v1871
    %v1898 = vsel %vm327, 0.0, %v1870
    %v1899 = vsel %vm326, 0.0, %v1869
    %v1900 = vsel %vm327, 0.0, %v1884
    %v1901 = vadd.f32 %v1773, %v1885
    %v1902 = vadd.f32 %v1777, %v1886
    %v1903 = vadd.f32 %v1783, %v1887
    %v1904 = vadd.f32 %v1787, %v1888
    %v1905 = vadd.f32 %v1793, %v1889
    %v1906 = vadd.f32 %v1797, %v1890
    %v1907 = vadd.f32 %v1803, %v1891
    %v1908 = vadd.f32 %v1807, %v1892
    %v1909 = vadd.f32 %v1813, %v1893
    %v1910 = vadd.f32 %v1817, %v1894
    %v1911 = vadd.f32 %v1823, %v1895
    %v1912 = vadd.f32 %v1827, %v1896
    %v1913 = vadd.f32 %v1833, %v1897
    %v1914 = vadd.f32 %v1837, %v1898
    %v1915 = vadd.f32 %v1843, %v1899
    %v1916 = vadd.f32 %v1847, %v1900
    %v1918 = vlaneseq
    %v1919 = vshrl.u32 %v1918, 7
    %v1920 = vsub.s32 0, %v1919
    %v1921 = vrot.slane %v1852, %v1920
    %v1923 = vadd.f32 %v1901, %v1921
    %v1924 = vadd.f32 %v1902, %v1921
    %v1925 = vadd.f32 %v1903, %v1921
    %v1926 = vadd.f32 %v1904, %v1921
    %v1927 = vadd.f32 %v1905, %v1921
    %v1928 = vadd.f32 %v1906, %v1921
    %v1929 = vadd.f32 %v1907, %v1921
    %v1930 = vadd.f32 %v1908, %v1921
    %v1931 = vadd.f32 %v1909, %v1921
    %v1932 = vadd.f32 %v1910, %v1921
    %v1933 = vadd.f32 %v1911, %v1921
    %v1934 = vadd.f32 %v1912, %v1921
    %v1935 = vadd.f32 %v1913, %v1921
    %v1936 = vadd.f32 %v1914, %v1921
    %v1937 = vadd.f32 %v1915, %v1921
    %v1938 = vadd.f32 %v1916, %v1921
    %v1939 = vmax.f32 %v1923, 0.0
    %v1940 = vmax.f32 %v1924, 0.0
    %v1941 = vmax.f32 %v1925, 0.0
    %v1942 = vmax.f32 %v1926, 0.0
    %v1943 = vmax.f32 %v1927, 0.0
    %v1944 = vmax.f32 %v1928, 0.0
    %v1945 = vmax.f32 %v1929, 0.0
    %v1946 = vmax.f32 %v1930, 0.0
    %v1947 = vmax.f32 %v1931, 0.0
    %v1948 = vmax.f32 %v1932, 0.0
    %v1949 = vmax.f32 %v1933, 0.0
    %v1950 = vmax.f32 %v1934, 0.0
    %v1951 = vmax.f32 %v1935, 0.0
    %v1952 = vmax.f32 %v1936, 0.0
    %v1953 = vmax.f32 %v1937, 0.0
    %v1954 = vmax.f32 %v1938, 0.0
    %v1955 = vrot.slane %v1939, 7
    %v1956 = vrot.slane %v1940, 7
    %v1957 = vrot.slane %v1941, 7
    %v1958 = vrot.slane %v1942, 7
    %v1959 = vrot.slane %v1943, 7
    %v1960 = vrot.slane %v1944, 7
    %v1961 = vrot.slane %v1945, 7
    %v1962 = vrot.slane %v1946, 7
    %v1963 = vrot.slane %v1947, 7
    %v1964 = vrot.slane %v1948, 7
    %v1965 = vrot.slane %v1949, 7
    %v1966 = vrot.slane %v1950, 7
    %v1967 = vrot.slane %v1951, 7
    %v1968 = vrot.slane %v1952, 7
    %v1969 = vrot.slane %v1953, 7
    %v1970 = vrot.slane %v1954, 7
    %v1971 = vsel %vm347, %v1969, %v1970
    %v1972 = vsel %vm347, %v1968, %v1969
    %v1973 = vsel %vm347, %v1967, %v1968
    %v1974 = vsel %vm347, %v1966, %v1967
    %v1975 = vsel %vm347, %v1965, %v1966
    %v1976 = vsel %vm347, %v1964, %v1965
    %v1977 = vsel %vm347, %v1963, %v1964
    %v1978 = vsel %vm347, %v1962, %v1963
    %v1979 = vsel %vm347, %v1961, %v1962
    %v1980 = vsel %vm347, %v1960, %v1961
    %v1981 = vsel %vm347, %v1959, %v1960
    %v1982 = vsel %vm347, %v1958, %v1959
    %v1983 = vsel %vm347, %v1957, %v1958
    %v1984 = vsel %vm347, %v1956, %v1957
    %v1985 = vsel %vm347, %v1955, %v1956
    %v1986 = vsel %vm347, %v1970, %v1955
    %v1987 = vsel %vm324, 0.0, %v1986
    %v1988 = vsel %vm325, 0.0, %v1985
    %v1989 = vsel %vm324, 0.0, %v1984
    %v1990 = vsel %vm325, 0.0, %v1983
    %v1991 = vsel %vm324, 0.0, %v1982
    %v1992 = vsel %vm325, 0.0, %v1981
    %v1993 = vsel %vm324, 0.0, %v1980
    %v1994 = vsel %vm325, 0.0, %v1979
    %v1995 = vsel %vm324, 0.0, %v1978
    %v1996 = vsel %vm325, 0.0, %v1977
    %v1997 = vsel %vm324, 0.0, %v1976
    %v1998 = vsel %vm325, 0.0, %v1975
    %v1999 = vsel %vm324, 0.0, %v1974
    %v2000 = vsel %vm325, 0.0, %v1973
    %v2001 = vsel %vm324, 0.0, %v1972
    %v2002 = vsel %vm325, 0.0, %v1971
    %v2003 = vpack.c.bf16 %v1940, %v1939
    %v2004 = vpack.c.bf16 %v1942, %v1941
    %v2005 = vpack.c.bf16 %v1944, %v1943
    %v2006 = vpack.c.bf16 %v1946, %v1945
    %v2007 = vpack.c.bf16 %v1948, %v1947
    %v2008 = vpack.c.bf16 %v1950, %v1949
    %v2009 = vpack.c.bf16 %v1952, %v1951
    %v2010 = vpack.c.bf16 %v1954, %v1953
    %v2011 = vpack.c.bf16 %v1988, %v1987
    %v2012 = vpack.c.bf16 %v1990, %v1989
    %v2013 = vpack.c.bf16 %v1992, %v1991
    %v2014 = vpack.c.bf16 %v1994, %v1993
    %v2015 = vpack.c.bf16 %v1996, %v1995
    %v2016 = vpack.c.bf16 %v1998, %v1997
    %v2017 = vpack.c.bf16 %v2000, %v1999
    %v2018 = vpack.c.bf16 %v2002, %v2001
    %s2019 = scalar_lea.vmem [#allocation7], 1024
    %v2020 = vld [vmem:[%s2019] sm:$0xff]
    %v2021 = vld [vmem:[%s2019 + $0x8] sm:$0xff]
    %v2022 = vld [vmem:[%s2019 + $0x10] sm:$0xff]
    %v2023 = vld [vmem:[%s2019 + $0x18] sm:$0xff]
    %v2024 = vld [vmem:[%s2019 + $0x20] sm:$0xff]
    %v2025 = vld [vmem:[%s2019 + $0x28] sm:$0xff]
    %v2026 = vld [vmem:[%s2019 + $0x30] sm:$0xff]
    %v2027 = vld [vmem:[%s2019 + $0x38] sm:$0xff]
    %v2028 = vld [vmem:[%s2019 + $0x40] sm:$0xff]
    %v2029 = vld [vmem:[%s2019 + $0x48] sm:$0xff]
    %v2030 = vld [vmem:[%s2019 + $0x50] sm:$0xff]
    %v2031 = vld [vmem:[%s2019 + $0x58] sm:$0xff]
    %v2032 = vld [vmem:[%s2019 + $0x60] sm:$0xff]
    %v2033 = vld [vmem:[%s2019 + $0x68] sm:$0xff]
    %v2034 = vld [vmem:[%s2019 + $0x70] sm:$0xff]
    %v2035 = vld [vmem:[%s2019 + $0x78] sm:$0xff]
    %v2036 = vld [vmem:[%s2019 + $0x80] sm:$0xff]
    %v2037 = vld [vmem:[%s2019 + $0x88] sm:$0xff]
    %v2038 = vld [vmem:[%s2019 + $0x90] sm:$0xff]
    %v2039 = vld [vmem:[%s2019 + $0x98] sm:$0xff]
    %v2040 = vld [vmem:[%s2019 + $0xa0] sm:$0xff]
    %v2041 = vld [vmem:[%s2019 + $0xa8] sm:$0xff]
    %v2042 = vld [vmem:[%s2019 + $0xb0] sm:$0xff]
    %v2043 = vld [vmem:[%s2019 + $0xb8] sm:$0xff]
    %v2044 = vld [vmem:[%s2019 + $0xc0] sm:$0xff]
    %v2045 = vld [vmem:[%s2019 + $0xc8] sm:$0xff]
    %v2046 = vld [vmem:[%s2019 + $0xd0] sm:$0xff]
    %v2047 = vld [vmem:[%s2019 + $0xd8] sm:$0xff]
    %v2048 = vld [vmem:[%s2019 + $0xe0] sm:$0xff]
    %v2049 = vld [vmem:[%s2019 + $0xe8] sm:$0xff]
    %v2050 = vld [vmem:[%s2019 + $0xf0] sm:$0xff]
    %v2051 = vld [vmem:[%s2019 + $0xf8] sm:$0xff]
    %v2084 = vunpack.c.l.b16 %v2020
    %v2085 = vunpack.c.h.b16 %v2020
    %v2086 = vunpack.c.l.b16 %v2021
    %v2087 = vunpack.c.h.b16 %v2021
    %v2088 = vunpack.c.l.b16 %v2022
    %v2089 = vunpack.c.h.b16 %v2022
    %v2090 = vunpack.c.l.b16 %v2023
    %v2091 = vunpack.c.h.b16 %v2023
    %v2092 = vunpack.c.l.b16 %v2024
    %v2093 = vunpack.c.h.b16 %v2024
    %v2094 = vunpack.c.l.b16 %v2025
    %v2095 = vunpack.c.h.b16 %v2025
    %v2096 = vunpack.c.l.b16 %v2026
    %v2097 = vunpack.c.h.b16 %v2026
    %v2098 = vunpack.c.l.b16 %v2027
    %v2099 = vunpack.c.h.b16 %v2027
    %v2100 = vunpack.c.l.b16 %v2028
    %v2101 = vunpack.c.h.b16 %v2028
    %v2102 = vunpack.c.l.b16 %v2029
    %v2103 = vunpack.c.h.b16 %v2029
    %v2104 = vunpack.c.l.b16 %v2030
    %v2105 = vunpack.c.h.b16 %v2030
    %v2106 = vunpack.c.l.b16 %v2031
    %v2107 = vunpack.c.h.b16 %v2031
    %v2108 = vunpack.c.l.b16 %v2032
    %v2109 = vunpack.c.h.b16 %v2032
    %v2110 = vunpack.c.l.b16 %v2033
    %v2111 = vunpack.c.h.b16 %v2033
    %v2112 = vunpack.c.l.b16 %v2034
    %v2113 = vunpack.c.h.b16 %v2034
    %v2114 = vunpack.c.l.b16 %v2035
    %v2115 = vunpack.c.h.b16 %v2035
    %v2116 = vunpack.c.l.b16 %v2036
    %v2117 = vunpack.c.h.b16 %v2036
    %v2118 = vunpack.c.l.b16 %v2037
    %v2119 = vunpack.c.h.b16 %v2037
    %v2120 = vunpack.c.l.b16 %v2038
    %v2121 = vunpack.c.h.b16 %v2038
    %v2122 = vunpack.c.l.b16 %v2039
    %v2123 = vunpack.c.h.b16 %v2039
    %v2124 = vunpack.c.l.b16 %v2040
    %v2125 = vunpack.c.h.b16 %v2040
    %v2126 = vunpack.c.l.b16 %v2041
    %v2127 = vunpack.c.h.b16 %v2041
    %v2128 = vunpack.c.l.b16 %v2042
    %v2129 = vunpack.c.h.b16 %v2042
    %v2130 = vunpack.c.l.b16 %v2043
    %v2131 = vunpack.c.h.b16 %v2043
    %v2132 = vunpack.c.l.b16 %v2044
    %v2133 = vunpack.c.h.b16 %v2044
    %v2134 = vunpack.c.l.b16 %v2045
    %v2135 = vunpack.c.h.b16 %v2045
    %v2136 = vunpack.c.l.b16 %v2046
    %v2137 = vunpack.c.h.b16 %v2046
    %v2138 = vunpack.c.l.b16 %v2047
    %v2139 = vunpack.c.h.b16 %v2047
    %v2140 = vunpack.c.l.b16 %v2048
    %v2141 = vunpack.c.h.b16 %v2048
    %v2142 = vunpack.c.l.b16 %v2049
    %v2143 = vunpack.c.h.b16 %v2049
    %v2144 = vunpack.c.l.b16 %v2050
    %v2145 = vunpack.c.h.b16 %v2050
    %v2146 = vunpack.c.l.b16 %v2051
    %v2147 = vunpack.c.h.b16 %v2051
    %v2148 = vpack.c.b16 %v2086, %v2084
    %v2149 = vpack.c.b16 %v2087, %v2085
    %v2150 = vpack.c.b16 %v2090, %v2088
    %v2151 = vpack.c.b16 %v2091, %v2089
    %v2152 = vpack.c.b16 %v2094, %v2092
    %v2153 = vpack.c.b16 %v2095, %v2093
    %v2154 = vpack.c.b16 %v2098, %v2096
    %v2155 = vpack.c.b16 %v2099, %v2097
    %v2156 = vpack.c.b16 %v2102, %v2100
    %v2157 = vpack.c.b16 %v2103, %v2101
    %v2158 = vpack.c.b16 %v2106, %v2104
    %v2159 = vpack.c.b16 %v2107, %v2105
    %v2160 = vpack.c.b16 %v2110, %v2108
    %v2161 = vpack.c.b16 %v2111, %v2109
    %v2162 = vpack.c.b16 %v2114, %v2112
    %v2163 = vpack.c.b16 %v2115, %v2113
    %v2164 = vpack.c.b16 %v2118, %v2116
    %v2165 = vpack.c.b16 %v2119, %v2117
    %v2166 = vpack.c.b16 %v2122, %v2120
    %v2167 = vpack.c.b16 %v2123, %v2121
    %v2168 = vpack.c.b16 %v2126, %v2124
    %v2169 = vpack.c.b16 %v2127, %v2125
    %v2170 = vpack.c.b16 %v2130, %v2128
    %v2171 = vpack.c.b16 %v2131, %v2129
    %v2172 = vpack.c.b16 %v2134, %v2132
    %v2173 = vpack.c.b16 %v2135, %v2133
    %v2174 = vpack.c.b16 %v2138, %v2136
    %v2175 = vpack.c.b16 %v2139, %v2137
    %v2176 = vpack.c.b16 %v2142, %v2140
    %v2177 = vpack.c.b16 %v2143, %v2141
    %v2178 = vpack.c.b16 %v2146, %v2144
    %v2179 = vpack.c.b16 %v2147, %v2145
    %2212 = vmatprep.subr.bf16.mxu0 %v2149
    %2213 = vmatpush1.bf16.msra.mxu0 %v2148
    %2214 = vmatprep.subr.bf16.mxu0 %v2151
    %2215 = vmatpush1.bf16.msra.mxu0 %v2150
    %2216 = vmatprep.subr.bf16.mxu0 %v2153
    %2217 = vmatpush1.bf16.msra.mxu0 %v2152
    %2218 = vmatprep.subr.bf16.mxu0 %v2155
    %2219 = vmatpush1.bf16.msra.mxu0 %v2154
    %2220 = vmatprep.subr.bf16.mxu0 %v2157
    %2221 = vmatpush1.bf16.msra.mxu0 %v2156
    %2222 = vmatprep.subr.bf16.mxu0 %v2159
    %2223 = vmatpush1.bf16.msra.mxu0 %v2158
    %2224 = vmatprep.subr.bf16.mxu0 %v2161
    %2225 = vmatpush1.bf16.msra.mxu0 %v2160
    %2226 = vmatprep.subr.bf16.mxu0 %v2163
    %2227 = vmatpush1.bf16.msra.mxu0 %v2162
    %2228 = vmatprep.subr.bf16.mxu0 %v2165
    %2229 = vmatpush1.bf16.msra.mxu0 %v2164
    %2230 = vmatprep.subr.bf16.mxu0 %v2167
    %2231 = vmatpush1.bf16.msra.mxu0 %v2166
    %2232 = vmatprep.subr.bf16.mxu0 %v2169
    %2233 = vmatpush1.bf16.msra.mxu0 %v2168
    %2234 = vmatprep.subr.bf16.mxu0 %v2171
    %2235 = vmatpush1.bf16.msra.mxu0 %v2170
    %2236 = vmatprep.subr.bf16.mxu0 %v2173
    %2237 = vmatpush1.bf16.msra.mxu0 %v2172
    %2238 = vmatprep.subr.bf16.mxu0 %v2175
    %2239 = vmatpush1.bf16.msra.mxu0 %v2174
    %2240 = vmatprep.subr.bf16.mxu0 %v2177
    %2241 = vmatpush1.bf16.msra.mxu0 %v2176
    %2242 = vmatprep.subr.bf16.mxu0 %v2179
    %2243 = vmatpush1.bf16.msra.mxu0 %v2178
    %2244 = vmatprep.mubr.bf16.mxu0 %v2011
    %2245 = vmatmul.mubr.bf16.gmra.mrb[0].mxu0 %v2003
    %v2246 = vpop.f32.mrb[0].mxu0
    %v2247 = vadd.f32 0.0, %v2246
    %v2248 = vpop.f32.mrb[0].mxu0
    %v2249 = vadd.f32 0.0, %v2248
    %v2250 = vpop.f32.mrb[0].mxu0
    %v2251 = vadd.f32 0.0, %v2250
    %v2252 = vpop.f32.mrb[0].mxu0
    %v2253 = vadd.f32 0.0, %v2252
    %2254 = vmatprep.mubr.bf16.mxu0 %v2012
    %2255 = vmatmul.mubr.bf16.gmra.mrb[0].mxu0 %v2004
    %v2256 = vpop.f32.mrb[0].mxu0
    %v2257 = vadd.f32 0.0, %v2256
    %v2258 = vpop.f32.mrb[0].mxu0
    %v2259 = vadd.f32 0.0, %v2258
    %v2260 = vpop.f32.mrb[0].mxu0
    %v2261 = vadd.f32 0.0, %v2260
    %v2262 = vpop.f32.mrb[0].mxu0
    %v2263 = vadd.f32 0.0, %v2262
    %2264 = vmatprep.mubr.bf16.mxu0 %v2013
    %2265 = vmatmul.mubr.bf16.gmra.mrb[0].mxu0 %v2005
    %v2266 = vpop.f32.mrb[0].mxu0
    %v2267 = vadd.f32 0.0, %v2266
    %v2268 = vpop.f32.mrb[0].mxu0
    %v2269 = vadd.f32 0.0, %v2268
    %v2270 = vpop.f32.mrb[0].mxu0
    %v2271 = vadd.f32 0.0, %v2270
    %v2272 = vpop.f32.mrb[0].mxu0
    %v2273 = vadd.f32 0.0, %v2272
    %2274 = vmatprep.mubr.bf16.mxu0 %v2014
    %2275 = vmatmul.mubr.bf16.gmra.mrb[0].mxu0 %v2006
    %v2276 = vpop.f32.mrb[0].mxu0
    %v2277 = vadd.f32 0.0, %v2276
    %v2278 = vpop.f32.mrb[0].mxu0
    %v2279 = vadd.f32 0.0, %v2278
    %v2280 = vpop.f32.mrb[0].mxu0
    %v2281 = vadd.f32 0.0, %v2280
    %v2282 = vpop.f32.mrb[0].mxu0
    %v2283 = vadd.f32 0.0, %v2282
    %2284 = vmatprep.mubr.bf16.mxu0 %v2015
    %2285 = vmatmul.mubr.bf16.gmra.mrb[0].mxu0 %v2007
    %v2286 = vpop.f32.mrb[0].mxu0
    %v2287 = vadd.f32 0.0, %v2286
    %v2288 = vpop.f32.mrb[0].mxu0
    %v2289 = vadd.f32 0.0, %v2288
    %v2290 = vpop.f32.mrb[0].mxu0
    %v2291 = vadd.f32 0.0, %v2290
    %v2292 = vpop.f32.mrb[0].mxu0
    %v2293 = vadd.f32 0.0, %v2292
    %2294 = vmatprep.mubr.bf16.mxu0 %v2016
    %2295 = vmatmul.mubr.bf16.gmra.mrb[0].mxu0 %v2008
    %v2296 = vpop.f32.mrb[0].mxu0
    %v2297 = vadd.f32 0.0, %v2296
    %v2298 = vpop.f32.mrb[0].mxu0
    %v2299 = vadd.f32 0.0, %v2298
    %v2300 = vpop.f32.mrb[0].mxu0
    %v2301 = vadd.f32 0.0, %v2300
    %v2302 = vpop.f32.mrb[0].mxu0
    %v2303 = vadd.f32 0.0, %v2302
    %2304 = vmatprep.mubr.bf16.mxu0 %v2017
    %2305 = vmatmul.mubr.bf16.gmra.mrb[0].mxu0 %v2009
    %v2306 = vpop.f32.mrb[0].mxu0
    %v2307 = vadd.f32 0.0, %v2306
    %v2308 = vpop.f32.mrb[0].mxu0
    %v2309 = vadd.f32 0.0, %v2308
    %v2310 = vpop.f32.mrb[0].mxu0
    %v2311 = vadd.f32 0.0, %v2310
    %v2312 = vpop.f32.mrb[0].mxu0
    %v2313 = vadd.f32 0.0, %v2312
    %2314 = vmatprep.mubr.bf16.mxu0 %v2018
    %2315 = vmatmul.mubr.bf16.gmra.mrb[0].mxu0 %v2010
    %v2316 = vpop.f32.mrb[0].mxu0
    %v2317 = vadd.f32 0.0, %v2316
    %v2318 = vpop.f32.mrb[0].mxu0
    %v2319 = vadd.f32 0.0, %v2318
    %v2320 = vpop.f32.mrb[0].mxu0
    %v2321 = vadd.f32 0.0, %v2320
    %v2322 = vpop.f32.mrb[0].mxu0
    %v2323 = vadd.f32 0.0, %v2322
    %2324 = vdwg.mxu0
    %s2325 = scalar_lea.vmem %s3, 4
    %v2326 = vld [vmem:[%s2325] sm:$0x1]
    %v2327 = vrot.slane %v2249, 1
    %v2328 = vrot.slane %v2253, 1
    %v2329 = vrot.slane %v2259, 1
    %v2330 = vrot.slane %v2263, 1
    %v2331 = vrot.slane %v2269, 1
    %v2332 = vrot.slane %v2273, 1
    %v2333 = vrot.slane %v2279, 1
    %v2334 = vrot.slane %v2283, 1
    %v2335 = vrot.slane %v2289, 1
    %v2336 = vrot.slane %v2293, 1
    %v2337 = vrot.slane %v2299, 1
    %v2338 = vrot.slane %v2303, 1
    %v2339 = vrot.slane %v2309, 1
    %v2340 = vrot.slane %v2313, 1
    %v2341 = vrot.slane %v2319, 1
    %v2342 = vrot.slane %v2323, 1
    %v2343 = vsel %vm614, %v2341, %v2342
    %v2344 = vsel %vm614, %v2340, %v2341
    %v2345 = vsel %vm614, %v2339, %v2340
    %v2346 = vsel %vm614, %v2338, %v2339
    %v2347 = vsel %vm614, %v2337, %v2338
    %v2348 = vsel %vm614, %v2336, %v2337
    %v2349 = vsel %vm614, %v2335, %v2336
    %v2350 = vsel %vm614, %v2334, %v2335
    %v2351 = vsel %vm614, %v2333, %v2334
    %v2352 = vsel %vm614, %v2332, %v2333
    %v2353 = vsel %vm614, %v2331, %v2332
    %v2354 = vsel %vm614, %v2330, %v2331
    %v2355 = vsel %vm614, %v2329, %v2330
    %v2356 = vsel %vm614, %v2328, %v2329
    %v2357 = vsel %vm614, %v2327, %v2328
    %v2358 = vsel %vm614, %v2342, %v2327
    %v2359 = vsel %vm326, 0.0, %v2357
    %v2360 = vsel %vm327, 0.0, %v2356
    %v2361 = vsel %vm326, 0.0, %v2355
    %v2362 = vsel %vm327, 0.0, %v2354
    %v2363 = vsel %vm326, 0.0, %v2353
    %v2364 = vsel %vm327, 0.0, %v2352
    %v2365 = vsel %vm326, 0.0, %v2351
    %v2366 = vsel %vm327, 0.0, %v2350
    %v2367 = vsel %vm326, 0.0, %v2349
    %v2368 = vsel %vm327, 0.0, %v2348
    %v2369 = vsel %vm326, 0.0, %v2347
    %v2370 = vsel %vm327, 0.0, %v2346
    %v2371 = vsel %vm326, 0.0, %v2345
    %v2372 = vsel %vm327, 0.0, %v2344
    %v2373 = vsel %vm326, 0.0, %v2343
    %v2374 = vsel %vm327, 0.0, %v2358
    %v2375 = vadd.f32 %v2247, %v2359
    %v2376 = vadd.f32 %v2251, %v2360
    %v2377 = vadd.f32 %v2257, %v2361
    %v2378 = vadd.f32 %v2261, %v2362
    %v2379 = vadd.f32 %v2267, %v2363
    %v2380 = vadd.f32 %v2271, %v2364
    %v2381 = vadd.f32 %v2277, %v2365
    %v2382 = vadd.f32 %v2281, %v2366
    %v2383 = vadd.f32 %v2287, %v2367
    %v2384 = vadd.f32 %v2291, %v2368
    %v2385 = vadd.f32 %v2297, %v2369
    %v2386 = vadd.f32 %v2301, %v2370
    %v2387 = vadd.f32 %v2307, %v2371
    %v2388 = vadd.f32 %v2311, %v2372
    %v2389 = vadd.f32 %v2317, %v2373
    %v2390 = vadd.f32 %v2321, %v2374
    %v2392 = vlaneseq
    %v2393 = vshrl.u32 %v2392, 7
    %v2394 = vsub.s32 0, %v2393
    %v2395 = vrot.slane %v2326, %v2394
    %v2397 = vadd.f32 %v2375, %v2395
    %v2398 = vadd.f32 %v2376, %v2395
    %v2399 = vadd.f32 %v2377, %v2395
    %v2400 = vadd.f32 %v2378, %v2395
    %v2401 = vadd.f32 %v2379, %v2395
    %v2402 = vadd.f32 %v2380, %v2395
    %v2403 = vadd.f32 %v2381, %v2395
    %v2404 = vadd.f32 %v2382, %v2395
    %v2405 = vadd.f32 %v2383, %v2395
    %v2406 = vadd.f32 %v2384, %v2395
    %v2407 = vadd.f32 %v2385, %v2395
    %v2408 = vadd.f32 %v2386, %v2395
    %v2409 = vadd.f32 %v2387, %v2395
    %v2410 = vadd.f32 %v2388, %v2395
    %v2411 = vadd.f32 %v2389, %v2395
    %v2412 = vadd.f32 %v2390, %v2395
    %v2413 = vmax.f32 %v2397, 0.0
    %v2414 = vmax.f32 %v2398, 0.0
    %v2415 = vmax.f32 %v2399, 0.0
    %v2416 = vmax.f32 %v2400, 0.0
    %v2417 = vmax.f32 %v2401, 0.0
    %v2418 = vmax.f32 %v2402, 0.0
    %v2419 = vmax.f32 %v2403, 0.0
    %v2420 = vmax.f32 %v2404, 0.0
    %v2421 = vmax.f32 %v2405, 0.0
    %v2422 = vmax.f32 %v2406, 0.0
    %v2423 = vmax.f32 %v2407, 0.0
    %v2424 = vmax.f32 %v2408, 0.0
    %v2425 = vmax.f32 %v2409, 0.0
    %v2426 = vmax.f32 %v2410, 0.0
    %v2427 = vmax.f32 %v2411, 0.0
    %v2428 = vmax.f32 %v2412, 0.0
    %v2429 = vrot.slane %v2413, 7
    %v2430 = vrot.slane %v2414, 7
    %v2431 = vrot.slane %v2415, 7
    %v2432 = vrot.slane %v2416, 7
    %v2433 = vrot.slane %v2417, 7
    %v2434 = vrot.slane %v2418, 7
    %v2435 = vrot.slane %v2419, 7
    %v2436 = vrot.slane %v2420, 7
    %v2437 = vrot.slane %v2421, 7
    %v2438 = vrot.slane %v2422, 7
    %v2439 = vrot.slane %v2423, 7
    %v2440 = vrot.slane %v2424, 7
    %v2441 = vrot.slane %v2425, 7
    %v2442 = vrot.slane %v2426, 7
    %v2443 = vrot.slane %v2427, 7
    %v2444 = vrot.slane %v2428, 7
    %v2445 = vsel %vm347, %v2443, %v2444
    %v2446 = vsel %vm347, %v2442, %v2443
    %v2447 = vsel %vm347, %v2441, %v2442
    %v2448 = vsel %vm347, %v2440, %v2441
    %v2449 = vsel %vm347, %v2439, %v2440
    %v2450 = vsel %vm347, %v2438, %v2439
    %v2451 = vsel %vm347, %v2437, %v2438
    %v2452 = vsel %vm347, %v2436, %v2437
    %v2453 = vsel %vm347, %v2435, %v2436
    %v2454 = vsel %vm347, %v2434, %v2435
    %v2455 = vsel %vm347, %v2433, %v2434
    %v2456 = vsel %vm347, %v2432, %v2433
    %v2457 = vsel %vm347, %v2431, %v2432
    %v2458 = vsel %vm347, %v2430, %v2431
    %v2459 = vsel %vm347, %v2429, %v2430
    %v2460 = vsel %vm347, %v2444, %v2429
    %v2461 = vsel %vm324, 0.0, %v2460
    %v2462 = vsel %vm325, 0.0, %v2459
    %v2463 = vsel %vm324, 0.0, %v2458
    %v2464 = vsel %vm325, 0.0, %v2457
    %v2465 = vsel %vm324, 0.0, %v2456
    %v2466 = vsel %vm325, 0.0, %v2455
    %v2467 = vsel %vm324, 0.0, %v2454
    %v2468 = vsel %vm325, 0.0, %v2453
    %v2469 = vsel %vm324, 0.0, %v2452
    %v2470 = vsel %vm325, 0.0, %v2451
    %v2471 = vsel %vm324, 0.0, %v2450
    %v2472 = vsel %vm325, 0.0, %v2449
    %v2473 = vsel %vm324, 0.0, %v2448
    %v2474 = vsel %vm325, 0.0, %v2447
    %v2475 = vsel %vm324, 0.0, %v2446
    %v2476 = vsel %vm325, 0.0, %v2445
    %v2477 = vpack.c.bf16 %v2414, %v2413
    %v2478 = vpack.c.bf16 %v2416, %v2415
    %v2479 = vpack.c.bf16 %v2418, %v2417
    %v2480 = vpack.c.bf16 %v2420, %v2419
    %v2481 = vpack.c.bf16 %v2422, %v2421
    %v2482 = vpack.c.bf16 %v2424, %v2423
    %v2483 = vpack.c.bf16 %v2426, %v2425
    %v2484 = vpack.c.bf16 %v2428, %v2427
    %v2485 = vpack.c.bf16 %v2462, %v2461
    %v2486 = vpack.c.bf16 %v2464, %v2463
    %v2487 = vpack.c.bf16 %v2466, %v2465
    %v2488 = vpack.c.bf16 %v2468, %v2467
    %v2489 = vpack.c.bf16 %v2470, %v2469
    %v2490 = vpack.c.bf16 %v2472, %v2471
    %v2491 = vpack.c.bf16 %v2474, %v2473
    %v2492 = vpack.c.bf16 %v2476, %v2475
    %s2493 = scalar_lea.vmem [#allocation7], 1280
    %v2494 = vld [vmem:[%s2493] sm:$0xff]
    %v2495 = vld [vmem:[%s2493 + $0x8] sm:$0xff]
    %v2496 = vld [vmem:[%s2493 + $0x10] sm:$0xff]
    %v2497 = vld [vmem:[%s2493 + $0x18] sm:$0xff]
    %v2498 = vld [vmem:[%s2493 + $0x20] sm:$0xff]
    %v2499 = vld [vmem:[%s2493 + $0x28] sm:$0xff]
    %v2500 = vld [vmem:[%s2493 + $0x30] sm:$0xff]
    %v2501 = vld [vmem:[%s2493 + $0x38] sm:$0xff]
    %v2502 = vld [vmem:[%s2493 + $0x40] sm:$0xff]
    %v2503 = vld [vmem:[%s2493 + $0x48] sm:$0xff]
    %v2504 = vld [vmem:[%s2493 + $0x50] sm:$0xff]
    %v2505 = vld [vmem:[%s2493 + $0x58] sm:$0xff]
    %v2506 = vld [vmem:[%s2493 + $0x60] sm:$0xff]
    %v2507 = vld [vmem:[%s2493 + $0x68] sm:$0xff]
    %v2508 = vld [vmem:[%s2493 + $0x70] sm:$0xff]
    %v2509 = vld [vmem:[%s2493 + $0x78] sm:$0xff]
    %v2510 = vld [vmem:[%s2493 + $0x80] sm:$0xff]
    %v2511 = vld [vmem:[%s2493 + $0x88] sm:$0xff]
    %v2512 = vld [vmem:[%s2493 + $0x90] sm:$0xff]
    %v2513 = vld [vmem:[%s2493 + $0x98] sm:$0xff]
    %v2514 = vld [vmem:[%s2493 + $0xa0] sm:$0xff]
    %v2515 = vld [vmem:[%s2493 + $0xa8] sm:$0xff]
    %v2516 = vld [vmem:[%s2493 + $0xb0] sm:$0xff]
    %v2517 = vld [vmem:[%s2493 + $0xb8] sm:$0xff]
    %v2518 = vld [vmem:[%s2493 + $0xc0] sm:$0xff]
    %v2519 = vld [vmem:[%s2493 + $0xc8] sm:$0xff]
    %v2520 = vld [vmem:[%s2493 + $0xd0] sm:$0xff]
    %v2521 = vld [vmem:[%s2493 + $0xd8] sm:$0xff]
    %v2522 = vld [vmem:[%s2493 + $0xe0] sm:$0xff]
    %v2523 = vld [vmem:[%s2493 + $0xe8] sm:$0xff]
    %v2524 = vld [vmem:[%s2493 + $0xf0] sm:$0xff]
    %v2525 = vld [vmem:[%s2493 + $0xf8] sm:$0xff]
    %v2558 = vunpack.c.l.b16 %v2494
    %v2559 = vunpack.c.h.b16 %v2494
    %v2560 = vunpack.c.l.b16 %v2495
    %v2561 = vunpack.c.h.b16 %v2495
    %v2562 = vunpack.c.l.b16 %v2496
    %v2563 = vunpack.c.h.b16 %v2496
    %v2564 = vunpack.c.l.b16 %v2497
    %v2565 = vunpack.c.h.b16 %v2497
    %v2566 = vunpack.c.l.b16 %v2498
    %v2567 = vunpack.c.h.b16 %v2498
    %v2568 = vunpack.c.l.b16 %v2499
    %v2569 = vunpack.c.h.b16 %v2499
    %v2570 = vunpack.c.l.b16 %v2500
    %v2571 = vunpack.c.h.b16 %v2500
    %v2572 = vunpack.c.l.b16 %v2501
    %v2573 = vunpack.c.h.b16 %v2501
    %v2574 = vunpack.c.l.b16 %v2502
    %v2575 = vunpack.c.h.b16 %v2502
    %v2576 = vunpack.c.l.b16 %v2503
    %v2577 = vunpack.c.h.b16 %v2503
    %v2578 = vunpack.c.l.b16 %v2504
    %v2579 = vunpack.c.h.b16 %v2504
    %v2580 = vunpack.c.l.b16 %v2505
    %v2581 = vunpack.c.h.b16 %v2505
    %v2582 = vunpack.c.l.b16 %v2506
    %v2583 = vunpack.c.h.b16 %v2506
    %v2584 = vunpack.c.l.b16 %v2507
    %v2585 = vunpack.c.h.b16 %v2507
    %v2586 = vunpack.c.l.b16 %v2508
    %v2587 = vunpack.c.h.b16 %v2508
    %v2588 = vunpack.c.l.b16 %v2509
    %v2589 = vunpack.c.h.b16 %v2509
    %v2590 = vunpack.c.l.b16 %v2510
    %v2591 = vunpack.c.h.b16 %v2510
    %v2592 = vunpack.c.l.b16 %v2511
    %v2593 = vunpack.c.h.b16 %v2511
    %v2594 = vunpack.c.l.b16 %v2512
    %v2595 = vunpack.c.h.b16 %v2512
    %v2596 = vunpack.c.l.b16 %v2513
    %v2597 = vunpack.c.h.b16 %v2513
    %v2598 = vunpack.c.l.b16 %v2514
    %v2599 = vunpack.c.h.b16 %v2514
    %v2600 = vunpack.c.l.b16 %v2515
    %v2601 = vunpack.c.h.b16 %v2515
    %v2602 = vunpack.c.l.b16 %v2516
    %v2603 = vunpack.c.h.b16 %v2516
    %v2604 = vunpack.c.l.b16 %v2517
    %v2605 = vunpack.c.h.b16 %v2517
    %v2606 = vunpack.c.l.b16 %v2518
    %v2607 = vunpack.c.h.b16 %v2518
    %v2608 = vunpack.c.l.b16 %v2519
    %v2609 = vunpack.c.h.b16 %v2519
    %v2610 = vunpack.c.l.b16 %v2520
    %v2611 = vunpack.c.h.b16 %v2520
    %v2612 = vunpack.c.l.b16 %v2521
    %v2613 = vunpack.c.h.b16 %v2521
    %v2614 = vunpack.c.l.b16 %v2522
    %v2615 = vunpack.c.h.b16 %v2522
    %v2616 = vunpack.c.l.b16 %v2523
    %v2617 = vunpack.c.h.b16 %v2523
    %v2618 = vunpack.c.l.b16 %v2524
    %v2619 = vunpack.c.h.b16 %v2524
    %v2620 = vunpack.c.l.b16 %v2525
    %v2621 = vunpack.c.h.b16 %v2525
    %v2622 = vpack.c.b16 %v2560, %v2558
    %v2623 = vpack.c.b16 %v2561, %v2559
    %v2624 = vpack.c.b16 %v2564, %v2562
    %v2625 = vpack.c.b16 %v2565, %v2563
    %v2626 = vpack.c.b16 %v2568, %v2566
    %v2627 = vpack.c.b16 %v2569, %v2567
    %v2628 = vpack.c.b16 %v2572, %v2570
    %v2629 = vpack.c.b16 %v2573, %v2571
    %v2630 = vpack.c.b16 %v2576, %v2574
    %v2631 = vpack.c.b16 %v2577, %v2575
    %v2632 = vpack.c.b16 %v2580, %v2578
    %v2633 = vpack.c.b16 %v2581, %v2579
    %v2634 = vpack.c.b16 %v2584, %v2582
    %v2635 = vpack.c.b16 %v2585, %v2583
    %v2636 = vpack.c.b16 %v2588, %v2586
    %v2637 = vpack.c.b16 %v2589, %v2587
    %v2638 = vpack.c.b16 %v2592, %v2590
    %v2639 = vpack.c.b16 %v2593, %v2591
    %v2640 = vpack.c.b16 %v2596, %v2594
    %v2641 = vpack.c.b16 %v2597, %v2595
    %v2642 = vpack.c.b16 %v2600, %v2598
    %v2643 = vpack.c.b16 %v2601, %v2599
    %v2644 = vpack.c.b16 %v2604, %v2602
    %v2645 = vpack.c.b16 %v2605, %v2603
    %v2646 = vpack.c.b16 %v2608, %v2606
    %v2647 = vpack.c.b16 %v2609, %v2607
    %v2648 = vpack.c.b16 %v2612, %v2610
    %v2649 = vpack.c.b16 %v2613, %v2611
    %v2650 = vpack.c.b16 %v2616, %v2614
    %v2651 = vpack.c.b16 %v2617, %v2615
    %v2652 = vpack.c.b16 %v2620, %v2618
    %v2653 = vpack.c.b16 %v2621, %v2619
    %2686 = vmatprep.subr.bf16.mxu0 %v2623
    %2687 = vmatpush1.bf16.msra.mxu0 %v2622
    %2688 = vmatprep.subr.bf16.mxu0 %v2625
    %2689 = vmatpush1.bf16.msra.mxu0 %v2624
    %2690 = vmatprep.subr.bf16.mxu0 %v2627
    %2691 = vmatpush1.bf16.msra.mxu0 %v2626
    %2692 = vmatprep.subr.bf16.mxu0 %v2629
    %2693 = vmatpush1.bf16.msra.mxu0 %v2628
    %2694 = vmatprep.subr.bf16.mxu0 %v2631
    %2695 = vmatpush1.bf16.msra.mxu0 %v2630
    %2696 = vmatprep.subr.bf16.mxu0 %v2633
    %2697 = vmatpush1.bf16.msra.mxu0 %v2632
    %2698 = vmatprep.subr.bf16.mxu0 %v2635
    %2699 = vmatpush1.bf16.msra.mxu0 %v2634
    %2700 = vmatprep.subr.bf16.mxu0 %v2637
    %2701 = vmatpush1.bf16.msra.mxu0 %v2636
    %2702 = vmatprep.subr.bf16.mxu0 %v2639
    %2703 = vmatpush1.bf16.msra.mxu0 %v2638
    %2704 = vmatprep.subr.bf16.mxu0 %v2641
    %2705 = vmatpush1.bf16.msra.mxu0 %v2640
    %2706 = vmatprep.subr.bf16.mxu0 %v2643
    %2707 = vmatpush1.bf16.msra.mxu0 %v2642
    %2708 = vmatprep.subr.bf16.mxu0 %v2645
    %2709 = vmatpush1.bf16.msra.mxu0 %v2644
    %2710 = vmatprep.subr.bf16.mxu0 %v2647
    %2711 = vmatpush1.bf16.msra.mxu0 %v2646
    %2712 = vmatprep.subr.bf16.mxu0 %v2649
    %2713 = vmatpush1.bf16.msra.mxu0 %v2648
    %2714 = vmatprep.subr.bf16.mxu0 %v2651
    %2715 = vmatpush1.bf16.msra.mxu0 %v2650
    %2716 = vmatprep.subr.bf16.mxu0 %v2653
    %2717 = vmatpush1.bf16.msra.mxu0 %v2652
    %2718 = vmatprep.mubr.bf16.mxu0 %v2485
    %2719 = vmatmul.mubr.bf16.gmra.mrb[0].mxu0 %v2477
    %v2720 = vpop.f32.mrb[0].mxu0
    %v2721 = vadd.f32 0.0, %v2720
    %v2722 = vpop.f32.mrb[0].mxu0
    %v2723 = vadd.f32 0.0, %v2722
    %v2724 = vpop.f32.mrb[0].mxu0
    %v2725 = vadd.f32 0.0, %v2724
    %v2726 = vpop.f32.mrb[0].mxu0
    %v2727 = vadd.f32 0.0, %v2726
    %2728 = vmatprep.mubr.bf16.mxu0 %v2486
    %2729 = vmatmul.mubr.bf16.gmra.mrb[0].mxu0 %v2478
    %v2730 = vpop.f32.mrb[0].mxu0
    %v2731 = vadd.f32 0.0, %v2730
    %v2732 = vpop.f32.mrb[0].mxu0
    %v2733 = vadd.f32 0.0, %v2732
    %v2734 = vpop.f32.mrb[0].mxu0
    %v2735 = vadd.f32 0.0, %v2734
    %v2736 = vpop.f32.mrb[0].mxu0
    %v2737 = vadd.f32 0.0, %v2736
    %2738 = vmatprep.mubr.bf16.mxu0 %v2487
    %2739 = vmatmul.mubr.bf16.gmra.mrb[0].mxu0 %v2479
    %v2740 = vpop.f32.mrb[0].mxu0
    %v2741 = vadd.f32 0.0, %v2740
    %v2742 = vpop.f32.mrb[0].mxu0
    %v2743 = vadd.f32 0.0, %v2742
    %v2744 = vpop.f32.mrb[0].mxu0
    %v2745 = vadd.f32 0.0, %v2744
    %v2746 = vpop.f32.mrb[0].mxu0
    %v2747 = vadd.f32 0.0, %v2746
    %2748 = vmatprep.mubr.bf16.mxu0 %v2488
    %2749 = vmatmul.mubr.bf16.gmra.mrb[0].mxu0 %v2480
    %v2750 = vpop.f32.mrb[0].mxu0
    %v2751 = vadd.f32 0.0, %v2750
    %v2752 = vpop.f32.mrb[0].mxu0
    %v2753 = vadd.f32 0.0, %v2752
    %v2754 = vpop.f32.mrb[0].mxu0
    %v2755 = vadd.f32 0.0, %v2754
    %v2756 = vpop.f32.mrb[0].mxu0
    %v2757 = vadd.f32 0.0, %v2756
    %2758 = vmatprep.mubr.bf16.mxu0 %v2489
    %2759 = vmatmul.mubr.bf16.gmra.mrb[0].mxu0 %v2481
    %v2760 = vpop.f32.mrb[0].mxu0
    %v2761 = vadd.f32 0.0, %v2760
    %v2762 = vpop.f32.mrb[0].mxu0
    %v2763 = vadd.f32 0.0, %v2762
    %v2764 = vpop.f32.mrb[0].mxu0
    %v2765 = vadd.f32 0.0, %v2764
    %v2766 = vpop.f32.mrb[0].mxu0
    %v2767 = vadd.f32 0.0, %v2766
    %2768 = vmatprep.mubr.bf16.mxu0 %v2490
    %2769 = vmatmul.mubr.bf16.gmra.mrb[0].mxu0 %v2482
    %v2770 = vpop.f32.mrb[0].mxu0
    %v2771 = vadd.f32 0.0, %v2770
    %v2772 = vpop.f32.mrb[0].mxu0
    %v2773 = vadd.f32 0.0, %v2772
    %v2774 = vpop.f32.mrb[0].mxu0
    %v2775 = vadd.f32 0.0, %v2774
    %v2776 = vpop.f32.mrb[0].mxu0
    %v2777 = vadd.f32 0.0, %v2776
    %2778 = vmatprep.mubr.bf16.mxu0 %v2491
    %2779 = vmatmul.mubr.bf16.gmra.mrb[0].mxu0 %v2483
    %v2780 = vpop.f32.mrb[0].mxu0
    %v2781 = vadd.f32 0.0, %v2780
    %v2782 = vpop.f32.mrb[0].mxu0
    %v2783 = vadd.f32 0.0, %v2782
    %v2784 = vpop.f32.mrb[0].mxu0
    %v2785 = vadd.f32 0.0, %v2784
    %v2786 = vpop.f32.mrb[0].mxu0
    %v2787 = vadd.f32 0.0, %v2786
    %2788 = vmatprep.mubr.bf16.mxu0 %v2492
    %2789 = vmatmul.mubr.bf16.gmra.mrb[0].mxu0 %v2484
    %v2790 = vpop.f32.mrb[0].mxu0
    %v2791 = vadd.f32 0.0, %v2790
    %v2792 = vpop.f32.mrb[0].mxu0
    %v2793 = vadd.f32 0.0, %v2792
    %v2794 = vpop.f32.mrb[0].mxu0
    %v2795 = vadd.f32 0.0, %v2794
    %v2796 = vpop.f32.mrb[0].mxu0
    %v2797 = vadd.f32 0.0, %v2796
    %2798 = vdwg.mxu0
    %s2799 = scalar_lea.vmem %s3, 5
    %v2800 = vld [vmem:[%s2799] sm:$0x1]
    %v2801 = vrot.slane %v2723, 1
    %v2802 = vrot.slane %v2727, 1
    %v2803 = vrot.slane %v2733, 1
    %v2804 = vrot.slane %v2737, 1
    %v2805 = vrot.slane %v2743, 1
    %v2806 = vrot.slane %v2747, 1
    %v2807 = vrot.slane %v2753, 1
    %v2808 = vrot.slane %v2757, 1
    %v2809 = vrot.slane %v2763, 1
    %v2810 = vrot.slane %v2767, 1
    %v2811 = vrot.slane %v2773, 1
    %v2812 = vrot.slane %v2777, 1
    %v2813 = vrot.slane %v2783, 1
    %v2814 = vrot.slane %v2787, 1
    %v2815 = vrot.slane %v2793, 1
    %v2816 = vrot.slane %v2797, 1
    %v2817 = vsel %vm614, %v2815, %v2816
    %v2818 = vsel %vm614, %v2814, %v2815
    %v2819 = vsel %vm614, %v2813, %v2814
    %v2820 = vsel %vm614, %v2812, %v2813
    %v2821 = vsel %vm614, %v2811, %v2812
    %v2822 = vsel %vm614, %v2810, %v2811
    %v2823 = vsel %vm614, %v2809, %v2810
    %v2824 = vsel %vm614, %v2808, %v2809
    %v2825 = vsel %vm614, %v2807, %v2808
    %v2826 = vsel %vm614, %v2806, %v2807
    %v2827 = vsel %vm614, %v2805, %v2806
    %v2828 = vsel %vm614, %v2804, %v2805
    %v2829 = vsel %vm614, %v2803, %v2804
    %v2830 = vsel %vm614, %v2802, %v2803
    %v2831 = vsel %vm614, %v2801, %v2802
    %v2832 = vsel %vm614, %v2816, %v2801
    %v2833 = vsel %vm326, 0.0, %v2831
    %v2834 = vsel %vm327, 0.0, %v2830
    %v2835 = vsel %vm326, 0.0, %v2829
    %v2836 = vsel %vm327, 0.0, %v2828
    %v2837 = vsel %vm326, 0.0, %v2827
    %v2838 = vsel %vm327, 0.0, %v2826
    %v2839 = vsel %vm326, 0.0, %v2825
    %v2840 = vsel %vm327, 0.0, %v2824
    %v2841 = vsel %vm326, 0.0, %v2823
    %v2842 = vsel %vm327, 0.0, %v2822
    %v2843 = vsel %vm326, 0.0, %v2821
    %v2844 = vsel %vm327, 0.0, %v2820
    %v2845 = vsel %vm326, 0.0, %v2819
    %v2846 = vsel %vm327, 0.0, %v2818
    %v2847 = vsel %vm326, 0.0, %v2817
    %v2848 = vsel %vm327, 0.0, %v2832
    %v2849 = vadd.f32 %v2721, %v2833
    %v2850 = vadd.f32 %v2725, %v2834
    %v2851 = vadd.f32 %v2731, %v2835
    %v2852 = vadd.f32 %v2735, %v2836
    %v2853 = vadd.f32 %v2741, %v2837
    %v2854 = vadd.f32 %v2745, %v2838
    %v2855 = vadd.f32 %v2751, %v2839
    %v2856 = vadd.f32 %v2755, %v2840
    %v2857 = vadd.f32 %v2761, %v2841
    %v2858 = vadd.f32 %v2765, %v2842
    %v2859 = vadd.f32 %v2771, %v2843
    %v2860 = vadd.f32 %v2775, %v2844
    %v2861 = vadd.f32 %v2781, %v2845
    %v2862 = vadd.f32 %v2785, %v2846
    %v2863 = vadd.f32 %v2791, %v2847
    %v2864 = vadd.f32 %v2795, %v2848
    %v2866 = vlaneseq
    %v2867 = vshrl.u32 %v2866, 7
    %v2868 = vsub.s32 0, %v2867
    %v2869 = vrot.slane %v2800, %v2868
    %v2871 = vadd.f32 %v2849, %v2869
    %v2872 = vadd.f32 %v2850, %v2869
    %v2873 = vadd.f32 %v2851, %v2869
    %v2874 = vadd.f32 %v2852, %v2869
    %v2875 = vadd.f32 %v2853, %v2869
    %v2876 = vadd.f32 %v2854, %v2869
    %v2877 = vadd.f32 %v2855, %v2869
    %v2878 = vadd.f32 %v2856, %v2869
    %v2879 = vadd.f32 %v2857, %v2869
    %v2880 = vadd.f32 %v2858, %v2869
    %v2881 = vadd.f32 %v2859, %v2869
    %v2882 = vadd.f32 %v2860, %v2869
    %v2883 = vadd.f32 %v2861, %v2869
    %v2884 = vadd.f32 %v2862, %v2869
    %v2885 = vadd.f32 %v2863, %v2869
    %v2886 = vadd.f32 %v2864, %v2869
    %v2887 = vmax.f32 %v2871, 0.0
    %v2888 = vmax.f32 %v2872, 0.0
    %v2889 = vmax.f32 %v2873, 0.0
    %v2890 = vmax.f32 %v2874, 0.0
    %v2891 = vmax.f32 %v2875, 0.0
    %v2892 = vmax.f32 %v2876, 0.0
    %v2893 = vmax.f32 %v2877, 0.0
    %v2894 = vmax.f32 %v2878, 0.0
    %v2895 = vmax.f32 %v2879, 0.0
    %v2896 = vmax.f32 %v2880, 0.0
    %v2897 = vmax.f32 %v2881, 0.0
    %v2898 = vmax.f32 %v2882, 0.0
    %v2899 = vmax.f32 %v2883, 0.0
    %v2900 = vmax.f32 %v2884, 0.0
    %v2901 = vmax.f32 %v2885, 0.0
    %v2902 = vmax.f32 %v2886, 0.0
    %v2903 = vadd.f32 %v2887, %v2888
    %v2904 = vrot.slane %v2903, 4
    %v2905 = vadd.f32 %v2903, %v2904
    %v2906 = vrot.slane %v2905, 2
    %v2907 = vadd.f32 %v2905, %v2906
    %v2908 = vrot.slane %v2907, 1
    %v2909 = vadd.f32 %v2907, %v2908
    %v2910 = vadd.f32 %v2889, %v2890
    %v2911 = vrot.slane %v2910, 4
    %v2912 = vadd.f32 %v2910, %v2911
    %v2913 = vrot.slane %v2912, 2
    %v2914 = vadd.f32 %v2912, %v2913
    %v2915 = vrot.slane %v2914, 1
    %v2916 = vadd.f32 %v2914, %v2915
    %v2917 = vadd.f32 %v2891, %v2892
    %v2918 = vrot.slane %v2917, 4
    %v2919 = vadd.f32 %v2917, %v2918
    %v2920 = vrot.slane %v2919, 2
    %v2921 = vadd.f32 %v2919, %v2920
    %v2922 = vrot.slane %v2921, 1
    %v2923 = vadd.f32 %v2921, %v2922
    %v2924 = vadd.f32 %v2893, %v2894
    %v2925 = vrot.slane %v2924, 4
    %v2926 = vadd.f32 %v2924, %v2925
    %v2927 = vrot.slane %v2926, 2
    %v2928 = vadd.f32 %v2926, %v2927
    %v2929 = vrot.slane %v2928, 1
    %v2930 = vadd.f32 %v2928, %v2929
    %v2931 = vadd.f32 %v2895, %v2896
    %v2932 = vrot.slane %v2931, 4
    %v2933 = vadd.f32 %v2931, %v2932
    %v2934 = vrot.slane %v2933, 2
    %v2935 = vadd.f32 %v2933, %v2934
    %v2936 = vrot.slane %v2935, 1
    %v2937 = vadd.f32 %v2935, %v2936
    %v2938 = vadd.f32 %v2897, %v2898
    %v2939 = vrot.slane %v2938, 4
    %v2940 = vadd.f32 %v2938, %v2939
    %v2941 = vrot.slane %v2940, 2
    %v2942 = vadd.f32 %v2940, %v2941
    %v2943 = vrot.slane %v2942, 1
    %v2944 = vadd.f32 %v2942, %v2943
    %v2945 = vadd.f32 %v2899, %v2900
    %v2946 = vrot.slane %v2945, 4
    %v2947 = vadd.f32 %v2945, %v2946
    %v2948 = vrot.slane %v2947, 2
    %v2949 = vadd.f32 %v2947, %v2948
    %v2950 = vrot.slane %v2949, 1
    %v2951 = vadd.f32 %v2949, %v2950
    %v2952 = vadd.f32 %v2901, %v2902
    %v2953 = vrot.slane %v2952, 4
    %v2954 = vadd.f32 %v2952, %v2953
    %v2955 = vrot.slane %v2954, 2
    %v2956 = vadd.f32 %v2954, %v2955
    %v2957 = vrot.slane %v2956, 1
    %v2958 = vadd.f32 %v2956, %v2957
    %v2959 = vpack.c.bf16 %v2909, %v2909
    %v2960 = vpack.c.bf16 %v2916, %v2916
    %v2961 = vpack.c.bf16 %v2923, %v2923
    %v2962 = vpack.c.bf16 %v2930, %v2930
    %v2963 = vpack.c.bf16 %v2937, %v2937
    %v2964 = vpack.c.bf16 %v2944, %v2944
    %v2965 = vpack.c.bf16 %v2951, %v2951
    %v2966 = vpack.c.bf16 %v2958, %v2958
    %v2967 = vld [vmem:[#allocation8] sm:$0xf]
    %v2968 = vld [vmem:[#allocation8 + $0x4] sm:$0xf]
    %v2969 = vld [vmem:[#allocation8 + $0x8] sm:$0xf]
    %v2970 = vld [vmem:[#allocation8 + $0xc] sm:$0xf]
    %v2971 = vld [vmem:[#allocation8 + $0x10] sm:$0xf]
    %v2972 = vld [vmem:[#allocation8 + $0x14] sm:$0xf]
    %v2973 = vld [vmem:[#allocation8 + $0x18] sm:$0xf]
    %v2974 = vld [vmem:[#allocation8 + $0x1c] sm:$0xf]
    %v2975 = vld [vmem:[#allocation8 + $0x20] sm:$0xf]
    %v2976 = vld [vmem:[#allocation8 + $0x24] sm:$0xf]
    %v2977 = vld [vmem:[#allocation8 + $0x28] sm:$0xf]
    %v2978 = vld [vmem:[#allocation8 + $0x2c] sm:$0xf]
    %v2979 = vld [vmem:[#allocation8 + $0x30] sm:$0xf]
    %v2980 = vld [vmem:[#allocation8 + $0x34] sm:$0xf]
    %v2981 = vld [vmem:[#allocation8 + $0x38] sm:$0xf]
    %v2982 = vld [vmem:[#allocation8 + $0x3c] sm:$0xf]
    %v2983 = vld [vmem:[%s5] sm:$0x1]
    %v2985 = vlaneseq
    %v2986 = vshrl.u32 %v2985, 7
    %v2987 = vsub.s32 0, %v2986
    %v2988 = vrot.slane %v2983, %v2987
    %v2998 = vunpack.c.l.b16 %v2959
    %v2999 = vunpack.c.l.b16 %v2960
    %v3000 = vunpack.c.l.b16 %v2961
    %v3001 = vunpack.c.l.b16 %v2962
    %v3002 = vunpack.c.l.b16 %v2963
    %v3003 = vunpack.c.l.b16 %v2964
    %v3004 = vunpack.c.l.b16 %v2965
    %v3005 = vunpack.c.l.b16 %v2966
    %vm3006 = vcmask 1041409
    %v3007 = vsel %vm3006, %v2999, %v2998
    %vm3008 = vcmask 1042434
    %v3009 = vsel %vm3008, %v3000, %v3007
    %vm3010 = vcmask 1043459
    %v3011 = vsel %vm3010, %v3001, %v3009
    %vm3012 = vcmask 1044484
    %v3013 = vsel %vm3012, %v3002, %v3011
    %vm3014 = vcmask 1045509
    %v3015 = vsel %vm3014, %v3003, %v3013
    %vm3016 = vcmask 1046534
    %v3017 = vsel %vm3016, %v3004, %v3015
    %vm3018 = vcmask 1047559
    %v3019 = vsel %vm3018, %v3005, %v3017
    %v3020 = vpack.c.b16 %v3019, %v3019
    %v3038 = vunpack.c.l.b16 %v2967
    %v3039 = vunpack.c.l.b16 %v2968
    %v3040 = vunpack.c.l.b16 %v2969
    %v3041 = vunpack.c.l.b16 %v2970
    %v3042 = vunpack.c.l.b16 %v2971
    %v3043 = vunpack.c.l.b16 %v2972
    %v3044 = vunpack.c.l.b16 %v2973
    %v3045 = vunpack.c.l.b16 %v2974
    %v3046 = vunpack.c.l.b16 %v2975
    %v3047 = vunpack.c.l.b16 %v2976
    %v3048 = vunpack.c.l.b16 %v2977
    %v3049 = vunpack.c.l.b16 %v2978
    %v3050 = vunpack.c.l.b16 %v2979
    %v3051 = vunpack.c.l.b16 %v2980
    %v3052 = vunpack.c.l.b16 %v2981
    %v3053 = vunpack.c.l.b16 %v2982
    %v3054 = vpack.c.b16 %v3039, %v3038
    %v3055 = vpack.c.b16 %v3041, %v3040
    %v3056 = vpack.c.b16 %v3043, %v3042
    %v3057 = vpack.c.b16 %v3045, %v3044
    %v3058 = vpack.c.b16 %v3047, %v3046
    %v3059 = vpack.c.b16 %v3049, %v3048
    %v3060 = vpack.c.b16 %v3051, %v3050
    %v3061 = vpack.c.b16 %v3053, %v3052
    %3070 = vmatprep.subr.bf16.mxu0 0
    %3071 = vmatpush1.bf16.msra.mxu0 %v3054
    %3072 = vmatprep.subr.bf16.mxu0 0
    %3073 = vmatpush1.bf16.msra.mxu0 %v3055
    %3074 = vmatprep.subr.bf16.mxu0 0
    %3075 = vmatpush1.bf16.msra.mxu0 %v3056
    %3076 = vmatprep.subr.bf16.mxu0 0
    %3077 = vmatpush1.bf16.msra.mxu0 %v3057
    %3078 = vmatprep.subr.bf16.mxu0 0
    %3079 = vmatpush1.bf16.msra.mxu0 %v3058
    %3080 = vmatprep.subr.bf16.mxu0 0
    %3081 = vmatpush1.bf16.msra.mxu0 %v3059
    %3082 = vmatprep.subr.bf16.mxu0 0
    %3083 = vmatpush1.bf16.msra.mxu0 %v3060
    %3084 = vmatprep.subr.bf16.mxu0 0
    %3085 = vmatpush1.bf16.msra.mxu0 %v3061
    %3086 = vmatprep.subr.bf16.mxu0 0
    %3087 = vmatpush1.bf16.msra.mxu0 0
    %3088 = vmatprep.subr.bf16.mxu0 0
    %3089 = vmatpush1.bf16.msra.mxu0 0
    %3090 = vmatprep.subr.bf16.mxu0 0
    %3091 = vmatpush1.bf16.msra.mxu0 0
    %3092 = vmatprep.subr.bf16.mxu0 0
    %3093 = vmatpush1.bf16.msra.mxu0 0
    %3094 = vmatprep.subr.bf16.mxu0 0
    %3095 = vmatpush1.bf16.msra.mxu0 0
    %3096 = vmatprep.subr.bf16.mxu0 0
    %3097 = vmatpush1.bf16.msra.mxu0 0
    %3098 = vmatprep.subr.bf16.mxu0 0
    %3099 = vmatpush1.bf16.msra.mxu0 0
    %3100 = vmatprep.subr.bf16.mxu0 0
    %3101 = vmatpush1.bf16.msra.mxu0 0
    %3102 = vmatprep.mubr.bf16.mxu0 0
    %3103 = vmatmul.mubr.bf16.gmra.mrb[0].mxu0 %v3020
    %v3104 = vpop.f32.mrb[0].mxu0
    %v3105 = vadd.f32 %v2988, %v3104
    %v3106 = vpop.f32.mrb[0].mxu0
    %v3107 = vpop.f32.mrb[0].mxu0
    %v3108 = vpop.f32.mrb[0].mxu0
    %3109 = vdwg.mxu0
    %3110 = vst [vmem:[#allocation10] sm:$0xff] %v3105
    // Predicated region
    $region42: #{tpu_custom_call.1} parent=1 // pred_check
      _
    $region43: #{tpu_custom_call.1} parent=1 // pred_check_branch
      %3112 = sbr.rel (0) target = $region45
    $region44: #{tpu_custom_call.1} parent=1 // pred_region
      %s3114 = ssub.s32 128, 128
      %3115 = vsyncadd [#allocation4], %s3114
      %s3117 = sshll.u32 [#allocation10], 4
      %s3118 = int_to_ptr.vmem [resolvable:$true] %s3117
      %3120 = dma.vmem_to_hbm [thread:$0]  %s3118, 128, %s6, [#allocation4]
    $region45: #{tpu_custom_call.1} parent=1 // pred_fallthru
      _
    // Predicated region
    $region46: #{tpu_custom_call.1} parent=1 // pred_check
      _
    $region47: #{tpu_custom_call.1} parent=1 // pred_check_branch
      %3122 = sbr.rel (0) target = $region49
    $region48: #{tpu_custom_call.1} parent=1 // pred_region
      %3123 = dma.done [#allocation4], 128
    $region49: #{tpu_custom_call.1} parent=1 // pred_fallthru
      _
    %3124 = vsyncpa [#allocation3], 1
    %3125 = vsyncpa [#allocation6], 1
    %3126 = vsyncpa [#allocation9], 1
    %3127 = vsyncpa [#allocation4], 1

</llo_original>
